<compile_context>
chip_gen: v7x
topology: tpu7x:2x2x1
jax: 0.10.0
libtpu: 0.0.40
codegen_flags: <defaults>
</compile_context>

<pallas_src>
import functools

import jax
import jax.numpy as jnp
from jax import lax
from jax.experimental import pallas as pl
from jax.experimental.pallas import tpu as pltpu


def _round_up(x, m):
    return ((x + m - 1) // m) * m


# ----------------------- fused attention + LSTM + fc kernel -----------------
def _fused_attn_lstm_fc_kernel(emb_ref, wq_ref, bq_ref, wk_ref, bk_ref,
                               wv_ref, bv_ref, wih_ref, whh_ref, blstm_ref,
                               wfc_ref, bfc_ref,
                               logits_ref, scores_ref, probs_ref,
                               *, hidden_pad, seq_pad, use_bf16_mxu):
    """One grid step == one batch block (whole batch at toy shapes).

    emb_ref    : (Bt, S, E)   embeddings for this batch block
    wq/wk/wv   : (E, E)       pre-transposed projection weights
    bq/bk/bv   : (1, E)
    wih_ref    : (E, 4*Hp)    LSTM input projection, gate blocks padded to Hp
    whh_ref    : (Hp, 4*Hp)   LSTM recurrent projection, padded
    blstm_ref  : (1, 4*Hp)    b_ih + b_hh, padded
    wfc_ref    : (Hp, Vp)     fc weight, zero-padded (lane-dense vocab)
    bfc_ref    : (1, Vp)
    logits_ref : (Bt, Vp)     padded logits output
    scores_ref : (Bt, S, Sp)  lane-padded attention scores
    probs_ref  : (Bt, S, Sp)  lane-padded attention probs
    """
    Bt, S, E = emb_ref.shape
    Hp = hidden_pad
    Sp = seq_pad

    def mm(a, b):  # 2-D MXU matmul, f32 accumulate
        if use_bf16_mxu:
            a = a.astype(jnp.bfloat16)
            b = b.astype(jnp.bfloat16)
        return jnp.dot(a, b, preferred_element_type=jnp.float32)

    def bmm(eq, a, b):  # batched MXU matmul, f32 accumulate
        if use_bf16_mxu:
            a = a.astype(jnp.bfloat16)
            b = b.astype(jnp.bfloat16)
        return jnp.einsum(eq, a, b, preferred_element_type=jnp.float32)

    # ---- attention: batch-folded projections (M = Bt*S rows) ----
    x2 = emb_ref[...].reshape(Bt * S, E)                          # (Bt*S, E)
    q = (mm(x2, wq_ref[...]) + bq_ref[...]).reshape(Bt, S, E)
    k = (mm(x2, wk_ref[...]) + bk_ref[...]).reshape(Bt, S, E)
    v = (mm(x2, wv_ref[...]) + bv_ref[...]).reshape(Bt, S, E)

    scale = 1.0 / jnp.sqrt(jnp.float32(E))
    scores = bmm("bqe,bke->bqk", q, k) * scale                    # (Bt, S, S)

    m = jnp.max(scores, axis=-1, keepdims=True)
    ex = jnp.exp(scores - m)
    probs = ex / jnp.sum(ex, axis=-1, keepdims=True)              # exact divide

    attn = bmm("bqk,bke->bqe", probs, v)                          # (Bt, S, E)

    # ---- lane-dense (multiple-of-128) stores of scores / probs ----
    if Sp > S:
        zpad = jnp.zeros((Bt, S, Sp - S), jnp.float32)
        scores_ref[...] = jnp.concatenate([scores, zpad], axis=-1)
        probs_ref[...] = jnp.concatenate([probs, zpad], axis=-1)
    else:
        scores_ref[...] = scores
        probs_ref[...] = probs

    # ---- LSTM: hoist x @ W_ih out of the recurrence (one matmul for all t);
    # for short S keep it as a register value and slice with static indices. --
    xproj = (mm(attn.reshape(Bt * S, E), wih_ref[...])
             + blstm_ref[...]).reshape(Bt, S, 4 * Hp)             # (Bt, S, 4Hp)

    whh = whh_ref[...]                                            # (Hp, 4Hp)
    h = jnp.zeros((Bt, Hp), jnp.float32)
    c = jnp.zeros((Bt, Hp), jnp.float32)
    for t in range(S):  # static full unroll (S is small; see header TODO)
        gates = xproj[:, t, :] + mm(h, whh)                       # (Bt, 4Hp)
        i = jax.nn.sigmoid(gates[:, 0 * Hp:1 * Hp])
        f = jax.nn.sigmoid(gates[:, 1 * Hp:2 * Hp])
        g = jnp.tanh(gates[:, 2 * Hp:3 * Hp])
        o = jax.nn.sigmoid(gates[:, 3 * Hp:4 * Hp])
        c = f * c + i * g
        h = o * jnp.tanh(c)

    # ---- fc: lane-dense padded logits ----
    logits_ref[...] = mm(h, wfc_ref[...]) + bfc_ref[...]          # (Bt, Vp)


# ------------------------------ parameters -----------------------------------
def init_params(key, vocab_size, embed_dim, hidden_dim):
    """PyTorch-layout parameters (Linear weights stored (out, in))."""
    ks = jax.random.split(key, 13)

    def u(k, shape, scale):
        return jax.random.uniform(k, shape, jnp.float32, -scale, scale)

    e_scale = 1.0 / float(embed_dim) ** 0.5
    h_scale = 1.0 / float(hidden_dim) ** 0.5

    return {
        "embedding": jax.random.normal(ks[0], (vocab_size, embed_dim), jnp.float32),
        "wq": u(ks[1], (embed_dim, embed_dim), e_scale), "bq": u(ks[2], (embed_dim,), e_scale),
        "wk": u(ks[3], (embed_dim, embed_dim), e_scale), "bk": u(ks[4], (embed_dim,), e_scale),
        "wv": u(ks[5], (embed_dim, embed_dim), e_scale), "bv": u(ks[6], (embed_dim,), e_scale),
        "w_ih": u(ks[7], (4 * hidden_dim, embed_dim), h_scale),
        "w_hh": u(ks[8], (4 * hidden_dim, hidden_dim), h_scale),
        "b_ih": u(ks[9], (4 * hidden_dim,), h_scale),
        "b_hh": u(ks[10], (4 * hidden_dim,), h_scale),
        "w_fc": u(ks[11], (vocab_size, hidden_dim), h_scale),
        "b_fc": u(ks[12], (vocab_size,), h_scale),
    }


def prepare_params(params, vocab_size, embed_dim, hidden_dim):
    """One-time repack: pre-transpose to (in, out), fuse the two LSTM biases,
    zero-pad the hidden dim to lane-dense Hp (per gate block) and the vocab to
    lane-dense Vp.  Padding is exact: padded weight rows/cols are zero, so the
    padded hidden/cell lanes stay identically zero through the recurrence."""
    E, H, V = embed_dim, hidden_dim, vocab_size
    Hp = max(_round_up(H, 128), 128)
    Vp = max(_round_up(V, 128), 128)

    def pad_gate_cols(w_t):  # (rows, 4H) -> (rows, 4Hp), gate blocks padded
        rows = w_t.shape[0]
        out = jnp.zeros((rows, 4 * Hp), jnp.float32)
        for gi in range(4):
            out = out.at[:, gi * Hp:gi * Hp + H].set(w_t[:, gi * H:(gi + 1) * H])
        return out

    wih = pad_gate_cols(params["w_ih"].T)                              # (E, 4Hp)
    whh = jnp.zeros((Hp, 4 * Hp), jnp.float32).at[:H, :].set(
        pad_gate_cols(params["w_hh"].T))                               # (Hp, 4Hp)
    blstm = pad_gate_cols((params["b_ih"] + params["b_hh"]).reshape(1, 4 * H))

    wfc = jnp.zeros((Hp, Vp), jnp.float32).at[:H, :V].set(params["w_fc"].T)
    bfc = jnp.zeros((1, Vp), jnp.float32).at[0, :V].set(params["b_fc"])

    return {
        "embedding": params["embedding"],
        "wq": params["wq"].T, "bq": params["bq"].reshape(1, E),
        "wk": params["wk"].T, "bk": params["bk"].reshape(1, E),
        "wv": params["wv"].T, "bv": params["bv"].reshape(1, E),
        "wih": wih, "whh": whh, "blstm": blstm,
        "wfc": wfc, "bfc": bfc,
    }


# ------------------------------ forward --------------------------------------
@functools.partial(jax.jit, static_argnames=("vocab_size", "use_bf16_mxu"))
def forward(x, p, *, vocab_size, use_bf16_mxu=False):
    emb = jnp.take(p["embedding"], x, axis=0)           # (B, S, E) gather glue
    B, S, E = emb.shape
    Hp = p["whh"].shape[0]
    Vp = p["wfc"].shape[1]
    Sp = max(_round_up(S, 128), 128)                    # lane-dense scores/probs

    operands = (emb, p["wq"], p["bq"], p["wk"], p["bk"], p["wv"], p["bv"],
                p["wih"], p["whh"], p["blstm"], p["wfc"], p["bfc"])

    # VMEM budget: double-buffered inputs + outputs + headroom, clamped so the
    # same code stays within v7x's 64 MiB physical VMEM.
    in_bytes = sum(int(a.size) * a.dtype.itemsize for a in operands)
    out_bytes = 4 * (B * Vp + 2 * B * S * Sp)
    vmem_limit = int(min(max(2 * (in_bytes + out_bytes) + (8 << 20), 16 << 20),
                         64 << 20))

    grid_spec = pltpu.PrefetchScalarGridSpec(
        num_scalar_prefetch=0,
        grid=(1,),                      # whole batch folded into one block
        in_specs=[
            pl.BlockSpec((B, S, E), lambda b: (b, 0, 0)),        # emb block
            pl.BlockSpec((E, E), lambda b: (0, 0)),              # wq
            pl.BlockSpec((1, E), lambda b: (0, 0)),              # bq
            pl.BlockSpec((E, E), lambda b: (0, 0)),              # wk
            pl.BlockSpec((1, E), lambda b: (0, 0)),              # bk
            pl.BlockSpec((E, E), lambda b: (0, 0)),              # wv
            pl.BlockSpec((1, E), lambda b: (0, 0)),              # bv
            pl.BlockSpec((E, 4 * Hp), lambda b: (0, 0)),         # w_ih
            pl.BlockSpec((Hp, 4 * Hp), lambda b: (0, 0)),        # w_hh
            pl.BlockSpec((1, 4 * Hp), lambda b: (0, 0)),         # b_lstm
            pl.BlockSpec((Hp, Vp), lambda b: (0, 0)),            # w_fc
            pl.BlockSpec((1, Vp), lambda b: (0, 0)),             # b_fc
        ],
        out_specs=(
            pl.BlockSpec((B, Vp), lambda b: (b, 0)),             # logits (padded)
            pl.BlockSpec((B, S, Sp), lambda b: (b, 0, 0)),       # scores (padded)
            pl.BlockSpec((B, S, Sp), lambda b: (b, 0, 0)),       # probs  (padded)
        ),
    )

    logits_pad, scores_pad, probs_pad = pl.pallas_call(
        functools.partial(_fused_attn_lstm_fc_kernel, hidden_pad=Hp,
                          seq_pad=Sp, use_bf16_mxu=use_bf16_mxu),
        out_shape=(
            jax.ShapeDtypeStruct((B, Vp), jnp.float32),
            jax.ShapeDtypeStruct((B, S, Sp), jnp.float32),
            jax.ShapeDtypeStruct((B, S, Sp), jnp.float32),
        ),
        grid_spec=grid_spec,
        compiler_params=pltpu.CompilerParams(
            dimension_semantics=("parallel",),
            vmem_limit_bytes=vmem_limit,
        ),
    )(*operands)

    logits = logits_pad[:, :vocab_size]                 # drop lane padding
    scores = scores_pad[:, :, :S]
    probs = probs_pad[:, :, :S]
    return logits, scores, probs


# --------------------------- pure-JAX reference -------------------------------
def forward_ref(x, params):
    emb = jnp.take(params["embedding"], x, axis=0)
    E = emb.shape[-1]
    H = params["w_hh"].shape[1]
    q = emb @ params["wq"].T + params["bq"]
    k = emb @ params["wk"].T + params["bk"]
    v = emb @ params["wv"].T + params["bv"]
    scores = jnp.einsum("bqe,bke->bqk", q, k) / jnp.sqrt(jnp.float32(E))
    probs = jax.nn.softmax(scores, axis=-1)
    attn = jnp.einsum("bqk,bke->bqe", probs, v)

    B, S, _ = attn.shape
    h = jnp.zeros((B, H), jnp.float32)
    c = jnp.zeros((B, H), jnp.float32)
    for t in range(S):
        gates = (attn[:, t, :] @ params["w_ih"].T + params["b_ih"]
                 + h @ params["w_hh"].T + params["b_hh"])
        i = jax.nn.sigmoid(gates[:, 0:H])
        f = jax.nn.sigmoid(gates[:, H:2 * H])
        g = jnp.tanh(gates[:, 2 * H:3 * H])
        o = jax.nn.sigmoid(gates[:, 3 * H:4 * H])
        c = f * c + i * g
        h = o * jnp.tanh(c)
    logits = h @ params["w_fc"].T + params["b_fc"]
    return logits, scores, probs


if __name__ == "__main__":
    vocab_size, embed_dim, hidden_dim = 64, 32, 32
    batch, seq = 2, 8

    key = jax.random.PRNGKey(0)
    pkey, xkey = jax.random.split(key)
    torch_params = init_params(pkey, vocab_size, embed_dim, hidden_dim)
    p = prepare_params(torch_params, vocab_size, embed_dim, hidden_dim)
    x = jax.random.randint(xkey, (batch, seq), 0, vocab_size, dtype=jnp.int32)

    logits, scores, probs = jax.block_until_ready(
        forward(x, p, vocab_size=vocab_size))
    logits_r, scores_r, probs_r = forward_ref(x, torch_params)

    assert logits.shape == (batch, vocab_size)
    assert scores.shape == (batch, seq, seq)
    assert probs.shape == (batch, seq, seq)
    assert jnp.allclose(scores, scores_r, atol=1e-4, rtol=1e-4)
    assert jnp.allclose(probs, probs_r, atol=5e-4, rtol=5e-4)
    assert jnp.allclose(logits, logits_r, atol=2e-3, rtol=2e-3)

    print("KERNEL_OK")
</pallas_src>

<mosaic_0001>
module attributes {stable_mosaic.version = 11 : i64} {
  func.func @_fused_attn_lstm_fc_kernel(%arg0: i32, %arg1: memref<2x8x32xf32, #tpu.memory_space<vmem>>, %arg2: memref<32x32xf32, #tpu.memory_space<vmem>>, %arg3: memref<1x32xf32, #tpu.memory_space<vmem>>, %arg4: memref<32x32xf32, #tpu.memory_space<vmem>>, %arg5: memref<1x32xf32, #tpu.memory_space<vmem>>, %arg6: memref<32x32xf32, #tpu.memory_space<vmem>>, %arg7: memref<1x32xf32, #tpu.memory_space<vmem>>, %arg8: memref<32x512xf32, #tpu.memory_space<vmem>>, %arg9: memref<128x512xf32, #tpu.memory_space<vmem>>, %arg10: memref<1x512xf32, #tpu.memory_space<vmem>>, %arg11: memref<128x128xf32, #tpu.memory_space<vmem>>, %arg12: memref<1x128xf32, #tpu.memory_space<vmem>>, %arg13: memref<2x128xf32, #tpu.memory_space<vmem>>, %arg14: memref<2x8x128xf32, #tpu.memory_space<vmem>>, %arg15: memref<2x8x128xf32, #tpu.memory_space<vmem>>) attributes {dimension_semantics = [#tpu.dimension_semantics<parallel>], iteration_bounds = array<i64: 1>, scalar_prefetch = 0 : i64, scratch_operands = 0 : i64, tpu.core_type = #tpu.core_type<tc>, window_params = [{transform_indices = @transform_0, window_bounds = array<i64: 2, 8, 32>}, {pipeline_mode = #tpu.pipeline_mode<synchronous>, transform_indices = @transform_1, window_bounds = array<i64: 32, 32>}, {pipeline_mode = #tpu.pipeline_mode<synchronous>, transform_indices = @transform_2, window_bounds = array<i64: 1, 32>}, {pipeline_mode = #tpu.pipeline_mode<synchronous>, transform_indices = @transform_3, window_bounds = array<i64: 32, 32>}, {pipeline_mode = #tpu.pipeline_mode<synchronous>, transform_indices = @transform_4, window_bounds = array<i64: 1, 32>}, {pipeline_mode = #tpu.pipeline_mode<synchronous>, transform_indices = @transform_5, window_bounds = array<i64: 32, 32>}, {pipeline_mode = #tpu.pipeline_mode<synchronous>, transform_indices = @transform_6, window_bounds = array<i64: 1, 32>}, {pipeline_mode = #tpu.pipeline_mode<synchronous>, transform_indices = @transform_7, window_bounds = array<i64: 32, 512>}, {pipeline_mode = #tpu.pipeline_mode<synchronous>, transform_indices = @transform_8, window_bounds = array<i64: 128, 512>}, {pipeline_mode = #tpu.pipeline_mode<synchronous>, transform_indices = @transform_9, window_bounds = array<i64: 1, 512>}, {pipeline_mode = #tpu.pipeline_mode<synchronous>, transform_indices = @transform_10, window_bounds = array<i64: 128, 128>}, {pipeline_mode = #tpu.pipeline_mode<synchronous>, transform_indices = @transform_11, window_bounds = array<i64: 1, 128>}, {transform_indices = @transform_12, window_bounds = array<i64: 2, 128>}, {transform_indices = @transform_13, window_bounds = array<i64: 2, 8, 128>}, {transform_indices = @transform_14, window_bounds = array<i64: 2, 8, 128>}]} {
    %c0 = arith.constant 0 : index
    %c0_0 = arith.constant 0 : index
    %c0_1 = arith.constant 0 : index
    %0 = vector.load %arg1[%c0, %c0_0, %c0_1] : memref<2x8x32xf32, #tpu.memory_space<vmem>>, vector<2x8x32xf32>
    %1 = vector.shape_cast %0 : vector<2x8x32xf32> to vector<16x32xf32>
    %c0_2 = arith.constant 0 : index
    %c0_3 = arith.constant 0 : index
    %2 = vector.load %arg2[%c0_2, %c0_3] : memref<32x32xf32, #tpu.memory_space<vmem>>, vector<32x32xf32>
    %cst = arith.constant dense<0.000000e+00> : vector<16x32xf32>
    %3 = tpu.matmul %1, %2, %cst {dimension_numbers = #tpu.dot_dimension_numbers<[1], [0], [0], [1], [0, 0, 1, 1], [], []>} : vector<16x32xf32>, vector<32x32xf32>, vector<16x32xf32> -> vector<16x32xf32>
    %c0_4 = arith.constant 0 : index
    %c0_5 = arith.constant 0 : index
    %4 = vector.load %arg3[%c0_4, %c0_5] : memref<1x32xf32, #tpu.memory_space<vmem>>, vector<1x32xf32>
    %5 = vector.broadcast %4 : vector<1x32xf32> to vector<16x32xf32>
    %6 = arith.addf %3, %5 : vector<16x32xf32>
    %7 = vector.shape_cast %6 : vector<16x32xf32> to vector<2x8x32xf32>
    %c0_6 = arith.constant 0 : index
    %c0_7 = arith.constant 0 : index
    %8 = vector.load %arg4[%c0_6, %c0_7] : memref<32x32xf32, #tpu.memory_space<vmem>>, vector<32x32xf32>
    %cst_8 = arith.constant dense<0.000000e+00> : vector<16x32xf32>
    %9 = tpu.matmul %1, %8, %cst_8 {dimension_numbers = #tpu.dot_dimension_numbers<[1], [0], [0], [1], [0, 0, 1, 1], [], []>} : vector<16x32xf32>, vector<32x32xf32>, vector<16x32xf32> -> vector<16x32xf32>
    %c0_9 = arith.constant 0 : index
    %c0_10 = arith.constant 0 : index
    %10 = vector.load %arg5[%c0_9, %c0_10] : memref<1x32xf32, #tpu.memory_space<vmem>>, vector<1x32xf32>
    %11 = vector.broadcast %10 : vector<1x32xf32> to vector<16x32xf32>
    %12 = arith.addf %9, %11 : vector<16x32xf32>
    %13 = vector.shape_cast %12 : vector<16x32xf32> to vector<2x8x32xf32>
    %c0_11 = arith.constant 0 : index
    %c0_12 = arith.constant 0 : index
    %14 = vector.load %arg6[%c0_11, %c0_12] : memref<32x32xf32, #tpu.memory_space<vmem>>, vector<32x32xf32>
    %cst_13 = arith.constant dense<0.000000e+00> : vector<16x32xf32>
    %15 = tpu.matmul %1, %14, %cst_13 {dimension_numbers = #tpu.dot_dimension_numbers<[1], [0], [0], [1], [0, 0, 1, 1], [], []>} : vector<16x32xf32>, vector<32x32xf32>, vector<16x32xf32> -> vector<16x32xf32>
    %c0_14 = arith.constant 0 : index
    %c0_15 = arith.constant 0 : index
    %16 = vector.load %arg7[%c0_14, %c0_15] : memref<1x32xf32, #tpu.memory_space<vmem>>, vector<1x32xf32>
    %17 = vector.broadcast %16 : vector<1x32xf32> to vector<16x32xf32>
    %18 = arith.addf %15, %17 : vector<16x32xf32>
    %19 = vector.shape_cast %18 : vector<16x32xf32> to vector<2x8x32xf32>
    %cst_16 = arith.constant 3.200000e+01 : f32
    %20 = math.sqrt %cst_16 : f32
    %cst_17 = arith.constant 1.000000e+00 : f32
    %21 = arith.divf %cst_17, %20 : f32
    "tpu.trace_start"() <{level = 10 : i32, message = "bqe,bke->bqk"}> : () -> ()
    %cst_18 = arith.constant dense<0.000000e+00> : vector<2x8x8xf32>
    %22 = tpu.matmul %7, %13, %cst_18 {dimension_numbers = #tpu.dot_dimension_numbers<[2], [2], [1], [1], [0, 0, 0, 1, 1, 1], [0], [0]>} : vector<2x8x32xf32>, vector<2x8x32xf32>, vector<2x8x8xf32> -> vector<2x8x8xf32>
    "tpu.trace_stop"() : () -> ()
    %23 = vector.broadcast %21 : f32 to vector<2x8x8xf32>
    %24 = arith.mulf %22, %23 : vector<2x8x8xf32>
    %cst_19 = arith.constant dense<0xFF800000> : vector<2x8xf32>
    %25 = vector.multi_reduction <maximumf>, %24, %cst_19 [2] : vector<2x8x8xf32> to vector<2x8xf32>
    %26 = vector.shape_cast %25 : vector<2x8xf32> to vector<2x8x1xf32>
    %27 = vector.broadcast %26 : vector<2x8x1xf32> to vector<2x8x8xf32>
    %28 = arith.subf %24, %27 : vector<2x8x8xf32>
    %29 = math.exp %28 : vector<2x8x8xf32>
    %cst_20 = arith.constant dense<0.000000e+00> : vector<2x8xf32>
    %30 = vector.multi_reduction <add>, %29, %cst_20 [2] : vector<2x8x8xf32> to vector<2x8xf32>
    %31 = vector.shape_cast %30 : vector<2x8xf32> to vector<2x8x1xf32>
    %32 = vector.broadcast %31 : vector<2x8x1xf32> to vector<2x8x8xf32>
    %33 = arith.divf %29, %32 : vector<2x8x8xf32>
    "tpu.trace_start"() <{level = 10 : i32, message = "bqk,bke->bqe"}> : () -> ()
    %cst_21 = arith.constant dense<0.000000e+00> : vector<2x8x32xf32>
    %34 = tpu.matmul %33, %19, %cst_21 {dimension_numbers = #tpu.dot_dimension_numbers<[2], [1], [1], [2], [0, 0, 0, 1, 1, 2], [0], [0]>} : vector<2x8x8xf32>, vector<2x8x32xf32>, vector<2x8x32xf32> -> vector<2x8x32xf32>
    %cst_22 = arith.constant 0.000000e+00 : f32
    "tpu.trace_stop"() : () -> ()
    %35 = vector.broadcast %cst_22 : f32 to vector<2x8x120xf32>
    %36 = tpu.concatenate %24, %35 in 2 : vector<2x8x8xf32>, vector<2x8x120xf32> -> vector<2x8x128xf32>
    %c0_23 = arith.constant 0 : index
    %c0_24 = arith.constant 0 : index
    %c0_25 = arith.constant 0 : index
    %37 = vector.load %arg14[%c0_23, %c0_24, %c0_25] : memref<2x8x128xf32, #tpu.memory_space<vmem>>, vector<2x8x128xf32>
    tpu.vector_store %arg14[%c0_23, %c0_24, %c0_25], %36 {strides = array<i32>} : memref<2x8x128xf32, #tpu.memory_space<vmem>>, vector<2x8x128xf32>,
    %38 = tpu.concatenate %33, %35 in 2 : vector<2x8x8xf32>, vector<2x8x120xf32> -> vector<2x8x128xf32>
    %c0_26 = arith.constant 0 : index
    %c0_27 = arith.constant 0 : index
    %c0_28 = arith.constant 0 : index
    %39 = vector.load %arg15[%c0_26, %c0_27, %c0_28] : memref<2x8x128xf32, #tpu.memory_space<vmem>>, vector<2x8x128xf32>
    tpu.vector_store %arg15[%c0_26, %c0_27, %c0_28], %38 {strides = array<i32>} : memref<2x8x128xf32, #tpu.memory_space<vmem>>, vector<2x8x128xf32>,
    %40 = vector.shape_cast %34 : vector<2x8x32xf32> to vector<16x32xf32>
    %c0_29 = arith.constant 0 : index
    %c0_30 = arith.constant 0 : index
    %41 = vector.load %arg8[%c0_29, %c0_30] : memref<32x512xf32, #tpu.memory_space<vmem>>, vector<32x512xf32>
    %cst_31 = arith.constant dense<0.000000e+00> : vector<16x512xf32>
    %42 = tpu.matmul %40, %41, %cst_31 {dimension_numbers = #tpu.dot_dimension_numbers<[1], [0], [0], [1], [0, 0, 1, 1], [], []>} : vector<16x32xf32>, vector<32x512xf32>, vector<16x512xf32> -> vector<16x512xf32>
    %c0_32 = arith.constant 0 : index
    %c0_33 = arith.constant 0 : index
    %43 = vector.load %arg10[%c0_32, %c0_33] : memref<1x512xf32, #tpu.memory_space<vmem>>, vector<1x512xf32>
    %44 = vector.broadcast %43 : vector<1x512xf32> to vector<16x512xf32>
    %45 = arith.addf %42, %44 : vector<16x512xf32>
    %46 = vector.shape_cast %45 : vector<16x512xf32> to vector<2x8x512xf32>
    %c0_34 = arith.constant 0 : index
    %c0_35 = arith.constant 0 : index
    %47 = vector.load %arg9[%c0_34, %c0_35] : memref<128x512xf32, #tpu.memory_space<vmem>>, vector<128x512xf32>
    %cst_36 = arith.constant 0.000000e+00 : f32
    %48 = vector.broadcast %cst_36 : f32 to vector<2x128xf32>
    %cst_37 = arith.constant 0.000000e+00 : f32
    %49 = vector.broadcast %cst_37 : f32 to vector<2x128xf32>
    %50 = vector.extract_strided_slice %46 {offsets = [0, 0, 0], sizes = [2, 1, 512], strides = [1, 1, 1]} : vector<2x8x512xf32> to vector<2x1x512xf32>
    %51 = vector.shape_cast %50 : vector<2x1x512xf32> to vector<2x512xf32>
    %cst_38 = arith.constant dense<0.000000e+00> : vector<2x512xf32>
    %52 = tpu.matmul %48, %47, %cst_38 {dimension_numbers = #tpu.dot_dimension_numbers<[1], [0], [0], [1], [0, 0, 1, 1], [], []>} : vector<2x128xf32>, vector<128x512xf32>, vector<2x512xf32> -> vector<2x512xf32>
    %53 = arith.addf %51, %52 : vector<2x512xf32>
    %54 = vector.extract_strided_slice %53 {offsets = [0, 0], sizes = [2, 128], strides = [1, 1]} : vector<2x512xf32> to vector<2x128xf32>
    %55 = arith.negf %54 : vector<2x128xf32>
    %56 = math.exp %55 : vector<2x128xf32>
    %cst_39 = arith.constant 1.000000e+00 : f32
    %57 = vector.broadcast %cst_39 : f32 to vector<2x128xf32>
    %58 = arith.addf %57, %56 : vector<2x128xf32>
    %59 = arith.divf %57, %58 : vector<2x128xf32>
    %60 = vector.extract_strided_slice %53 {offsets = [0, 128], sizes = [2, 128], strides = [1, 1]} : vector<2x512xf32> to vector<2x128xf32>
    %61 = arith.negf %60 : vector<2x128xf32>
    %62 = math.exp %61 : vector<2x128xf32>
    %cst_40 = arith.constant 1.000000e+00 : f32
    %63 = vector.broadcast %cst_40 : f32 to vector<2x128xf32>
    %64 = arith.addf %63, %62 : vector<2x128xf32>
    %65 = arith.divf %63, %64 : vector<2x128xf32>
    %66 = vector.extract_strided_slice %53 {offsets = [0, 256], sizes = [2, 128], strides = [1, 1]} : vector<2x512xf32> to vector<2x128xf32>
    %67 = math.tanh %66 : vector<2x128xf32>
    %68 = vector.extract_strided_slice %53 {offsets = [0, 384], sizes = [2, 128], strides = [1, 1]} : vector<2x512xf32> to vector<2x128xf32>
    %69 = arith.negf %68 : vector<2x128xf32>
    %70 = math.exp %69 : vector<2x128xf32>
    %cst_41 = arith.constant 1.000000e+00 : f32
    %71 = vector.broadcast %cst_41 : f32 to vector<2x128xf32>
    %72 = arith.addf %71, %70 : vector<2x128xf32>
    %73 = arith.divf %71, %72 : vector<2x128xf32>
    %74 = arith.mulf %65, %49 : vector<2x128xf32>
    %75 = arith.mulf %59, %67 : vector<2x128xf32>
    %76 = arith.addf %74, %75 : vector<2x128xf32>
    %77 = math.tanh %76 : vector<2x128xf32>
    %78 = arith.mulf %73, %77 : vector<2x128xf32>
    %79 = vector.extract_strided_slice %46 {offsets = [0, 1, 0], sizes = [2, 1, 512], strides = [1, 1, 1]} : vector<2x8x512xf32> to vector<2x1x512xf32>
    %80 = vector.shape_cast %79 : vector<2x1x512xf32> to vector<2x512xf32>
    %cst_42 = arith.constant dense<0.000000e+00> : vector<2x512xf32>
    %81 = tpu.matmul %78, %47, %cst_42 {dimension_numbers = #tpu.dot_dimension_numbers<[1], [0], [0], [1], [0, 0, 1, 1], [], []>} : vector<2x128xf32>, vector<128x512xf32>, vector<2x512xf32> -> vector<2x512xf32>
    %82 = arith.addf %80, %81 : vector<2x512xf32>
    %83 = vector.extract_strided_slice %82 {offsets = [0, 0], sizes = [2, 128], strides = [1, 1]} : vector<2x512xf32> to vector<2x128xf32>
    %84 = arith.negf %83 : vector<2x128xf32>
    %85 = math.exp %84 : vector<2x128xf32>
    %cst_43 = arith.constant 1.000000e+00 : f32
    %86 = vector.broadcast %cst_43 : f32 to vector<2x128xf32>
    %87 = arith.addf %86, %85 : vector<2x128xf32>
    %88 = arith.divf %86, %87 : vector<2x128xf32>
    %89 = vector.extract_strided_slice %82 {offsets = [0, 128], sizes = [2, 128], strides = [1, 1]} : vector<2x512xf32> to vector<2x128xf32>
    %90 = arith.negf %89 : vector<2x128xf32>
    %91 = math.exp %90 : vector<2x128xf32>
    %cst_44 = arith.constant 1.000000e+00 : f32
    %92 = vector.broadcast %cst_44 : f32 to vector<2x128xf32>
    %93 = arith.addf %92, %91 : vector<2x128xf32>
    %94 = arith.divf %92, %93 : vector<2x128xf32>
    %95 = vector.extract_strided_slice %82 {offsets = [0, 256], sizes = [2, 128], strides = [1, 1]} : vector<2x512xf32> to vector<2x128xf32>
    %96 = math.tanh %95 : vector<2x128xf32>
    %97 = vector.extract_strided_slice %82 {offsets = [0, 384], sizes = [2, 128], strides = [1, 1]} : vector<2x512xf32> to vector<2x128xf32>
    %98 = arith.negf %97 : vector<2x128xf32>
    %99 = math.exp %98 : vector<2x128xf32>
    %cst_45 = arith.constant 1.000000e+00 : f32
    %100 = vector.broadcast %cst_45 : f32 to vector<2x128xf32>
    %101 = arith.addf %100, %99 : vector<2x128xf32>
    %102 = arith.divf %100, %101 : vector<2x128xf32>
    %103 = arith.mulf %94, %76 : vector<2x128xf32>
    %104 = arith.mulf %88, %96 : vector<2x128xf32>
    %105 = arith.addf %103, %104 : vector<2x128xf32>
    %106 = math.tanh %105 : vector<2x128xf32>
    %107 = arith.mulf %102, %106 : vector<2x128xf32>
    %108 = vector.extract_strided_slice %46 {offsets = [0, 2, 0], sizes = [2, 1, 512], strides = [1, 1, 1]} : vector<2x8x512xf32> to vector<2x1x512xf32>
    %109 = vector.shape_cast %108 : vector<2x1x512xf32> to vector<2x512xf32>
    %cst_46 = arith.constant dense<0.000000e+00> : vector<2x512xf32>
    %110 = tpu.matmul %107, %47, %cst_46 {dimension_numbers = #tpu.dot_dimension_numbers<[1], [0], [0], [1], [0, 0, 1, 1], [], []>} : vector<2x128xf32>, vector<128x512xf32>, vector<2x512xf32> -> vector<2x512xf32>
    %111 = arith.addf %109, %110 : vector<2x512xf32>
    %112 = vector.extract_strided_slice %111 {offsets = [0, 0], sizes = [2, 128], strides = [1, 1]} : vector<2x512xf32> to vector<2x128xf32>
    %113 = arith.negf %112 : vector<2x128xf32>
    %114 = math.exp %113 : vector<2x128xf32>
    %cst_47 = arith.constant 1.000000e+00 : f32
    %115 = vector.broadcast %cst_47 : f32 to vector<2x128xf32>
    %116 = arith.addf %115, %114 : vector<2x128xf32>
    %117 = arith.divf %115, %116 : vector<2x128xf32>
    %118 = vector.extract_strided_slice %111 {offsets = [0, 128], sizes = [2, 128], strides = [1, 1]} : vector<2x512xf32> to vector<2x128xf32>
    %119 = arith.negf %118 : vector<2x128xf32>
    %120 = math.exp %119 : vector<2x128xf32>
    %cst_48 = arith.constant 1.000000e+00 : f32
    %121 = vector.broadcast %cst_48 : f32 to vector<2x128xf32>
    %122 = arith.addf %121, %120 : vector<2x128xf32>
    %123 = arith.divf %121, %122 : vector<2x128xf32>
    %124 = vector.extract_strided_slice %111 {offsets = [0, 256], sizes = [2, 128], strides = [1, 1]} : vector<2x512xf32> to vector<2x128xf32>
    %125 = math.tanh %124 : vector<2x128xf32>
    %126 = vector.extract_strided_slice %111 {offsets = [0, 384], sizes = [2, 128], strides = [1, 1]} : vector<2x512xf32> to vector<2x128xf32>
    %127 = arith.negf %126 : vector<2x128xf32>
    %128 = math.exp %127 : vector<2x128xf32>
    %cst_49 = arith.constant 1.000000e+00 : f32
    %129 = vector.broadcast %cst_49 : f32 to vector<2x128xf32>
    %130 = arith.addf %129, %128 : vector<2x128xf32>
    %131 = arith.divf %129, %130 : vector<2x128xf32>
    %132 = arith.mulf %123, %105 : vector<2x128xf32>
    %133 = arith.mulf %117, %125 : vector<2x128xf32>
    %134 = arith.addf %132, %133 : vector<2x128xf32>
    %135 = math.tanh %134 : vector<2x128xf32>
    %136 = arith.mulf %131, %135 : vector<2x128xf32>
    %137 = vector.extract_strided_slice %46 {offsets = [0, 3, 0], sizes = [2, 1, 512], strides = [1, 1, 1]} : vector<2x8x512xf32> to vector<2x1x512xf32>
    %138 = vector.shape_cast %137 : vector<2x1x512xf32> to vector<2x512xf32>
    %cst_50 = arith.constant dense<0.000000e+00> : vector<2x512xf32>
    %139 = tpu.matmul %136, %47, %cst_50 {dimension_numbers = #tpu.dot_dimension_numbers<[1], [0], [0], [1], [0, 0, 1, 1], [], []>} : vector<2x128xf32>, vector<128x512xf32>, vector<2x512xf32> -> vector<2x512xf32>
    %140 = arith.addf %138, %139 : vector<2x512xf32>
    %141 = vector.extract_strided_slice %140 {offsets = [0, 0], sizes = [2, 128], strides = [1, 1]} : vector<2x512xf32> to vector<2x128xf32>
    %142 = arith.negf %141 : vector<2x128xf32>
    %143 = math.exp %142 : vector<2x128xf32>
    %cst_51 = arith.constant 1.000000e+00 : f32
    %144 = vector.broadcast %cst_51 : f32 to vector<2x128xf32>
    %145 = arith.addf %144, %143 : vector<2x128xf32>
    %146 = arith.divf %144, %145 : vector<2x128xf32>
    %147 = vector.extract_strided_slice %140 {offsets = [0, 128], sizes = [2, 128], strides = [1, 1]} : vector<2x512xf32> to vector<2x128xf32>
    %148 = arith.negf %147 : vector<2x128xf32>
    %149 = math.exp %148 : vector<2x128xf32>
    %cst_52 = arith.constant 1.000000e+00 : f32
    %150 = vector.broadcast %cst_52 : f32 to vector<2x128xf32>
    %151 = arith.addf %150, %149 : vector<2x128xf32>
    %152 = arith.divf %150, %151 : vector<2x128xf32>
    %153 = vector.extract_strided_slice %140 {offsets = [0, 256], sizes = [2, 128], strides = [1, 1]} : vector<2x512xf32> to vector<2x128xf32>
    %154 = math.tanh %153 : vector<2x128xf32>
    %155 = vector.extract_strided_slice %140 {offsets = [0, 384], sizes = [2, 128], strides = [1, 1]} : vector<2x512xf32> to vector<2x128xf32>
    %156 = arith.negf %155 : vector<2x128xf32>
    %157 = math.exp %156 : vector<2x128xf32>
    %cst_53 = arith.constant 1.000000e+00 : f32
    %158 = vector.broadcast %cst_53 : f32 to vector<2x128xf32>
    %159 = arith.addf %158, %157 : vector<2x128xf32>
    %160 = arith.divf %158, %159 : vector<2x128xf32>
    %161 = arith.mulf %152, %134 : vector<2x128xf32>
    %162 = arith.mulf %146, %154 : vector<2x128xf32>
    %163 = arith.addf %161, %162 : vector<2x128xf32>
    %164 = math.tanh %163 : vector<2x128xf32>
    %165 = arith.mulf %160, %164 : vector<2x128xf32>
    %166 = vector.extract_strided_slice %46 {offsets = [0, 4, 0], sizes = [2, 1, 512], strides = [1, 1, 1]} : vector<2x8x512xf32> to vector<2x1x512xf32>
    %167 = vector.shape_cast %166 : vector<2x1x512xf32> to vector<2x512xf32>
    %cst_54 = arith.constant dense<0.000000e+00> : vector<2x512xf32>
    %168 = tpu.matmul %165, %47, %cst_54 {dimension_numbers = #tpu.dot_dimension_numbers<[1], [0], [0], [1], [0, 0, 1, 1], [], []>} : vector<2x128xf32>, vector<128x512xf32>, vector<2x512xf32> -> vector<2x512xf32>
    %169 = arith.addf %167, %168 : vector<2x512xf32>
    %170 = vector.extract_strided_slice %169 {offsets = [0, 0], sizes = [2, 128], strides = [1, 1]} : vector<2x512xf32> to vector<2x128xf32>
    %171 = arith.negf %170 : vector<2x128xf32>
    %172 = math.exp %171 : vector<2x128xf32>
    %cst_55 = arith.constant 1.000000e+00 : f32
    %173 = vector.broadcast %cst_55 : f32 to vector<2x128xf32>
    %174 = arith.addf %173, %172 : vector<2x128xf32>
    %175 = arith.divf %173, %174 : vector<2x128xf32>
    %176 = vector.extract_strided_slice %169 {offsets = [0, 128], sizes = [2, 128], strides = [1, 1]} : vector<2x512xf32> to vector<2x128xf32>
    %177 = arith.negf %176 : vector<2x128xf32>
    %178 = math.exp %177 : vector<2x128xf32>
    %cst_56 = arith.constant 1.000000e+00 : f32
    %179 = vector.broadcast %cst_56 : f32 to vector<2x128xf32>
    %180 = arith.addf %179, %178 : vector<2x128xf32>
    %181 = arith.divf %179, %180 : vector<2x128xf32>
    %182 = vector.extract_strided_slice %169 {offsets = [0, 256], sizes = [2, 128], strides = [1, 1]} : vector<2x512xf32> to vector<2x128xf32>
    %183 = math.tanh %182 : vector<2x128xf32>
    %184 = vector.extract_strided_slice %169 {offsets = [0, 384], sizes = [2, 128], strides = [1, 1]} : vector<2x512xf32> to vector<2x128xf32>
    %185 = arith.negf %184 : vector<2x128xf32>
    %186 = math.exp %185 : vector<2x128xf32>
    %cst_57 = arith.constant 1.000000e+00 : f32
    %187 = vector.broadcast %cst_57 : f32 to vector<2x128xf32>
    %188 = arith.addf %187, %186 : vector<2x128xf32>
    %189 = arith.divf %187, %188 : vector<2x128xf32>
    %190 = arith.mulf %181, %163 : vector<2x128xf32>
    %191 = arith.mulf %175, %183 : vector<2x128xf32>
    %192 = arith.addf %190, %191 : vector<2x128xf32>
    %193 = math.tanh %192 : vector<2x128xf32>
    %194 = arith.mulf %189, %193 : vector<2x128xf32>
    %195 = vector.extract_strided_slice %46 {offsets = [0, 5, 0], sizes = [2, 1, 512], strides = [1, 1, 1]} : vector<2x8x512xf32> to vector<2x1x512xf32>
    %196 = vector.shape_cast %195 : vector<2x1x512xf32> to vector<2x512xf32>
    %cst_58 = arith.constant dense<0.000000e+00> : vector<2x512xf32>
    %197 = tpu.matmul %194, %47, %cst_58 {dimension_numbers = #tpu.dot_dimension_numbers<[1], [0], [0], [1], [0, 0, 1, 1], [], []>} : vector<2x128xf32>, vector<128x512xf32>, vector<2x512xf32> -> vector<2x512xf32>
    %198 = arith.addf %196, %197 : vector<2x512xf32>
    %199 = vector.extract_strided_slice %198 {offsets = [0, 0], sizes = [2, 128], strides = [1, 1]} : vector<2x512xf32> to vector<2x128xf32>
    %200 = arith.negf %199 : vector<2x128xf32>
    %201 = math.exp %200 : vector<2x128xf32>
    %cst_59 = arith.constant 1.000000e+00 : f32
    %202 = vector.broadcast %cst_59 : f32 to vector<2x128xf32>
    %203 = arith.addf %202, %201 : vector<2x128xf32>
    %204 = arith.divf %202, %203 : vector<2x128xf32>
    %205 = vector.extract_strided_slice %198 {offsets = [0, 128], sizes = [2, 128], strides = [1, 1]} : vector<2x512xf32> to vector<2x128xf32>
    %206 = arith.negf %205 : vector<2x128xf32>
    %207 = math.exp %206 : vector<2x128xf32>
    %cst_60 = arith.constant 1.000000e+00 : f32
    %208 = vector.broadcast %cst_60 : f32 to vector<2x128xf32>
    %209 = arith.addf %208, %207 : vector<2x128xf32>
    %210 = arith.divf %208, %209 : vector<2x128xf32>
    %211 = vector.extract_strided_slice %198 {offsets = [0, 256], sizes = [2, 128], strides = [1, 1]} : vector<2x512xf32> to vector<2x128xf32>
    %212 = math.tanh %211 : vector<2x128xf32>
    %213 = vector.extract_strided_slice %198 {offsets = [0, 384], sizes = [2, 128], strides = [1, 1]} : vector<2x512xf32> to vector<2x128xf32>
    %214 = arith.negf %213 : vector<2x128xf32>
    %215 = math.exp %214 : vector<2x128xf32>
    %cst_61 = arith.constant 1.000000e+00 : f32
    %216 = vector.broadcast %cst_61 : f32 to vector<2x128xf32>
    %217 = arith.addf %216, %215 : vector<2x128xf32>
    %218 = arith.divf %216, %217 : vector<2x128xf32>
    %219 = arith.mulf %210, %192 : vector<2x128xf32>
    %220 = arith.mulf %204, %212 : vector<2x128xf32>
    %221 = arith.addf %219, %220 : vector<2x128xf32>
    %222 = math.tanh %221 : vector<2x128xf32>
    %223 = arith.mulf %218, %222 : vector<2x128xf32>
    %224 = vector.extract_strided_slice %46 {offsets = [0, 6, 0], sizes = [2, 1, 512], strides = [1, 1, 1]} : vector<2x8x512xf32> to vector<2x1x512xf32>
    %225 = vector.shape_cast %224 : vector<2x1x512xf32> to vector<2x512xf32>
    %cst_62 = arith.constant dense<0.000000e+00> : vector<2x512xf32>
    %226 = tpu.matmul %223, %47, %cst_62 {dimension_numbers = #tpu.dot_dimension_numbers<[1], [0], [0], [1], [0, 0, 1, 1], [], []>} : vector<2x128xf32>, vector<128x512xf32>, vector<2x512xf32> -> vector<2x512xf32>
    %227 = arith.addf %225, %226 : vector<2x512xf32>
    %228 = vector.extract_strided_slice %227 {offsets = [0, 0], sizes = [2, 128], strides = [1, 1]} : vector<2x512xf32> to vector<2x128xf32>
    %229 = arith.negf %228 : vector<2x128xf32>
    %230 = math.exp %229 : vector<2x128xf32>
    %cst_63 = arith.constant 1.000000e+00 : f32
    %231 = vector.broadcast %cst_63 : f32 to vector<2x128xf32>
    %232 = arith.addf %231, %230 : vector<2x128xf32>
    %233 = arith.divf %231, %232 : vector<2x128xf32>
    %234 = vector.extract_strided_slice %227 {offsets = [0, 128], sizes = [2, 128], strides = [1, 1]} : vector<2x512xf32> to vector<2x128xf32>
    %235 = arith.negf %234 : vector<2x128xf32>
    %236 = math.exp %235 : vector<2x128xf32>
    %cst_64 = arith.constant 1.000000e+00 : f32
    %237 = vector.broadcast %cst_64 : f32 to vector<2x128xf32>
    %238 = arith.addf %237, %236 : vector<2x128xf32>
    %239 = arith.divf %237, %238 : vector<2x128xf32>
    %240 = vector.extract_strided_slice %227 {offsets = [0, 256], sizes = [2, 128], strides = [1, 1]} : vector<2x512xf32> to vector<2x128xf32>
    %241 = math.tanh %240 : vector<2x128xf32>
    %242 = vector.extract_strided_slice %227 {offsets = [0, 384], sizes = [2, 128], strides = [1, 1]} : vector<2x512xf32> to vector<2x128xf32>
    %243 = arith.negf %242 : vector<2x128xf32>
    %244 = math.exp %243 : vector<2x128xf32>
    %cst_65 = arith.constant 1.000000e+00 : f32
    %245 = vector.broadcast %cst_65 : f32 to vector<2x128xf32>
    %246 = arith.addf %245, %244 : vector<2x128xf32>
    %247 = arith.divf %245, %246 : vector<2x128xf32>
    %248 = arith.mulf %239, %221 : vector<2x128xf32>
    %249 = arith.mulf %233, %241 : vector<2x128xf32>
    %250 = arith.addf %248, %249 : vector<2x128xf32>
    %251 = math.tanh %250 : vector<2x128xf32>
    %252 = arith.mulf %247, %251 : vector<2x128xf32>
    %253 = vector.extract_strided_slice %46 {offsets = [0, 7, 0], sizes = [2, 1, 512], strides = [1, 1, 1]} : vector<2x8x512xf32> to vector<2x1x512xf32>
    %254 = vector.shape_cast %253 : vector<2x1x512xf32> to vector<2x512xf32>
    %cst_66 = arith.constant dense<0.000000e+00> : vector<2x512xf32>
    %255 = tpu.matmul %252, %47, %cst_66 {dimension_numbers = #tpu.dot_dimension_numbers<[1], [0], [0], [1], [0, 0, 1, 1], [], []>} : vector<2x128xf32>, vector<128x512xf32>, vector<2x512xf32> -> vector<2x512xf32>
    %256 = arith.addf %254, %255 : vector<2x512xf32>
    %257 = vector.extract_strided_slice %256 {offsets = [0, 0], sizes = [2, 128], strides = [1, 1]} : vector<2x512xf32> to vector<2x128xf32>
    %258 = arith.negf %257 : vector<2x128xf32>
    %259 = math.exp %258 : vector<2x128xf32>
    %cst_67 = arith.constant 1.000000e+00 : f32
    %260 = vector.broadcast %cst_67 : f32 to vector<2x128xf32>
    %261 = arith.addf %260, %259 : vector<2x128xf32>
    %262 = arith.divf %260, %261 : vector<2x128xf32>
    %263 = vector.extract_strided_slice %256 {offsets = [0, 128], sizes = [2, 128], strides = [1, 1]} : vector<2x512xf32> to vector<2x128xf32>
    %264 = arith.negf %263 : vector<2x128xf32>
    %265 = math.exp %264 : vector<2x128xf32>
    %cst_68 = arith.constant 1.000000e+00 : f32
    %266 = vector.broadcast %cst_68 : f32 to vector<2x128xf32>
    %267 = arith.addf %266, %265 : vector<2x128xf32>
    %268 = arith.divf %266, %267 : vector<2x128xf32>
    %269 = vector.extract_strided_slice %256 {offsets = [0, 256], sizes = [2, 128], strides = [1, 1]} : vector<2x512xf32> to vector<2x128xf32>
    %270 = math.tanh %269 : vector<2x128xf32>
    %271 = vector.extract_strided_slice %256 {offsets = [0, 384], sizes = [2, 128], strides = [1, 1]} : vector<2x512xf32> to vector<2x128xf32>
    %272 = arith.negf %271 : vector<2x128xf32>
    %273 = math.exp %272 : vector<2x128xf32>
    %cst_69 = arith.constant 1.000000e+00 : f32
    %274 = vector.broadcast %cst_69 : f32 to vector<2x128xf32>
    %275 = arith.addf %274, %273 : vector<2x128xf32>
    %276 = arith.divf %274, %275 : vector<2x128xf32>
    %277 = arith.mulf %268, %250 : vector<2x128xf32>
    %278 = arith.mulf %262, %270 : vector<2x128xf32>
    %279 = arith.addf %277, %278 : vector<2x128xf32>
    %280 = math.tanh %279 : vector<2x128xf32>
    %281 = arith.mulf %276, %280 : vector<2x128xf32>
    %c0_70 = arith.constant 0 : index
    %c0_71 = arith.constant 0 : index
    %282 = vector.load %arg11[%c0_70, %c0_71] : memref<128x128xf32, #tpu.memory_space<vmem>>, vector<128x128xf32>
    %cst_72 = arith.constant dense<0.000000e+00> : vector<2x128xf32>
    %283 = tpu.matmul %281, %282, %cst_72 {dimension_numbers = #tpu.dot_dimension_numbers<[1], [0], [0], [1], [0, 0, 1, 1], [], []>} : vector<2x128xf32>, vector<128x128xf32>, vector<2x128xf32> -> vector<2x128xf32>
    %c0_73 = arith.constant 0 : index
    %c0_74 = arith.constant 0 : index
    %284 = vector.load %arg12[%c0_73, %c0_74] : memref<1x128xf32, #tpu.memory_space<vmem>>, vector<1x128xf32>
    %285 = vector.broadcast %284 : vector<1x128xf32> to vector<2x128xf32>
    %286 = arith.addf %283, %285 : vector<2x128xf32>
    %c0_75 = arith.constant 0 : index
    %c0_76 = arith.constant 0 : index
    %287 = vector.load %arg13[%c0_75, %c0_76] : memref<2x128xf32, #tpu.memory_space<vmem>>, vector<2x128xf32>
    tpu.vector_store %arg13[%c0_75, %c0_76], %286 {strides = array<i32>} : memref<2x128xf32, #tpu.memory_space<vmem>>, vector<2x128xf32>,
    return
  }
  func.func @transform_0(%arg0: i32) -> (i32, i32, i32) {
    %c0_i32 = arith.constant 0 : i32
    %c0_i32_0 = arith.constant 0 : i32
    %c0_i32_1 = arith.constant 0 : i32
    return %arg0, %c0_i32, %c0_i32_0 : i32, i32, i32
  }
  func.func @transform_1(%arg0: i32) -> (i32, i32) {
    %c0_i32 = arith.constant 0 : i32
    %c0_i32_0 = arith.constant 0 : i32
    %c0_i32_1 = arith.constant 0 : i32
    return %c0_i32, %c0_i32_0 : i32, i32
  }
  func.func @transform_2(%arg0: i32) -> (i32, i32) {
    %c0_i32 = arith.constant 0 : i32
    %c0_i32_0 = arith.constant 0 : i32
    %c0_i32_1 = arith.constant 0 : i32
    return %c0_i32, %c0_i32_0 : i32, i32
  }
  func.func @transform_3(%arg0: i32) -> (i32, i32) {
    %c0_i32 = arith.constant 0 : i32
    %c0_i32_0 = arith.constant 0 : i32
    %c0_i32_1 = arith.constant 0 : i32
    return %c0_i32, %c0_i32_0 : i32, i32
  }
  func.func @transform_4(%arg0: i32) -> (i32, i32) {
    %c0_i32 = arith.constant 0 : i32
    %c0_i32_0 = arith.constant 0 : i32
    %c0_i32_1 = arith.constant 0 : i32
    return %c0_i32, %c0_i32_0 : i32, i32
  }
  func.func @transform_5(%arg0: i32) -> (i32, i32) {
    %c0_i32 = arith.constant 0 : i32
    %c0_i32_0 = arith.constant 0 : i32
    %c0_i32_1 = arith.constant 0 : i32
    return %c0_i32, %c0_i32_0 : i32, i32
  }
  func.func @transform_6(%arg0: i32) -> (i32, i32) {
    %c0_i32 = arith.constant 0 : i32
    %c0_i32_0 = arith.constant 0 : i32
    %c0_i32_1 = arith.constant 0 : i32
    return %c0_i32, %c0_i32_0 : i32, i32
  }
  func.func @transform_7(%arg0: i32) -> (i32, i32) {
    %c0_i32 = arith.constant 0 : i32
    %c0_i32_0 = arith.constant 0 : i32
    %c0_i32_1 = arith.constant 0 : i32
    return %c0_i32, %c0_i32_0 : i32, i32
  }
  func.func @transform_8(%arg0: i32) -> (i32, i32) {
    %c0_i32 = arith.constant 0 : i32
    %c0_i32_0 = arith.constant 0 : i32
    %c0_i32_1 = arith.constant 0 : i32
    return %c0_i32, %c0_i32_0 : i32, i32
  }
  func.func @transform_9(%arg0: i32) -> (i32, i32) {
    %c0_i32 = arith.constant 0 : i32
    %c0_i32_0 = arith.constant 0 : i32
    %c0_i32_1 = arith.constant 0 : i32
    return %c0_i32, %c0_i32_0 : i32, i32
  }
  func.func @transform_10(%arg0: i32) -> (i32, i32) {
    %c0_i32 = arith.constant 0 : i32
    %c0_i32_0 = arith.constant 0 : i32
    %c0_i32_1 = arith.constant 0 : i32
    return %c0_i32, %c0_i32_0 : i32, i32
  }
  func.func @transform_11(%arg0: i32) -> (i32, i32) {
    %c0_i32 = arith.constant 0 : i32
    %c0_i32_0 = arith.constant 0 : i32
    %c0_i32_1 = arith.constant 0 : i32
    return %c0_i32, %c0_i32_0 : i32, i32
  }
  func.func @transform_12(%arg0: i32) -> (i32, i32) {
    %c0_i32 = arith.constant 0 : i32
    %c0_i32_0 = arith.constant 0 : i32
    return %arg0, %c0_i32 : i32, i32
  }
  func.func @transform_13(%arg0: i32) -> (i32, i32, i32) {
    %c0_i32 = arith.constant 0 : i32
    %c0_i32_0 = arith.constant 0 : i32
    %c0_i32_1 = arith.constant 0 : i32
    return %arg0, %c0_i32, %c0_i32_0 : i32, i32, i32
  }
  func.func @transform_14(%arg0: i32) -> (i32, i32, i32) {
    %c0_i32 = arith.constant 0 : i32
    %c0_i32_0 = arith.constant 0 : i32
    %c0_i32_1 = arith.constant 0 : i32
    return %arg0, %c0_i32, %c0_i32_0 : i32, i32, i32
  }
}

</mosaic_0001>

<llo_original>
// kernel: forward.1
$region0: #{forward.1}
  #allocation0 [shape = 'u32[]', space=smem, size = 0x4, offset = 0x4, fixed_abs, tag = 'smem constant byte address 0x4 - core index']
  #allocation1 [shape = 'u32[144,128]{1,0:T(1,128)}', space=vmem, size = 0x12000, scoped, tag = 'internal scratch']
  %s0 = inlined_call_operand.vmem [shape: f32[2,8,32], index: 0, kind: input, shape index: {}]
  %s1 = inlined_call_operand.vmem [shape: f32[32,32], index: 1, kind: input, shape index: {}]
  %s2 = inlined_call_operand.vmem [shape: f32[1,32], index: 2, kind: input, shape index: {}]
  %s3 = inlined_call_operand.hbm [shape: f32[32,32], index: 3, kind: input, shape index: {}]
  %s4 = inlined_call_operand.vmem [shape: f32[1,32], index: 4, kind: input, shape index: {}]
  %s5 = inlined_call_operand.hbm [shape: f32[32,32], index: 5, kind: input, shape index: {}]
  %s6 = inlined_call_operand.vmem [shape: f32[1,32], index: 6, kind: input, shape index: {}]
  %s7 = inlined_call_operand.vmem [shape: f32[32,512], index: 7, kind: input, shape index: {}]
  %s8 = inlined_call_operand.hbm [shape: f32[128,512], index: 8, kind: input, shape index: {}]
  %s9 = inlined_call_operand.vmem [shape: f32[1,512], index: 9, kind: input, shape index: {}]
  %s10 = inlined_call_operand.vmem [shape: f32[128,128], index: 10, kind: input, shape index: {}]
  %s11 = inlined_call_operand.vmem [shape: f32[1,128], index: 11, kind: input, shape index: {}]
  %s12 = inlined_call_operand.hbm [shape: f32[2,128], index: 12, kind: output, shape index: {0}]
  %s13 = inlined_call_operand.hbm [shape: f32[2,8,128], index: 13, kind: output, shape index: {1}]
  %s14 = inlined_call_operand.hbm [shape: f32[2,8,128], index: 14, kind: output, shape index: {2}]
  %15 = xla_tuple %s12, %s13, %s14
  %s16 = sld [smem:[#allocation0]]
  $region86: #{forward.1} parent=0
    _
  %s18 = ssub.s32 1, %s16
  %s19 = scalar_select 0, %s18, %s16
  $region1: #{forward.1} parent=0
    #allocation2 [shape = 'u8[16384]{0}', space=vmem, size = 0x4000, scoped, tag = 'input window, operand 3, single buffered']
    #allocation3 [shape = 's32[1]{0}', space=sflag, size = 0x4, scoped, tag = 'scoped memory for forward.1']
    #allocation4 [shape = 's32[1]{0}', space=sflag, size = 0x4, scoped, tag = 'scoped memory for forward.1']
    #allocation5 [shape = 'u8[16384]{0}', space=vmem, size = 0x4000, scoped, tag = 'input window, operand 5, single buffered']
    #allocation6 [shape = 's32[1]{0}', space=sflag, size = 0x4, scoped, tag = 'scoped memory for forward.1']
    #allocation7 [shape = 'u8[262144]{0}', space=vmem, size = 0x40000, scoped, tag = 'input window, operand 8, single buffered']
    #allocation8 [shape = 'u8[1024]{0}', space=vmem, size = 0x400, scoped, tag = 'output window, operand 0, single buffered']
    #allocation9 [shape = 'u8[8192]{0}', space=vmem, size = 0x2000, scoped, tag = 'output window, operand 1, single buffered']
    #allocation10 [shape = 's32[1]{0}', space=sflag, size = 0x4, scoped, tag = 'scoped memory for forward.1']
    #allocation11 [shape = 'u8[8192]{0}', space=vmem, size = 0x2000, scoped, tag = 'output window, operand 2, single buffered']
    %20 = vsyncpa [#allocation3], 0
    %21 = vsyncpa [#allocation6], 0
    %22 = vsyncpa [#allocation4], 0
    %23 = vsyncpa [#allocation10], 0
    // Predicated region
    $region2: #{forward.1} parent=1 // pred_check
      _
    $region3: #{forward.1} parent=1 // pred_check_branch
      %25 = sbr.rel (0) target = $region5
    $region4: #{forward.1} parent=1 // pred_region
      _
    $region5: #{forward.1} parent=1 // pred_fallthru
      _
    // Predicated region
    $region6: #{forward.1} parent=1 // pred_check
      _
    $region7: #{forward.1} parent=1 // pred_check_branch
      %27 = sbr.rel (0) target = $region9
    $region8: #{forward.1} parent=1 // pred_region
      _
    $region9: #{forward.1} parent=1 // pred_fallthru
      _
    // Predicated region
    $region10: #{forward.1} parent=1 // pred_check
      _
    $region11: #{forward.1} parent=1 // pred_check_branch
      %29 = sbr.rel (0) target = $region13
    $region12: #{forward.1} parent=1 // pred_region
      _
    $region13: #{forward.1} parent=1 // pred_fallthru
      _
    // Predicated region
    $region14: #{forward.1} parent=1 // pred_check
      _
    $region15: #{forward.1} parent=1 // pred_check_branch
      %31 = sbr.rel (0) target = $region17
    $region16: #{forward.1} parent=1 // pred_region
      %s33 = ssub.s32 512, 512
      %34 = vsyncadd [#allocation3], %s33
      %s35 = sshll.u32 [#allocation2], 4
      %s36 = int_to_ptr.vmem [resolvable:$true] %s35
      %41 = dma.hbm_to_vmem [thread:$0]  %s3, 512, %s36, [#allocation3], 128, 128, 8
    $region17: #{forward.1} parent=1 // pred_fallthru
      _
    // Predicated region
    $region18: #{forward.1} parent=1 // pred_check
      _
    $region19: #{forward.1} parent=1 // pred_check_branch
      %43 = sbr.rel (0) target = $region21
    $region20: #{forward.1} parent=1 // pred_region
      _
    $region21: #{forward.1} parent=1 // pred_fallthru
      _
    // Predicated region
    $region22: #{forward.1} parent=1 // pred_check
      _
    $region23: #{forward.1} parent=1 // pred_check_branch
      %45 = sbr.rel (0) target = $region25
    $region24: #{forward.1} parent=1 // pred_region
      %s47 = ssub.s32 512, 512
      %48 = vsyncadd [#allocation6], %s47
      %s49 = sshll.u32 [#allocation5], 4
      %s50 = int_to_ptr.vmem [resolvable:$true] %s49
      %55 = dma.hbm_to_vmem [thread:$0]  %s5, 512, %s50, [#allocation6], 128, 128, 8
    $region25: #{forward.1} parent=1 // pred_fallthru
      _
    // Predicated region
    $region26: #{forward.1} parent=1 // pred_check
      _
    $region27: #{forward.1} parent=1 // pred_check_branch
      %57 = sbr.rel (0) target = $region29
    $region28: #{forward.1} parent=1 // pred_region
      _
    $region29: #{forward.1} parent=1 // pred_fallthru
      _
    // Predicated region
    $region30: #{forward.1} parent=1 // pred_check
      _
    $region31: #{forward.1} parent=1 // pred_check_branch
      %59 = sbr.rel (0) target = $region33
    $region32: #{forward.1} parent=1 // pred_region
      _
    $region33: #{forward.1} parent=1 // pred_fallthru
      _
    // Predicated region
    $region34: #{forward.1} parent=1 // pred_check
      _
    $region35: #{forward.1} parent=1 // pred_check_branch
      %61 = sbr.rel (0) target = $region37
    $region36: #{forward.1} parent=1 // pred_region
      %s63 = ssub.s32 8192, 8192
      %64 = vsyncadd [#allocation6], %s63
      %s65 = sshll.u32 [#allocation7], 4
      %s66 = int_to_ptr.vmem [resolvable:$true] %s65
      %71 = dma.hbm_to_vmem [thread:$0]  %s8, 8192, %s66, [#allocation6], 512, 512, 32
    $region37: #{forward.1} parent=1 // pred_fallthru
      _
    // Predicated region
    $region38: #{forward.1} parent=1 // pred_check
      _
    $region39: #{forward.1} parent=1 // pred_check_branch
      %73 = sbr.rel (0) target = $region41
    $region40: #{forward.1} parent=1 // pred_region
      _
    $region41: #{forward.1} parent=1 // pred_fallthru
      _
    // Predicated region
    $region42: #{forward.1} parent=1 // pred_check
      _
    $region43: #{forward.1} parent=1 // pred_check_branch
      %75 = sbr.rel (0) target = $region45
    $region44: #{forward.1} parent=1 // pred_region
      _
    $region45: #{forward.1} parent=1 // pred_fallthru
      _
    // Predicated region
    $region46: #{forward.1} parent=1 // pred_check
      _
    $region47: #{forward.1} parent=1 // pred_check_branch
      %77 = sbr.rel (0) target = $region49
    $region48: #{forward.1} parent=1 // pred_region
      _
    $region49: #{forward.1} parent=1 // pred_fallthru
      _
    // Predicated region
    $region50: #{forward.1} parent=1 // pred_check
      _
    $region51: #{forward.1} parent=1 // pred_check_branch
      %79 = sbr.rel (0) target = $region53
    $region52: #{forward.1} parent=1 // pred_region
      %80 = dma.done [#allocation3], 512
    $region53: #{forward.1} parent=1 // pred_fallthru
      _
    // Predicated region
    $region54: #{forward.1} parent=1 // pred_check
      _
    $region55: #{forward.1} parent=1 // pred_check_branch
      %82 = sbr.rel (0) target = $region57
    $region56: #{forward.1} parent=1 // pred_region
      %83 = dma.done [#allocation6], 512
    $region57: #{forward.1} parent=1 // pred_fallthru
      _
    // Predicated region
    $region58: #{forward.1} parent=1 // pred_check
      _
    $region59: #{forward.1} parent=1 // pred_check_branch
      %85 = sbr.rel (0) target = $region61
    $region60: #{forward.1} parent=1 // pred_region
      %86 = dma.done [#allocation6], 8192
    $region61: #{forward.1} parent=1 // pred_fallthru
      _
    %v87 = vld [vmem:[%s0] sm:$0xff]
    %v88 = vld [vmem:[%s0 + $0x8] sm:$0xff]
    %v89 = vld [vmem:[%s1] sm:$0xff]
    %v90 = vld [vmem:[%s1 + $0x8] sm:$0xff]
    %v91 = vld [vmem:[%s1 + $0x10] sm:$0xff]
    %v92 = vld [vmem:[%s1 + $0x18] sm:$0xff]
    %v93 = vld [vmem:[%s2] sm:$0x1]
    %v95 = vlaneseq
    %v96 = vshrl.u32 %v95, 7
    %v97 = vsub.s32 0, %v96
    %v98 = vrot.slane %v93, %v97
    %vm100 = vcmask 261120
    %v102 = vsel %vm100, %v87, 0
    %v105 = vsel %vm100, %v88, 0
    %107 = vmatprep.subr.mxu0 0.0
    %108 = vmatpush1.msra.mxu0 %v89
    %109 = vmatprep.subr.mxu0 0.0
    %110 = vmatpush1.msra.mxu0 %v90
    %111 = vmatprep.subr.mxu0 0.0
    %112 = vmatpush1.msra.mxu0 %v91
    %113 = vmatprep.subr.mxu0 0.0
    %114 = vmatpush1.msra.mxu0 %v92
    %115 = vmatprep.subr.mxu0 0.0
    %116 = vmatpush1.msra.mxu0 0.0
    %117 = vmatprep.subr.mxu0 0.0
    %118 = vmatpush1.msra.mxu0 0.0
    %119 = vmatprep.subr.mxu0 0.0
    %120 = vmatpush1.msra.mxu0 0.0
    %121 = vmatprep.subr.mxu0 0.0
    %122 = vmatpush1.msra.mxu0 0.0
    %123 = vmatprep.subr.mxu0 0.0
    %124 = vmatpush1.msra.mxu0 0.0
    %125 = vmatprep.subr.mxu0 0.0
    %126 = vmatpush1.msra.mxu0 0.0
    %127 = vmatprep.subr.mxu0 0.0
    %128 = vmatpush1.msra.mxu0 0.0
    %129 = vmatprep.subr.mxu0 0.0
    %130 = vmatpush1.msra.mxu0 0.0
    %131 = vmatprep.subr.mxu0 0.0
    %132 = vmatpush1.msra.mxu0 0.0
    %133 = vmatprep.subr.mxu0 0.0
    %134 = vmatpush1.msra.mxu0 0.0
    %135 = vmatprep.subr.mxu0 0.0
    %136 = vmatpush1.msra.mxu0 0.0
    %137 = vmatprep.subr.mxu0 0.0
    %138 = vmatpush1.msra.mxu0 0.0
    %139 = vmatprep.subr.mxu0 0.0
    %140 = vmatpush1.msra.mxu0 0.0
    %141 = vmatprep.subr.mxu0 0.0
    %142 = vmatpush1.msra.mxu0 0.0
    %143 = vmatprep.subr.mxu0 0.0
    %144 = vmatpush1.msra.mxu0 0.0
    %145 = vmatprep.subr.mxu0 0.0
    %146 = vmatpush1.msra.mxu0 0.0
    %147 = vmatprep.subr.mxu0 0.0
    %148 = vmatpush1.msra.mxu0 0.0
    %149 = vmatprep.subr.mxu0 0.0
    %150 = vmatpush1.msra.mxu0 0.0
    %151 = vmatprep.subr.mxu0 0.0
    %152 = vmatpush1.msra.mxu0 0.0
    %153 = vmatprep.subr.mxu0 0.0
    %154 = vmatpush1.msra.mxu0 0.0
    %155 = vmatprep.subr.mxu0 0.0
    %156 = vmatpush1.msra.mxu0 0.0
    %157 = vmatprep.subr.mxu0 0.0
    %158 = vmatpush1.msra.mxu0 0.0
    %159 = vmatprep.subr.mxu0 0.0
    %160 = vmatpush1.msra.mxu0 0.0
    %161 = vmatprep.subr.mxu0 0.0
    %162 = vmatpush1.msra.mxu0 0.0
    %163 = vmatprep.subr.mxu0 0.0
    %164 = vmatpush1.msra.mxu0 0.0
    %165 = vmatprep.subr.mxu0 0.0
    %166 = vmatpush1.msra.mxu0 0.0
    %167 = vmatprep.subr.mxu0 0.0
    %168 = vmatpush1.msra.mxu0 0.0
    %169 = vmatprep.subr.mxu0 0.0
    %170 = vmatpush1.msra.mxu0 0.0
    %171 = vmatprep.mubr.f32.mxu0 0.0
    %172 = vmatmul.mubr.f32.gmra.mrb[0].mxu0 %v102
    %v173 = vpop.f32.mrb[0].mxu0
    %v174 = vadd.f32 %v98, %v173
    %v175 = vpop.f32.mrb[0].mxu0
    %176 = vmatprep.mubr.f32.mxu0 0.0
    %177 = vmatmul.mubr.f32.gmra.mrb[0].mxu0 %v105
    %v178 = vpop.f32.mrb[0].mxu0
    %v179 = vadd.f32 %v98, %v178
    %v180 = vpop.f32.mrb[0].mxu0
    %181 = vdwg.mxu0
    %v182 = vld [vmem:[#allocation2] sm:$0xff]
    %v183 = vld [vmem:[#allocation2 + $0x8] sm:$0xff]
    %v184 = vld [vmem:[#allocation2 + $0x10] sm:$0xff]
    %v185 = vld [vmem:[#allocation2 + $0x18] sm:$0xff]
    %v186 = vld [vmem:[%s4] sm:$0x1]
    %v188 = vlaneseq
    %v189 = vshrl.u32 %v188, 7
    %v190 = vsub.s32 0, %v189
    %v191 = vrot.slane %v186, %v190
    %193 = vmatprep.subr.mxu0 0.0
    %194 = vmatpush1.msra.mxu0 %v182
    %195 = vmatprep.subr.mxu0 0.0
    %196 = vmatpush1.msra.mxu0 %v183
    %197 = vmatprep.subr.mxu0 0.0
    %198 = vmatpush1.msra.mxu0 %v184
    %199 = vmatprep.subr.mxu0 0.0
    %200 = vmatpush1.msra.mxu0 %v185
    %201 = vmatprep.subr.mxu0 0.0
    %202 = vmatpush1.msra.mxu0 0.0
    %203 = vmatprep.subr.mxu0 0.0
    %204 = vmatpush1.msra.mxu0 0.0
    %205 = vmatprep.subr.mxu0 0.0
    %206 = vmatpush1.msra.mxu0 0.0
    %207 = vmatprep.subr.mxu0 0.0
    %208 = vmatpush1.msra.mxu0 0.0
    %209 = vmatprep.subr.mxu0 0.0
    %210 = vmatpush1.msra.mxu0 0.0
    %211 = vmatprep.subr.mxu0 0.0
    %212 = vmatpush1.msra.mxu0 0.0
    %213 = vmatprep.subr.mxu0 0.0
    %214 = vmatpush1.msra.mxu0 0.0
    %215 = vmatprep.subr.mxu0 0.0
    %216 = vmatpush1.msra.mxu0 0.0
    %217 = vmatprep.subr.mxu0 0.0
    %218 = vmatpush1.msra.mxu0 0.0
    %219 = vmatprep.subr.mxu0 0.0
    %220 = vmatpush1.msra.mxu0 0.0
    %221 = vmatprep.subr.mxu0 0.0
    %222 = vmatpush1.msra.mxu0 0.0
    %223 = vmatprep.subr.mxu0 0.0
    %224 = vmatpush1.msra.mxu0 0.0
    %225 = vmatprep.subr.mxu0 0.0
    %226 = vmatpush1.msra.mxu0 0.0
    %227 = vmatprep.subr.mxu0 0.0
    %228 = vmatpush1.msra.mxu0 0.0
    %229 = vmatprep.subr.mxu0 0.0
    %230 = vmatpush1.msra.mxu0 0.0
    %231 = vmatprep.subr.mxu0 0.0
    %232 = vmatpush1.msra.mxu0 0.0
    %233 = vmatprep.subr.mxu0 0.0
    %234 = vmatpush1.msra.mxu0 0.0
    %235 = vmatprep.subr.mxu0 0.0
    %236 = vmatpush1.msra.mxu0 0.0
    %237 = vmatprep.subr.mxu0 0.0
    %238 = vmatpush1.msra.mxu0 0.0
    %239 = vmatprep.subr.mxu0 0.0
    %240 = vmatpush1.msra.mxu0 0.0
    %241 = vmatprep.subr.mxu0 0.0
    %242 = vmatpush1.msra.mxu0 0.0
    %243 = vmatprep.subr.mxu0 0.0
    %244 = vmatpush1.msra.mxu0 0.0
    %245 = vmatprep.subr.mxu0 0.0
    %246 = vmatpush1.msra.mxu0 0.0
    %247 = vmatprep.subr.mxu0 0.0
    %248 = vmatpush1.msra.mxu0 0.0
    %249 = vmatprep.subr.mxu0 0.0
    %250 = vmatpush1.msra.mxu0 0.0
    %251 = vmatprep.subr.mxu0 0.0
    %252 = vmatpush1.msra.mxu0 0.0
    %253 = vmatprep.subr.mxu0 0.0
    %254 = vmatpush1.msra.mxu0 0.0
    %255 = vmatprep.subr.mxu0 0.0
    %256 = vmatpush1.msra.mxu0 0.0
    %257 = vmatprep.mubr.f32.mxu0 0.0
    %258 = vmatmul.mubr.f32.gmra.mrb[0].mxu0 %v102
    %v259 = vpop.f32.mrb[0].mxu0
    %v260 = vadd.f32 %v191, %v259
    %v261 = vpop.f32.mrb[0].mxu0
    %262 = vmatprep.mubr.f32.mxu0 0.0
    %263 = vmatmul.mubr.f32.gmra.mrb[0].mxu0 %v105
    %v264 = vpop.f32.mrb[0].mxu0
    %v265 = vadd.f32 %v191, %v264
    %v266 = vpop.f32.mrb[0].mxu0
    %267 = vdwg.mxu0
    %v268 = vld [vmem:[#allocation5] sm:$0xff]
    %v269 = vld [vmem:[#allocation5 + $0x8] sm:$0xff]
    %v270 = vld [vmem:[#allocation5 + $0x10] sm:$0xff]
    %v271 = vld [vmem:[#allocation5 + $0x18] sm:$0xff]
    %v272 = vld [vmem:[%s6] sm:$0x1]
    %v274 = vlaneseq
    %v275 = vshrl.u32 %v274, 7
    %v276 = vsub.s32 0, %v275
    %v277 = vrot.slane %v272, %v276
    %279 = vmatprep.subr.mxu0 0.0
    %280 = vmatpush1.msra.mxu0 %v268
    %281 = vmatprep.subr.mxu0 0.0
    %282 = vmatpush1.msra.mxu0 %v269
    %283 = vmatprep.subr.mxu0 0.0
    %284 = vmatpush1.msra.mxu0 %v270
    %285 = vmatprep.subr.mxu0 0.0
    %286 = vmatpush1.msra.mxu0 %v271
    %287 = vmatprep.subr.mxu0 0.0
    %288 = vmatpush1.msra.mxu0 0.0
    %289 = vmatprep.subr.mxu0 0.0
    %290 = vmatpush1.msra.mxu0 0.0
    %291 = vmatprep.subr.mxu0 0.0
    %292 = vmatpush1.msra.mxu0 0.0
    %293 = vmatprep.subr.mxu0 0.0
    %294 = vmatpush1.msra.mxu0 0.0
    %295 = vmatprep.subr.mxu0 0.0
    %296 = vmatpush1.msra.mxu0 0.0
    %297 = vmatprep.subr.mxu0 0.0
    %298 = vmatpush1.msra.mxu0 0.0
    %299 = vmatprep.subr.mxu0 0.0
    %300 = vmatpush1.msra.mxu0 0.0
    %301 = vmatprep.subr.mxu0 0.0
    %302 = vmatpush1.msra.mxu0 0.0
    %303 = vmatprep.subr.mxu0 0.0
    %304 = vmatpush1.msra.mxu0 0.0
    %305 = vmatprep.subr.mxu0 0.0
    %306 = vmatpush1.msra.mxu0 0.0
    %307 = vmatprep.subr.mxu0 0.0
    %308 = vmatpush1.msra.mxu0 0.0
    %309 = vmatprep.subr.mxu0 0.0
    %310 = vmatpush1.msra.mxu0 0.0
    %311 = vmatprep.subr.mxu0 0.0
    %312 = vmatpush1.msra.mxu0 0.0
    %313 = vmatprep.subr.mxu0 0.0
    %314 = vmatpush1.msra.mxu0 0.0
    %315 = vmatprep.subr.mxu0 0.0
    %316 = vmatpush1.msra.mxu0 0.0
    %317 = vmatprep.subr.mxu0 0.0
    %318 = vmatpush1.msra.mxu0 0.0
    %319 = vmatprep.subr.mxu0 0.0
    %320 = vmatpush1.msra.mxu0 0.0
    %321 = vmatprep.subr.mxu0 0.0
    %322 = vmatpush1.msra.mxu0 0.0
    %323 = vmatprep.subr.mxu0 0.0
    %324 = vmatpush1.msra.mxu0 0.0
    %325 = vmatprep.subr.mxu0 0.0
    %326 = vmatpush1.msra.mxu0 0.0
    %327 = vmatprep.subr.mxu0 0.0
    %328 = vmatpush1.msra.mxu0 0.0
    %329 = vmatprep.subr.mxu0 0.0
    %330 = vmatpush1.msra.mxu0 0.0
    %331 = vmatprep.subr.mxu0 0.0
    %332 = vmatpush1.msra.mxu0 0.0
    %333 = vmatprep.subr.mxu0 0.0
    %334 = vmatpush1.msra.mxu0 0.0
    %335 = vmatprep.subr.mxu0 0.0
    %336 = vmatpush1.msra.mxu0 0.0
    %337 = vmatprep.subr.mxu0 0.0
    %338 = vmatpush1.msra.mxu0 0.0
    %339 = vmatprep.subr.mxu0 0.0
    %340 = vmatpush1.msra.mxu0 0.0
    %341 = vmatprep.subr.mxu0 0.0
    %342 = vmatpush1.msra.mxu0 0.0
    %343 = vmatprep.mubr.f32.mxu0 0.0
    %344 = vmatmul.mubr.f32.gmra.mrb[0].mxu0 %v102
    %v345 = vpop.f32.mrb[0].mxu0
    %v346 = vadd.f32 %v277, %v345
    %v347 = vpop.f32.mrb[0].mxu0
    %348 = vmatprep.mubr.f32.mxu0 0.0
    %349 = vmatmul.mubr.f32.gmra.mrb[0].mxu0 %v105
    %v350 = vpop.f32.mrb[0].mxu0
    %v351 = vadd.f32 %v277, %v350
    %v352 = vpop.f32.mrb[0].mxu0
    %353 = vdwg.mxu0
    %v355 = vsel %vm100, %v174, 0
    %v358 = vsel %vm100, %v260, 0
    %360 = vmatprep.subr.mxu0 0.0
    %361 = vmatpush1.xpose.msra.mxu0 %v358
    %362 = vmatprep.subr.mxu0 0.0
    %363 = vmatpush1.xpose.msra.mxu0 0.0
    %364 = vmatprep.subr.mxu0 0.0
    %365 = vmatpush1.xpose.msra.mxu0 0.0
    %366 = vmatprep.subr.mxu0 0.0
    %367 = vmatpush1.xpose.msra.mxu0 0.0
    %368 = vmatprep.subr.mxu0 0.0
    %369 = vmatpush1.xpose.msra.mxu0 0.0
    %370 = vmatprep.subr.mxu0 0.0
    %371 = vmatpush1.xpose.msra.mxu0 0.0
    %372 = vmatprep.subr.mxu0 0.0
    %373 = vmatpush1.xpose.msra.mxu0 0.0
    %374 = vmatprep.subr.mxu0 0.0
    %375 = vmatpush1.xpose.msra.mxu0 0.0
    %376 = vmatprep.subr.mxu0 0.0
    %377 = vmatpush1.xpose.msra.mxu0 0.0
    %378 = vmatprep.subr.mxu0 0.0
    %379 = vmatpush1.xpose.msra.mxu0 0.0
    %380 = vmatprep.subr.mxu0 0.0
    %381 = vmatpush1.xpose.msra.mxu0 0.0
    %382 = vmatprep.subr.mxu0 0.0
    %383 = vmatpush1.xpose.msra.mxu0 0.0
    %384 = vmatprep.subr.mxu0 0.0
    %385 = vmatpush1.xpose.msra.mxu0 0.0
    %386 = vmatprep.subr.mxu0 0.0
    %387 = vmatpush1.xpose.msra.mxu0 0.0
    %388 = vmatprep.subr.mxu0 0.0
    %389 = vmatpush1.xpose.msra.mxu0 0.0
    %390 = vmatprep.subr.mxu0 0.0
    %391 = vmatpush1.xpose.msra.mxu0 0.0
    %392 = vmatprep.subr.mxu0 0.0
    %393 = vmatpush1.xpose.msra.mxu0 0.0
    %394 = vmatprep.subr.mxu0 0.0
    %395 = vmatpush1.xpose.msra.mxu0 0.0
    %396 = vmatprep.subr.mxu0 0.0
    %397 = vmatpush1.xpose.msra.mxu0 0.0
    %398 = vmatprep.subr.mxu0 0.0
    %399 = vmatpush1.xpose.msra.mxu0 0.0
    %400 = vmatprep.subr.mxu0 0.0
    %401 = vmatpush1.xpose.msra.mxu0 0.0
    %402 = vmatprep.subr.mxu0 0.0
    %403 = vmatpush1.xpose.msra.mxu0 0.0
    %404 = vmatprep.subr.mxu0 0.0
    %405 = vmatpush1.xpose.msra.mxu0 0.0
    %406 = vmatprep.subr.mxu0 0.0
    %407 = vmatpush1.xpose.msra.mxu0 0.0
    %408 = vmatprep.subr.mxu0 0.0
    %409 = vmatpush1.xpose.msra.mxu0 0.0
    %410 = vmatprep.subr.mxu0 0.0
    %411 = vmatpush1.xpose.msra.mxu0 0.0
    %412 = vmatprep.subr.mxu0 0.0
    %413 = vmatpush1.xpose.msra.mxu0 0.0
    %414 = vmatprep.subr.mxu0 0.0
    %415 = vmatpush1.xpose.msra.mxu0 0.0
    %416 = vmatprep.subr.mxu0 0.0
    %417 = vmatpush1.xpose.msra.mxu0 0.0
    %418 = vmatprep.subr.mxu0 0.0
    %419 = vmatpush1.xpose.msra.mxu0 0.0
    %420 = vmatprep.subr.mxu0 0.0
    %421 = vmatpush1.xpose.msra.mxu0 0.0
    %422 = vmatprep.subr.mxu0 0.0
    %423 = vmatpush1.xpose.msra.mxu0 0.0
    %424 = vmatprep.mubr.f32.mxu0 0.0
    %425 = vmatmul.mubr.f32.gmra.mrb[0].mxu0 %v355
    %v426 = vpop.f32.mrb[0].mxu0
    %v427 = vadd.f32 0.0, %v426
    %v428 = vpop.f32.mrb[0].mxu0
    %429 = vdwg.mxu0
    %v431 = vsel %vm100, %v179, 0
    %v434 = vsel %vm100, %v265, 0
    %436 = vmatprep.subr.mxu0 0.0
    %437 = vmatpush1.xpose.msra.mxu0 %v434
    %438 = vmatprep.subr.mxu0 0.0
    %439 = vmatpush1.xpose.msra.mxu0 0.0
    %440 = vmatprep.subr.mxu0 0.0
    %441 = vmatpush1.xpose.msra.mxu0 0.0
    %442 = vmatprep.subr.mxu0 0.0
    %443 = vmatpush1.xpose.msra.mxu0 0.0
    %444 = vmatprep.subr.mxu0 0.0
    %445 = vmatpush1.xpose.msra.mxu0 0.0
    %446 = vmatprep.subr.mxu0 0.0
    %447 = vmatpush1.xpose.msra.mxu0 0.0
    %448 = vmatprep.subr.mxu0 0.0
    %449 = vmatpush1.xpose.msra.mxu0 0.0
    %450 = vmatprep.subr.mxu0 0.0
    %451 = vmatpush1.xpose.msra.mxu0 0.0
    %452 = vmatprep.subr.mxu0 0.0
    %453 = vmatpush1.xpose.msra.mxu0 0.0
    %454 = vmatprep.subr.mxu0 0.0
    %455 = vmatpush1.xpose.msra.mxu0 0.0
    %456 = vmatprep.subr.mxu0 0.0
    %457 = vmatpush1.xpose.msra.mxu0 0.0
    %458 = vmatprep.subr.mxu0 0.0
    %459 = vmatpush1.xpose.msra.mxu0 0.0
    %460 = vmatprep.subr.mxu0 0.0
    %461 = vmatpush1.xpose.msra.mxu0 0.0
    %462 = vmatprep.subr.mxu0 0.0
    %463 = vmatpush1.xpose.msra.mxu0 0.0
    %464 = vmatprep.subr.mxu0 0.0
    %465 = vmatpush1.xpose.msra.mxu0 0.0
    %466 = vmatprep.subr.mxu0 0.0
    %467 = vmatpush1.xpose.msra.mxu0 0.0
    %468 = vmatprep.subr.mxu0 0.0
    %469 = vmatpush1.xpose.msra.mxu0 0.0
    %470 = vmatprep.subr.mxu0 0.0
    %471 = vmatpush1.xpose.msra.mxu0 0.0
    %472 = vmatprep.subr.mxu0 0.0
    %473 = vmatpush1.xpose.msra.mxu0 0.0
    %474 = vmatprep.subr.mxu0 0.0
    %475 = vmatpush1.xpose.msra.mxu0 0.0
    %476 = vmatprep.subr.mxu0 0.0
    %477 = vmatpush1.xpose.msra.mxu0 0.0
    %478 = vmatprep.subr.mxu0 0.0
    %479 = vmatpush1.xpose.msra.mxu0 0.0
    %480 = vmatprep.subr.mxu0 0.0
    %481 = vmatpush1.xpose.msra.mxu0 0.0
    %482 = vmatprep.subr.mxu0 0.0
    %483 = vmatpush1.xpose.msra.mxu0 0.0
    %484 = vmatprep.subr.mxu0 0.0
    %485 = vmatpush1.xpose.msra.mxu0 0.0
    %486 = vmatprep.subr.mxu0 0.0
    %487 = vmatpush1.xpose.msra.mxu0 0.0
    %488 = vmatprep.subr.mxu0 0.0
    %489 = vmatpush1.xpose.msra.mxu0 0.0
    %490 = vmatprep.subr.mxu0 0.0
    %491 = vmatpush1.xpose.msra.mxu0 0.0
    %492 = vmatprep.subr.mxu0 0.0
    %493 = vmatpush1.xpose.msra.mxu0 0.0
    %494 = vmatprep.subr.mxu0 0.0
    %495 = vmatpush1.xpose.msra.mxu0 0.0
    %496 = vmatprep.subr.mxu0 0.0
    %497 = vmatpush1.xpose.msra.mxu0 0.0
    %498 = vmatprep.subr.mxu0 0.0
    %499 = vmatpush1.xpose.msra.mxu0 0.0
    %500 = vmatprep.mubr.f32.mxu0 0.0
    %501 = vmatmul.mubr.f32.gmra.mrb[0].mxu0 %v431
    %v502 = vpop.f32.mrb[0].mxu0
    %v503 = vadd.f32 0.0, %v502
    %v504 = vpop.f32.mrb[0].mxu0
    %505 = vdwg.mxu0
    %v506 = vmul.f32 %v427, 0.17677669
    %v507 = vmul.f32 %v503, 0.17677669
    %vm508 = vcmask 64512
    %v509 = vsel %vm508, %v506, -inf
    %510 = vmax.xlane.f32.xlu0 %v509
    %v511 = vpop.xlane.xlu0 %510
    %v512 = vsel %vm508, %v507, -inf
    %513 = vmax.xlane.f32.xlu0 %v512
    %v514 = vpop.xlane.xlu0 %513
    %v515 = vsub.f32 %v506, %v511
    %v516 = vsub.f32 %v507, %v514
    %v517 = vmul.f32 %v515, 1.442695
    %v518 = vpow.pop %v517
    %v519 = vmul.f32 %v516, 1.442695
    %v520 = vpow.pop %v519
    %v521 = vsel %vm508, %v518, 0.0
    %522 = vadd.xlane.f32.xlu0 %v521
    %v523 = vpop.xlane.xlu0 %522
    %v524 = vsel %vm508, %v520, 0.0
    %525 = vadd.xlane.f32.xlu0 %v524
    %v526 = vpop.xlane.xlu0 %525
    %v527 = vrcp.pop %v523
    %v528 = vmul.f32 %v518, %v527
    %v529 = vrcp.pop %v526
    %v530 = vmul.f32 %v520, %v529
    %v532 = vsel %vm508, %v528, 0
    %534 = vmatprep.subr.mxu0 0.0
    %535 = vmatpush1.msra.mxu0 %v346
    %536 = vmatprep.subr.mxu0 0.0
    %537 = vmatpush1.msra.mxu0 0.0
    %538 = vmatprep.subr.mxu0 0.0
    %539 = vmatpush1.msra.mxu0 0.0
    %540 = vmatprep.subr.mxu0 0.0
    %541 = vmatpush1.msra.mxu0 0.0
    %542 = vmatprep.subr.mxu0 0.0
    %543 = vmatpush1.msra.mxu0 0.0
    %544 = vmatprep.subr.mxu0 0.0
    %545 = vmatpush1.msra.mxu0 0.0
    %546 = vmatprep.subr.mxu0 0.0
    %547 = vmatpush1.msra.mxu0 0.0
    %548 = vmatprep.subr.mxu0 0.0
    %549 = vmatpush1.msra.mxu0 0.0
    %550 = vmatprep.subr.mxu0 0.0
    %551 = vmatpush1.msra.mxu0 0.0
    %552 = vmatprep.subr.mxu0 0.0
    %553 = vmatpush1.msra.mxu0 0.0
    %554 = vmatprep.subr.mxu0 0.0
    %555 = vmatpush1.msra.mxu0 0.0
    %556 = vmatprep.subr.mxu0 0.0
    %557 = vmatpush1.msra.mxu0 0.0
    %558 = vmatprep.subr.mxu0 0.0
    %559 = vmatpush1.msra.mxu0 0.0
    %560 = vmatprep.subr.mxu0 0.0
    %561 = vmatpush1.msra.mxu0 0.0
    %562 = vmatprep.subr.mxu0 0.0
    %563 = vmatpush1.msra.mxu0 0.0
    %564 = vmatprep.subr.mxu0 0.0
    %565 = vmatpush1.msra.mxu0 0.0
    %566 = vmatprep.subr.mxu0 0.0
    %567 = vmatpush1.msra.mxu0 0.0
    %568 = vmatprep.subr.mxu0 0.0
    %569 = vmatpush1.msra.mxu0 0.0
    %570 = vmatprep.subr.mxu0 0.0
    %571 = vmatpush1.msra.mxu0 0.0
    %572 = vmatprep.subr.mxu0 0.0
    %573 = vmatpush1.msra.mxu0 0.0
    %574 = vmatprep.subr.mxu0 0.0
    %575 = vmatpush1.msra.mxu0 0.0
    %576 = vmatprep.subr.mxu0 0.0
    %577 = vmatpush1.msra.mxu0 0.0
    %578 = vmatprep.subr.mxu0 0.0
    %579 = vmatpush1.msra.mxu0 0.0
    %580 = vmatprep.subr.mxu0 0.0
    %581 = vmatpush1.msra.mxu0 0.0
    %582 = vmatprep.subr.mxu0 0.0
    %583 = vmatpush1.msra.mxu0 0.0
    %584 = vmatprep.subr.mxu0 0.0
    %585 = vmatpush1.msra.mxu0 0.0
    %586 = vmatprep.subr.mxu0 0.0
    %587 = vmatpush1.msra.mxu0 0.0
    %588 = vmatprep.subr.mxu0 0.0
    %589 = vmatpush1.msra.mxu0 0.0
    %590 = vmatprep.subr.mxu0 0.0
    %591 = vmatpush1.msra.mxu0 0.0
    %592 = vmatprep.subr.mxu0 0.0
    %593 = vmatpush1.msra.mxu0 0.0
    %594 = vmatprep.subr.mxu0 0.0
    %595 = vmatpush1.msra.mxu0 0.0
    %596 = vmatprep.subr.mxu0 0.0
    %597 = vmatpush1.msra.mxu0 0.0
    %598 = vmatprep.mubr.f32.mxu0 0.0
    %599 = vmatmul.mubr.f32.gmra.mrb[0].mxu0 %v532
    %v600 = vpop.f32.mrb[0].mxu0
    %v601 = vadd.f32 0.0, %v600
    %v602 = vpop.f32.mrb[0].mxu0
    %603 = vdwg.mxu0
    %v605 = vsel %vm508, %v530, 0
    %607 = vmatprep.subr.mxu0 0.0
    %608 = vmatpush1.msra.mxu0 %v351
    %609 = vmatprep.subr.mxu0 0.0
    %610 = vmatpush1.msra.mxu0 0.0
    %611 = vmatprep.subr.mxu0 0.0
    %612 = vmatpush1.msra.mxu0 0.0
    %613 = vmatprep.subr.mxu0 0.0
    %614 = vmatpush1.msra.mxu0 0.0
    %615 = vmatprep.subr.mxu0 0.0
    %616 = vmatpush1.msra.mxu0 0.0
    %617 = vmatprep.subr.mxu0 0.0
    %618 = vmatpush1.msra.mxu0 0.0
    %619 = vmatprep.subr.mxu0 0.0
    %620 = vmatpush1.msra.mxu0 0.0
    %621 = vmatprep.subr.mxu0 0.0
    %622 = vmatpush1.msra.mxu0 0.0
    %623 = vmatprep.subr.mxu0 0.0
    %624 = vmatpush1.msra.mxu0 0.0
    %625 = vmatprep.subr.mxu0 0.0
    %626 = vmatpush1.msra.mxu0 0.0
    %627 = vmatprep.subr.mxu0 0.0
    %628 = vmatpush1.msra.mxu0 0.0
    %629 = vmatprep.subr.mxu0 0.0
    %630 = vmatpush1.msra.mxu0 0.0
    %631 = vmatprep.subr.mxu0 0.0
    %632 = vmatpush1.msra.mxu0 0.0
    %633 = vmatprep.subr.mxu0 0.0
    %634 = vmatpush1.msra.mxu0 0.0
    %635 = vmatprep.subr.mxu0 0.0
    %636 = vmatpush1.msra.mxu0 0.0
    %637 = vmatprep.subr.mxu0 0.0
    %638 = vmatpush1.msra.mxu0 0.0
    %639 = vmatprep.subr.mxu0 0.0
    %640 = vmatpush1.msra.mxu0 0.0
    %641 = vmatprep.subr.mxu0 0.0
    %642 = vmatpush1.msra.mxu0 0.0
    %643 = vmatprep.subr.mxu0 0.0
    %644 = vmatpush1.msra.mxu0 0.0
    %645 = vmatprep.subr.mxu0 0.0
    %646 = vmatpush1.msra.mxu0 0.0
    %647 = vmatprep.subr.mxu0 0.0
    %648 = vmatpush1.msra.mxu0 0.0
    %649 = vmatprep.subr.mxu0 0.0
    %650 = vmatpush1.msra.mxu0 0.0
    %651 = vmatprep.subr.mxu0 0.0
    %652 = vmatpush1.msra.mxu0 0.0
    %653 = vmatprep.subr.mxu0 0.0
    %654 = vmatpush1.msra.mxu0 0.0
    %655 = vmatprep.subr.mxu0 0.0
    %656 = vmatpush1.msra.mxu0 0.0
    %657 = vmatprep.subr.mxu0 0.0
    %658 = vmatpush1.msra.mxu0 0.0
    %659 = vmatprep.subr.mxu0 0.0
    %660 = vmatpush1.msra.mxu0 0.0
    %661 = vmatprep.subr.mxu0 0.0
    %662 = vmatpush1.msra.mxu0 0.0
    %663 = vmatprep.subr.mxu0 0.0
    %664 = vmatpush1.msra.mxu0 0.0
    %665 = vmatprep.subr.mxu0 0.0
    %666 = vmatpush1.msra.mxu0 0.0
    %667 = vmatprep.subr.mxu0 0.0
    %668 = vmatpush1.msra.mxu0 0.0
    %669 = vmatprep.subr.mxu0 0.0
    %670 = vmatpush1.msra.mxu0 0.0
    %671 = vmatprep.mubr.f32.mxu0 0.0
    %672 = vmatmul.mubr.f32.gmra.mrb[0].mxu0 %v605
    %v673 = vpop.f32.mrb[0].mxu0
    %v674 = vadd.f32 0.0, %v673
    %v675 = vpop.f32.mrb[0].mxu0
    %676 = vdwg.mxu0
    %v677 = vsel %vm508, %v506, 0.0
    %v678 = vsel %vm508, %v507, 0.0
    %679 = vst [vmem:[#allocation9] sm:$0xff] %v677
    %680 = vst [vmem:[#allocation9 + $0x8] sm:$0xff] %v678
    %v681 = vsel %vm508, %v528, 0.0
    %v682 = vsel %vm508, %v530, 0.0
    %683 = vst [vmem:[#allocation11] sm:$0xff] %v681
    %684 = vst [vmem:[#allocation11 + $0x8] sm:$0xff] %v682
    %v685 = vld [vmem:[%s7] sm:$0xff]
    %v686 = vld [vmem:[%s7 + $0x8] sm:$0xff]
    %v687 = vld [vmem:[%s7 + $0x10] sm:$0xff]
    %v688 = vld [vmem:[%s7 + $0x18] sm:$0xff]
    %v689 = vld [vmem:[%s7 + $0x20] sm:$0xff]
    %v690 = vld [vmem:[%s7 + $0x28] sm:$0xff]
    %v691 = vld [vmem:[%s7 + $0x30] sm:$0xff]
    %v692 = vld [vmem:[%s7 + $0x38] sm:$0xff]
    %v693 = vld [vmem:[%s7 + $0x40] sm:$0xff]
    %v694 = vld [vmem:[%s7 + $0x48] sm:$0xff]
    %v695 = vld [vmem:[%s7 + $0x50] sm:$0xff]
    %v696 = vld [vmem:[%s7 + $0x58] sm:$0xff]
    %v697 = vld [vmem:[%s7 + $0x60] sm:$0xff]
    %v698 = vld [vmem:[%s7 + $0x68] sm:$0xff]
    %v699 = vld [vmem:[%s7 + $0x70] sm:$0xff]
    %v700 = vld [vmem:[%s7 + $0x78] sm:$0xff]
    %v701 = vld [vmem:[%s9] sm:$0xf]
    %v703 = vlaneseq
    %v704 = vshrl.u32 %v703, 7
    %v705 = vsub.s32 0, %v704
    %v706 = vrot.slane %v701, %v705
    %v707 = vlaneseq
    %v708 = vshrl.u32 %v707, 7
    %v709 = vsub.s32 1, %v708
    %v710 = vrot.slane %v701, %v709
    %v711 = vlaneseq
    %v712 = vshrl.u32 %v711, 7
    %v713 = vsub.s32 2, %v712
    %v714 = vrot.slane %v701, %v713
    %v715 = vlaneseq
    %v716 = vshrl.u32 %v715, 7
    %v717 = vsub.s32 3, %v716
    %v718 = vrot.slane %v701, %v717
    %v724 = vsel %vm100, %v601, 0
    %v727 = vsel %vm100, %v674, 0
    %729 = vmatprep.subr.mxu0 %v686
    %730 = vmatpush1.msra.mxu0 %v685
    %731 = vmatprep.subr.mxu0 %v690
    %732 = vmatpush1.msra.mxu0 %v689
    %733 = vmatprep.subr.mxu0 %v694
    %734 = vmatpush1.msra.mxu0 %v693
    %735 = vmatprep.subr.mxu0 %v698
    %736 = vmatpush1.msra.mxu0 %v697
    %737 = vmatprep.subr.mxu0 0.0
    %738 = vmatpush1.msra.mxu0 0.0
    %739 = vmatprep.subr.mxu0 0.0
    %740 = vmatpush1.msra.mxu0 0.0
    %741 = vmatprep.subr.mxu0 0.0
    %742 = vmatpush1.msra.mxu0 0.0
    %743 = vmatprep.subr.mxu0 0.0
    %744 = vmatpush1.msra.mxu0 0.0
    %745 = vmatprep.subr.mxu0 0.0
    %746 = vmatpush1.msra.mxu0 0.0
    %747 = vmatprep.subr.mxu0 0.0
    %748 = vmatpush1.msra.mxu0 0.0
    %749 = vmatprep.subr.mxu0 0.0
    %750 = vmatpush1.msra.mxu0 0.0
    %751 = vmatprep.subr.mxu0 0.0
    %752 = vmatpush1.msra.mxu0 0.0
    %753 = vmatprep.subr.mxu0 0.0
    %754 = vmatpush1.msra.mxu0 0.0
    %755 = vmatprep.subr.mxu0 0.0
    %756 = vmatpush1.msra.mxu0 0.0
    %757 = vmatprep.subr.mxu0 0.0
    %758 = vmatpush1.msra.mxu0 0.0
    %759 = vmatprep.subr.mxu0 0.0
    %760 = vmatpush1.msra.mxu0 0.0
    %761 = vmatprep.subr.mxu0 0.0
    %762 = vmatpush1.msra.mxu0 0.0
    %763 = vmatprep.subr.mxu0 0.0
    %764 = vmatpush1.msra.mxu0 0.0
    %765 = vmatprep.subr.mxu0 0.0
    %766 = vmatpush1.msra.mxu0 0.0
    %767 = vmatprep.subr.mxu0 0.0
    %768 = vmatpush1.msra.mxu0 0.0
    %769 = vmatprep.subr.mxu0 0.0
    %770 = vmatpush1.msra.mxu0 0.0
    %771 = vmatprep.subr.mxu0 0.0
    %772 = vmatpush1.msra.mxu0 0.0
    %773 = vmatprep.subr.mxu0 0.0
    %774 = vmatpush1.msra.mxu0 0.0
    %775 = vmatprep.subr.mxu0 0.0
    %776 = vmatpush1.msra.mxu0 0.0
    %777 = vmatprep.subr.mxu0 0.0
    %778 = vmatpush1.msra.mxu0 0.0
    %779 = vmatprep.subr.mxu0 0.0
    %780 = vmatpush1.msra.mxu0 0.0
    %781 = vmatprep.subr.mxu0 0.0
    %782 = vmatpush1.msra.mxu0 0.0
    %783 = vmatprep.subr.mxu0 0.0
    %784 = vmatpush1.msra.mxu0 0.0
    %785 = vmatprep.subr.mxu0 0.0
    %786 = vmatpush1.msra.mxu0 0.0
    %787 = vmatprep.subr.mxu0 0.0
    %788 = vmatpush1.msra.mxu0 0.0
    %789 = vmatprep.subr.mxu0 0.0
    %790 = vmatpush1.msra.mxu0 0.0
    %791 = vmatprep.subr.mxu0 0.0
    %792 = vmatpush1.msra.mxu0 0.0
    %793 = vmatprep.mubr.f32.mxu0 0.0
    %794 = vmatmul.mubr.f32.gmra.mrb[0].mxu0 %v724
    %v795 = vpop.f32.mrb[0].mxu0
    %v796 = vadd.f32 %v706, %v795
    %v797 = vpop.f32.mrb[0].mxu0
    %v798 = vadd.f32 %v710, %v797
    %799 = vmatprep.mubr.f32.mxu0 0.0
    %800 = vmatmul.mubr.f32.gmra.mrb[0].mxu0 %v727
    %v801 = vpop.f32.mrb[0].mxu0
    %v802 = vadd.f32 %v706, %v801
    %v803 = vpop.f32.mrb[0].mxu0
    %v804 = vadd.f32 %v710, %v803
    %805 = vdwg.mxu0
    %806 = vmatprep.subr.mxu0 %v688
    %807 = vmatpush1.msra.mxu0 %v687
    %808 = vmatprep.subr.mxu0 %v692
    %809 = vmatpush1.msra.mxu0 %v691
    %810 = vmatprep.subr.mxu0 %v696
    %811 = vmatpush1.msra.mxu0 %v695
    %812 = vmatprep.subr.mxu0 %v700
    %813 = vmatpush1.msra.mxu0 %v699
    %814 = vmatprep.subr.mxu0 0.0
    %815 = vmatpush1.msra.mxu0 0.0
    %816 = vmatprep.subr.mxu0 0.0
    %817 = vmatpush1.msra.mxu0 0.0
    %818 = vmatprep.subr.mxu0 0.0
    %819 = vmatpush1.msra.mxu0 0.0
    %820 = vmatprep.subr.mxu0 0.0
    %821 = vmatpush1.msra.mxu0 0.0
    %822 = vmatprep.subr.mxu0 0.0
    %823 = vmatpush1.msra.mxu0 0.0
    %824 = vmatprep.subr.mxu0 0.0
    %825 = vmatpush1.msra.mxu0 0.0
    %826 = vmatprep.subr.mxu0 0.0
    %827 = vmatpush1.msra.mxu0 0.0
    %828 = vmatprep.subr.mxu0 0.0
    %829 = vmatpush1.msra.mxu0 0.0
    %830 = vmatprep.subr.mxu0 0.0
    %831 = vmatpush1.msra.mxu0 0.0
    %832 = vmatprep.subr.mxu0 0.0
    %833 = vmatpush1.msra.mxu0 0.0
    %834 = vmatprep.subr.mxu0 0.0
    %835 = vmatpush1.msra.mxu0 0.0
    %836 = vmatprep.subr.mxu0 0.0
    %837 = vmatpush1.msra.mxu0 0.0
    %838 = vmatprep.subr.mxu0 0.0
    %839 = vmatpush1.msra.mxu0 0.0
    %840 = vmatprep.subr.mxu0 0.0
    %841 = vmatpush1.msra.mxu0 0.0
    %842 = vmatprep.subr.mxu0 0.0
    %843 = vmatpush1.msra.mxu0 0.0
    %844 = vmatprep.subr.mxu0 0.0
    %845 = vmatpush1.msra.mxu0 0.0
    %846 = vmatprep.subr.mxu0 0.0
    %847 = vmatpush1.msra.mxu0 0.0
    %848 = vmatprep.subr.mxu0 0.0
    %849 = vmatpush1.msra.mxu0 0.0
    %850 = vmatprep.subr.mxu0 0.0
    %851 = vmatpush1.msra.mxu0 0.0
    %852 = vmatprep.subr.mxu0 0.0
    %853 = vmatpush1.msra.mxu0 0.0
    %854 = vmatprep.subr.mxu0 0.0
    %855 = vmatpush1.msra.mxu0 0.0
    %856 = vmatprep.subr.mxu0 0.0
    %857 = vmatpush1.msra.mxu0 0.0
    %858 = vmatprep.subr.mxu0 0.0
    %859 = vmatpush1.msra.mxu0 0.0
    %860 = vmatprep.subr.mxu0 0.0
    %861 = vmatpush1.msra.mxu0 0.0
    %862 = vmatprep.subr.mxu0 0.0
    %863 = vmatpush1.msra.mxu0 0.0
    %864 = vmatprep.subr.mxu0 0.0
    %865 = vmatpush1.msra.mxu0 0.0
    %866 = vmatprep.subr.mxu0 0.0
    %867 = vmatpush1.msra.mxu0 0.0
    %868 = vmatprep.subr.mxu0 0.0
    %869 = vmatpush1.msra.mxu0 0.0
    %870 = vmatprep.mubr.f32.mxu0 0.0
    %871 = vmatmul.mubr.f32.gmra.mrb[0].mxu0 %v724
    %v872 = vpop.f32.mrb[0].mxu0
    %v873 = vadd.f32 %v714, %v872
    %v874 = vpop.f32.mrb[0].mxu0
    %v875 = vadd.f32 %v718, %v874
    %876 = vmatprep.mubr.f32.mxu0 0.0
    %877 = vmatmul.mubr.f32.gmra.mrb[0].mxu0 %v727
    %v878 = vpop.f32.mrb[0].mxu0
    %v879 = vadd.f32 %v714, %v878
    %v880 = vpop.f32.mrb[0].mxu0
    %v881 = vadd.f32 %v718, %v880
    %882 = vdwg.mxu0
    %v883 = vld [vmem:[#allocation7] sm:$0xff]
    %v884 = vld [vmem:[#allocation7 + $0x8] sm:$0xff]
    %v885 = vld [vmem:[#allocation7 + $0x10] sm:$0xff]
    %v886 = vld [vmem:[#allocation7 + $0x18] sm:$0xff]
    %v887 = vld [vmem:[#allocation7 + $0x20] sm:$0xff]
    %v888 = vld [vmem:[#allocation7 + $0x28] sm:$0xff]
    %v889 = vld [vmem:[#allocation7 + $0x30] sm:$0xff]
    %v890 = vld [vmem:[#allocation7 + $0x38] sm:$0xff]
    %v891 = vld [vmem:[#allocation7 + $0x40] sm:$0xff]
    %v892 = vld [vmem:[#allocation7 + $0x48] sm:$0xff]
    %v893 = vld [vmem:[#allocation7 + $0x50] sm:$0xff]
    %v894 = vld [vmem:[#allocation7 + $0x58] sm:$0xff]
    %v895 = vld [vmem:[#allocation7 + $0x60] sm:$0xff]
    %v896 = vld [vmem:[#allocation7 + $0x68] sm:$0xff]
    %v897 = vld [vmem:[#allocation7 + $0x70] sm:$0xff]
    %v898 = vld [vmem:[#allocation7 + $0x78] sm:$0xff]
    %v899 = vld [vmem:[#allocation7 + $0x80] sm:$0xff]
    %v900 = vld [vmem:[#allocation7 + $0x88] sm:$0xff]
    %v901 = vld [vmem:[#allocation7 + $0x90] sm:$0xff]
    %v902 = vld [vmem:[#allocation7 + $0x98] sm:$0xff]
    %v903 = vld [vmem:[#allocation7 + $0xa0] sm:$0xff]
    %v904 = vld [vmem:[#allocation7 + $0xa8] sm:$0xff]
    %v905 = vld [vmem:[#allocation7 + $0xb0] sm:$0xff]
    %v906 = vld [vmem:[#allocation7 + $0xb8] sm:$0xff]
    %v907 = vld [vmem:[#allocation7 + $0xc0] sm:$0xff]
    %v908 = vld [vmem:[#allocation7 + $0xc8] sm:$0xff]
    %v909 = vld [vmem:[#allocation7 + $0xd0] sm:$0xff]
    %v910 = vld [vmem:[#allocation7 + $0xd8] sm:$0xff]
    %v911 = vld [vmem:[#allocation7 + $0xe0] sm:$0xff]
    %v912 = vld [vmem:[#allocation7 + $0xe8] sm:$0xff]
    %v913 = vld [vmem:[#allocation7 + $0xf0] sm:$0xff]
    %v914 = vld [vmem:[#allocation7 + $0xf8] sm:$0xff]
    %v915 = vld [vmem:[#allocation7 + $0x100] sm:$0xff]
    %v916 = vld [vmem:[#allocation7 + $0x108] sm:$0xff]
    %v917 = vld [vmem:[#allocation7 + $0x110] sm:$0xff]
    %v918 = vld [vmem:[#allocation7 + $0x118] sm:$0xff]
    %v919 = vld [vmem:[#allocation7 + $0x120] sm:$0xff]
    %v920 = vld [vmem:[#allocation7 + $0x128] sm:$0xff]
    %v921 = vld [vmem:[#allocation7 + $0x130] sm:$0xff]
    %v922 = vld [vmem:[#allocation7 + $0x138] sm:$0xff]
    %v923 = vld [vmem:[#allocation7 + $0x140] sm:$0xff]
    %v924 = vld [vmem:[#allocation7 + $0x148] sm:$0xff]
    %v925 = vld [vmem:[#allocation7 + $0x150] sm:$0xff]
    %v926 = vld [vmem:[#allocation7 + $0x158] sm:$0xff]
    %v927 = vld [vmem:[#allocation7 + $0x160] sm:$0xff]
    %v928 = vld [vmem:[#allocation7 + $0x168] sm:$0xff]
    %v929 = vld [vmem:[#allocation7 + $0x170] sm:$0xff]
    %v930 = vld [vmem:[#allocation7 + $0x178] sm:$0xff]
    %v931 = vld [vmem:[#allocation7 + $0x180] sm:$0xff]
    %v932 = vld [vmem:[#allocation7 + $0x188] sm:$0xff]
    %v933 = vld [vmem:[#allocation7 + $0x190] sm:$0xff]
    %v934 = vld [vmem:[#allocation7 + $0x198] sm:$0xff]
    %v935 = vld [vmem:[#allocation7 + $0x1a0] sm:$0xff]
    %v936 = vld [vmem:[#allocation7 + $0x1a8] sm:$0xff]
    %v937 = vld [vmem:[#allocation7 + $0x1b0] sm:$0xff]
    %v938 = vld [vmem:[#allocation7 + $0x1b8] sm:$0xff]
    %v939 = vld [vmem:[#allocation7 + $0x1c0] sm:$0xff]
    %v940 = vld [vmem:[#allocation7 + $0x1c8] sm:$0xff]
    %v941 = vld [vmem:[#allocation7 + $0x1d0] sm:$0xff]
    %v942 = vld [vmem:[#allocation7 + $0x1d8] sm:$0xff]
    %v943 = vld [vmem:[#allocation7 + $0x1e0] sm:$0xff]
    %v944 = vld [vmem:[#allocation7 + $0x1e8] sm:$0xff]
    %v945 = vld [vmem:[#allocation7 + $0x1f0] sm:$0xff]
    %v946 = vld [vmem:[#allocation7 + $0x1f8] sm:$0xff]
    %947 = vmatprep.subr.mxu0 %v884
    %948 = vmatpush1.msra.mxu0 %v883
    %949 = vmatprep.subr.mxu0 %v888
    %950 = vmatpush1.msra.mxu0 %v887
    %951 = vmatprep.subr.mxu0 %v892
    %952 = vmatpush1.msra.mxu0 %v891
    %953 = vmatprep.subr.mxu0 %v896
    %954 = vmatpush1.msra.mxu0 %v895
    %955 = vmatprep.subr.mxu0 %v900
    %956 = vmatpush1.msra.mxu0 %v899
    %957 = vmatprep.subr.mxu0 %v904
    %958 = vmatpush1.msra.mxu0 %v903
    %959 = vmatprep.subr.mxu0 %v908
    %960 = vmatpush1.msra.mxu0 %v907
    %961 = vmatprep.subr.mxu0 %v912
    %962 = vmatpush1.msra.mxu0 %v911
    %963 = vmatprep.subr.mxu0 %v916
    %964 = vmatpush1.msra.mxu0 %v915
    %965 = vmatprep.subr.mxu0 %v920
    %966 = vmatpush1.msra.mxu0 %v919
    %967 = vmatprep.subr.mxu0 %v924
    %968 = vmatpush1.msra.mxu0 %v923
    %969 = vmatprep.subr.mxu0 %v928
    %970 = vmatpush1.msra.mxu0 %v927
    %971 = vmatprep.subr.mxu0 %v932
    %972 = vmatpush1.msra.mxu0 %v931
    %973 = vmatprep.subr.mxu0 %v936
    %974 = vmatpush1.msra.mxu0 %v935
    %975 = vmatprep.subr.mxu0 %v940
    %976 = vmatpush1.msra.mxu0 %v939
    %977 = vmatprep.subr.mxu0 %v944
    %978 = vmatpush1.msra.mxu0 %v943
    %979 = vmatprep.subr.mxu0 0.0
    %980 = vmatpush1.msra.mxu0 0.0
    %981 = vmatprep.subr.mxu0 0.0
    %982 = vmatpush1.msra.mxu0 0.0
    %983 = vmatprep.subr.mxu0 0.0
    %984 = vmatpush1.msra.mxu0 0.0
    %985 = vmatprep.subr.mxu0 0.0
    %986 = vmatpush1.msra.mxu0 0.0
    %987 = vmatprep.subr.mxu0 0.0
    %988 = vmatpush1.msra.mxu0 0.0
    %989 = vmatprep.subr.mxu0 0.0
    %990 = vmatpush1.msra.mxu0 0.0
    %991 = vmatprep.subr.mxu0 0.0
    %992 = vmatpush1.msra.mxu0 0.0
    %993 = vmatprep.subr.mxu0 0.0
    %994 = vmatpush1.msra.mxu0 0.0
    %995 = vmatprep.subr.mxu0 0.0
    %996 = vmatpush1.msra.mxu0 0.0
    %997 = vmatprep.subr.mxu0 0.0
    %998 = vmatpush1.msra.mxu0 0.0
    %999 = vmatprep.subr.mxu0 0.0
    %1000 = vmatpush1.msra.mxu0 0.0
    %1001 = vmatprep.subr.mxu0 0.0
    %1002 = vmatpush1.msra.mxu0 0.0
    %1003 = vmatprep.subr.mxu0 0.0
    %1004 = vmatpush1.msra.mxu0 0.0
    %1005 = vmatprep.subr.mxu0 0.0
    %1006 = vmatpush1.msra.mxu0 0.0
    %1007 = vmatprep.subr.mxu0 0.0
    %1008 = vmatpush1.msra.mxu0 0.0
    %1009 = vmatprep.subr.mxu0 0.0
    %1010 = vmatpush1.msra.mxu0 0.0
    %1011 = vmatprep.mubr.f32.mxu0 0.0
    %1012 = vmatmul.mubr.f32.gmra.mrb[0].mxu0 0.0
    %v1013 = vpop.f32.mrb[0].mxu0
    %v1014 = vadd.f32 0.0, %v1013
    %v1015 = vpop.f32.mrb[0].mxu0
    %v1016 = vadd.f32 0.0, %v1015
    %1017 = vdwg.mxu0
    %1018 = vmatprep.subr.mxu0 %v886
    %1019 = vmatpush1.msra.mxu0 %v885
    %1020 = vmatprep.subr.mxu0 %v890
    %1021 = vmatpush1.msra.mxu0 %v889
    %1022 = vmatprep.subr.mxu0 %v894
    %1023 = vmatpush1.msra.mxu0 %v893
    %1024 = vmatprep.subr.mxu0 %v898
    %1025 = vmatpush1.msra.mxu0 %v897
    %1026 = vmatprep.subr.mxu0 %v902
    %1027 = vmatpush1.msra.mxu0 %v901
    %1028 = vmatprep.subr.mxu0 %v906
    %1029 = vmatpush1.msra.mxu0 %v905
    %1030 = vmatprep.subr.mxu0 %v910
    %1031 = vmatpush1.msra.mxu0 %v909
    %1032 = vmatprep.subr.mxu0 %v914
    %1033 = vmatpush1.msra.mxu0 %v913
    %1034 = vmatprep.subr.mxu0 %v918
    %1035 = vmatpush1.msra.mxu0 %v917
    %1036 = vmatprep.subr.mxu0 %v922
    %1037 = vmatpush1.msra.mxu0 %v921
    %1038 = vmatprep.subr.mxu0 %v926
    %1039 = vmatpush1.msra.mxu0 %v925
    %1040 = vmatprep.subr.mxu0 %v930
    %1041 = vmatpush1.msra.mxu0 %v929
    %1042 = vmatprep.subr.mxu0 %v934
    %1043 = vmatpush1.msra.mxu0 %v933
    %1044 = vmatprep.subr.mxu0 %v938
    %1045 = vmatpush1.msra.mxu0 %v937
    %1046 = vmatprep.subr.mxu0 %v942
    %1047 = vmatpush1.msra.mxu0 %v941
    %1048 = vmatprep.subr.mxu0 %v946
    %1049 = vmatpush1.msra.mxu0 %v945
    %1050 = vmatprep.subr.mxu0 0.0
    %1051 = vmatpush1.msra.mxu0 0.0
    %1052 = vmatprep.subr.mxu0 0.0
    %1053 = vmatpush1.msra.mxu0 0.0
    %1054 = vmatprep.subr.mxu0 0.0
    %1055 = vmatpush1.msra.mxu0 0.0
    %1056 = vmatprep.subr.mxu0 0.0
    %1057 = vmatpush1.msra.mxu0 0.0
    %1058 = vmatprep.subr.mxu0 0.0
    %1059 = vmatpush1.msra.mxu0 0.0
    %1060 = vmatprep.subr.mxu0 0.0
    %1061 = vmatpush1.msra.mxu0 0.0
    %1062 = vmatprep.subr.mxu0 0.0
    %1063 = vmatpush1.msra.mxu0 0.0
    %1064 = vmatprep.subr.mxu0 0.0
    %1065 = vmatpush1.msra.mxu0 0.0
    %1066 = vmatprep.subr.mxu0 0.0
    %1067 = vmatpush1.msra.mxu0 0.0
    %1068 = vmatprep.subr.mxu0 0.0
    %1069 = vmatpush1.msra.mxu0 0.0
    %1070 = vmatprep.subr.mxu0 0.0
    %1071 = vmatpush1.msra.mxu0 0.0
    %1072 = vmatprep.subr.mxu0 0.0
    %1073 = vmatpush1.msra.mxu0 0.0
    %1074 = vmatprep.subr.mxu0 0.0
    %1075 = vmatpush1.msra.mxu0 0.0
    %1076 = vmatprep.subr.mxu0 0.0
    %1077 = vmatpush1.msra.mxu0 0.0
    %1078 = vmatprep.subr.mxu0 0.0
    %1079 = vmatpush1.msra.mxu0 0.0
    %1080 = vmatprep.subr.mxu0 0.0
    %1081 = vmatpush1.msra.mxu0 0.0
    %1082 = vmatprep.mubr.f32.mxu0 0.0
    %1083 = vmatmul.mubr.f32.gmra.mrb[0].mxu0 0.0
    %v1084 = vpop.f32.mrb[0].mxu0
    %v1085 = vadd.f32 0.0, %v1084
    %v1086 = vpop.f32.mrb[0].mxu0
    %v1087 = vadd.f32 0.0, %v1086
    %1088 = vdwg.mxu0
    %v1093 = vrot.slane %v1014, 1
    %v1094 = vrot.slane %v1016, 1
    %v1095 = vrot.slane %v1085, 1
    %v1096 = vrot.slane %v1087, 1
    %v1105 = vadd.f32 %v796, %v1014
    %v1106 = vadd.f32 %v798, %v1016
    %v1107 = vadd.f32 %v873, %v1085
    %v1108 = vadd.f32 %v875, %v1087
    %v1109 = vadd.f32 %v802, %v1093
    %v1110 = vadd.f32 %v804, %v1094
    %v1111 = vadd.f32 %v879, %v1095
    %v1112 = vadd.f32 %v881, %v1096
    %v1113 = vxor.u32 %v1105, 2147483648
    %v1114 = vxor.u32 %v1109, 2147483648
    %v1115 = vmul.f32 %v1113, 1.442695
    %v1116 = vpow.pop %v1115
    %v1117 = vmul.f32 %v1114, 1.442695
    %v1118 = vpow.pop %v1117
    %v1119 = vadd.f32 %v1116, 1.0
    %v1120 = vadd.f32 %v1118, 1.0
    %v1121 = vrcp.pop %v1119
    %v1122 = vmul.f32 1.0, %v1121
    %v1123 = vrcp.pop %v1120
    %v1124 = vmul.f32 1.0, %v1123
    %v1125 = vxor.u32 %v1106, 2147483648
    %v1126 = vxor.u32 %v1110, 2147483648
    %v1127 = vmul.f32 %v1125, 1.442695
    %v1128 = vpow.pop %v1127
    %v1129 = vmul.f32 %v1126, 1.442695
    %v1130 = vpow.pop %v1129
    %v1131 = vadd.f32 %v1128, 1.0
    %v1132 = vadd.f32 %v1130, 1.0
    %v1133 = vrcp.pop %v1131
    %v1134 = vmul.f32 1.0, %v1133
    %v1135 = vrcp.pop %v1132
    %v1136 = vmul.f32 1.0, %v1135
    %v1137 = vtanh.pop %v1107
    %v1138 = vtanh.pop %v1111
    %v1139 = vxor.u32 %v1108, 2147483648
    %v1140 = vxor.u32 %v1112, 2147483648
    %v1141 = vmul.f32 %v1139, 1.442695
    %v1142 = vpow.pop %v1141
    %v1143 = vmul.f32 %v1140, 1.442695
    %v1144 = vpow.pop %v1143
    %v1145 = vadd.f32 %v1142, 1.0
    %v1146 = vadd.f32 %v1144, 1.0
    %v1147 = vrcp.pop %v1145
    %v1148 = vmul.f32 1.0, %v1147
    %v1149 = vrcp.pop %v1146
    %v1150 = vmul.f32 1.0, %v1149
    %v1151 = vmul.f32 %v1134, 0.0
    %v1152 = vmul.f32 %v1136, 0.0
    %v1153 = vmul.f32 %v1122, %v1137
    %v1154 = vmul.f32 %v1124, %v1138
    %v1155 = vadd.f32 %v1151, %v1153
    %v1156 = vadd.f32 %v1152, %v1154
    %v1157 = vtanh.pop %v1155
    %v1158 = vtanh.pop %v1156
    %v1159 = vmul.f32 %v1148, %v1157
    %v1160 = vmul.f32 %v1150, %v1158
    %v1163 = vrot.slane %v1160, 7
    %vm1164 = vcmask 1041409
    %v1165 = vsel %vm1164, %v1163, %v1159
    %1167 = vmatprep.subr.mxu0 %v884
    %1168 = vmatpush1.msra.mxu0 %v883
    %1169 = vmatprep.subr.mxu0 %v888
    %1170 = vmatpush1.msra.mxu0 %v887
    %1171 = vmatprep.subr.mxu0 %v892
    %1172 = vmatpush1.msra.mxu0 %v891
    %1173 = vmatprep.subr.mxu0 %v896
    %1174 = vmatpush1.msra.mxu0 %v895
    %1175 = vmatprep.subr.mxu0 %v900
    %1176 = vmatpush1.msra.mxu0 %v899
    %1177 = vmatprep.subr.mxu0 %v904
    %1178 = vmatpush1.msra.mxu0 %v903
    %1179 = vmatprep.subr.mxu0 %v908
    %1180 = vmatpush1.msra.mxu0 %v907
    %1181 = vmatprep.subr.mxu0 %v912
    %1182 = vmatpush1.msra.mxu0 %v911
    %1183 = vmatprep.subr.mxu0 %v916
    %1184 = vmatpush1.msra.mxu0 %v915
    %1185 = vmatprep.subr.mxu0 %v920
    %1186 = vmatpush1.msra.mxu0 %v919
    %1187 = vmatprep.subr.mxu0 %v924
    %1188 = vmatpush1.msra.mxu0 %v923
    %1189 = vmatprep.subr.mxu0 %v928
    %1190 = vmatpush1.msra.mxu0 %v927
    %1191 = vmatprep.subr.mxu0 %v932
    %1192 = vmatpush1.msra.mxu0 %v931
    %1193 = vmatprep.subr.mxu0 %v936
    %1194 = vmatpush1.msra.mxu0 %v935
    %1195 = vmatprep.subr.mxu0 %v940
    %1196 = vmatpush1.msra.mxu0 %v939
    %1197 = vmatprep.subr.mxu0 %v944
    %1198 = vmatpush1.msra.mxu0 %v943
    %1199 = vmatprep.subr.mxu0 0.0
    %1200 = vmatpush1.msra.mxu0 0.0
    %1201 = vmatprep.subr.mxu0 0.0
    %1202 = vmatpush1.msra.mxu0 0.0
    %1203 = vmatprep.subr.mxu0 0.0
    %1204 = vmatpush1.msra.mxu0 0.0
    %1205 = vmatprep.subr.mxu0 0.0
    %1206 = vmatpush1.msra.mxu0 0.0
    %1207 = vmatprep.subr.mxu0 0.0
    %1208 = vmatpush1.msra.mxu0 0.0
    %1209 = vmatprep.subr.mxu0 0.0
    %1210 = vmatpush1.msra.mxu0 0.0
    %1211 = vmatprep.subr.mxu0 0.0
    %1212 = vmatpush1.msra.mxu0 0.0
    %1213 = vmatprep.subr.mxu0 0.0
    %1214 = vmatpush1.msra.mxu0 0.0
    %1215 = vmatprep.subr.mxu0 0.0
    %1216 = vmatpush1.msra.mxu0 0.0
    %1217 = vmatprep.subr.mxu0 0.0
    %1218 = vmatpush1.msra.mxu0 0.0
    %1219 = vmatprep.subr.mxu0 0.0
    %1220 = vmatpush1.msra.mxu0 0.0
    %1221 = vmatprep.subr.mxu0 0.0
    %1222 = vmatpush1.msra.mxu0 0.0
    %1223 = vmatprep.subr.mxu0 0.0
    %1224 = vmatpush1.msra.mxu0 0.0
    %1225 = vmatprep.subr.mxu0 0.0
    %1226 = vmatpush1.msra.mxu0 0.0
    %1227 = vmatprep.subr.mxu0 0.0
    %1228 = vmatpush1.msra.mxu0 0.0
    %1229 = vmatprep.subr.mxu0 0.0
    %1230 = vmatpush1.msra.mxu0 0.0
    %1231 = vmatprep.mubr.f32.mxu0 0.0
    %1232 = vmatmul.mubr.f32.gmra.mrb[0].mxu0 %v1165
    %v1233 = vpop.f32.mrb[0].mxu0
    %v1234 = vadd.f32 0.0, %v1233
    %v1235 = vpop.f32.mrb[0].mxu0
    %v1236 = vadd.f32 0.0, %v1235
    %1237 = vdwg.mxu0
    %1238 = vmatprep.subr.mxu0 %v886
    %1239 = vmatpush1.msra.mxu0 %v885
    %1240 = vmatprep.subr.mxu0 %v890
    %1241 = vmatpush1.msra.mxu0 %v889
    %1242 = vmatprep.subr.mxu0 %v894
    %1243 = vmatpush1.msra.mxu0 %v893
    %1244 = vmatprep.subr.mxu0 %v898
    %1245 = vmatpush1.msra.mxu0 %v897
    %1246 = vmatprep.subr.mxu0 %v902
    %1247 = vmatpush1.msra.mxu0 %v901
    %1248 = vmatprep.subr.mxu0 %v906
    %1249 = vmatpush1.msra.mxu0 %v905
    %1250 = vmatprep.subr.mxu0 %v910
    %1251 = vmatpush1.msra.mxu0 %v909
    %1252 = vmatprep.subr.mxu0 %v914
    %1253 = vmatpush1.msra.mxu0 %v913
    %1254 = vmatprep.subr.mxu0 %v918
    %1255 = vmatpush1.msra.mxu0 %v917
    %1256 = vmatprep.subr.mxu0 %v922
    %1257 = vmatpush1.msra.mxu0 %v921
    %1258 = vmatprep.subr.mxu0 %v926
    %1259 = vmatpush1.msra.mxu0 %v925
    %1260 = vmatprep.subr.mxu0 %v930
    %1261 = vmatpush1.msra.mxu0 %v929
    %1262 = vmatprep.subr.mxu0 %v934
    %1263 = vmatpush1.msra.mxu0 %v933
    %1264 = vmatprep.subr.mxu0 %v938
    %1265 = vmatpush1.msra.mxu0 %v937
    %1266 = vmatprep.subr.mxu0 %v942
    %1267 = vmatpush1.msra.mxu0 %v941
    %1268 = vmatprep.subr.mxu0 %v946
    %1269 = vmatpush1.msra.mxu0 %v945
    %1270 = vmatprep.subr.mxu0 0.0
    %1271 = vmatpush1.msra.mxu0 0.0
    %1272 = vmatprep.subr.mxu0 0.0
    %1273 = vmatpush1.msra.mxu0 0.0
    %1274 = vmatprep.subr.mxu0 0.0
    %1275 = vmatpush1.msra.mxu0 0.0
    %1276 = vmatprep.subr.mxu0 0.0
    %1277 = vmatpush1.msra.mxu0 0.0
    %1278 = vmatprep.subr.mxu0 0.0
    %1279 = vmatpush1.msra.mxu0 0.0
    %1280 = vmatprep.subr.mxu0 0.0
    %1281 = vmatpush1.msra.mxu0 0.0
    %1282 = vmatprep.subr.mxu0 0.0
    %1283 = vmatpush1.msra.mxu0 0.0
    %1284 = vmatprep.subr.mxu0 0.0
    %1285 = vmatpush1.msra.mxu0 0.0
    %1286 = vmatprep.subr.mxu0 0.0
    %1287 = vmatpush1.msra.mxu0 0.0
    %1288 = vmatprep.subr.mxu0 0.0
    %1289 = vmatpush1.msra.mxu0 0.0
    %1290 = vmatprep.subr.mxu0 0.0
    %1291 = vmatpush1.msra.mxu0 0.0
    %1292 = vmatprep.subr.mxu0 0.0
    %1293 = vmatpush1.msra.mxu0 0.0
    %1294 = vmatprep.subr.mxu0 0.0
    %1295 = vmatpush1.msra.mxu0 0.0
    %1296 = vmatprep.subr.mxu0 0.0
    %1297 = vmatpush1.msra.mxu0 0.0
    %1298 = vmatprep.subr.mxu0 0.0
    %1299 = vmatpush1.msra.mxu0 0.0
    %1300 = vmatprep.subr.mxu0 0.0
    %1301 = vmatpush1.msra.mxu0 0.0
    %1302 = vmatprep.mubr.f32.mxu0 0.0
    %1303 = vmatmul.mubr.f32.gmra.mrb[0].mxu0 %v1165
    %v1304 = vpop.f32.mrb[0].mxu0
    %v1305 = vadd.f32 0.0, %v1304
    %v1306 = vpop.f32.mrb[0].mxu0
    %v1307 = vadd.f32 0.0, %v1306
    %1308 = vdwg.mxu0
    %v1313 = vrot.slane %v1234, 7
    %v1314 = vrot.slane %v1236, 7
    %v1315 = vrot.slane %v1305, 7
    %v1316 = vrot.slane %v1307, 7
    %v1325 = vadd.f32 %v796, %v1313
    %v1326 = vadd.f32 %v798, %v1314
    %v1327 = vadd.f32 %v873, %v1315
    %v1328 = vadd.f32 %v875, %v1316
    %v1329 = vadd.f32 %v802, %v1234
    %v1330 = vadd.f32 %v804, %v1236
    %v1331 = vadd.f32 %v879, %v1305
    %v1332 = vadd.f32 %v881, %v1307
    %v1333 = vxor.u32 %v1325, 2147483648
    %v1334 = vxor.u32 %v1329, 2147483648
    %v1335 = vmul.f32 %v1333, 1.442695
    %v1336 = vpow.pop %v1335
    %v1337 = vmul.f32 %v1334, 1.442695
    %v1338 = vpow.pop %v1337
    %v1339 = vadd.f32 %v1336, 1.0
    %v1340 = vadd.f32 %v1338, 1.0
    %v1341 = vrcp.pop %v1339
    %v1342 = vmul.f32 1.0, %v1341
    %v1343 = vrcp.pop %v1340
    %v1344 = vmul.f32 1.0, %v1343
    %v1345 = vxor.u32 %v1326, 2147483648
    %v1346 = vxor.u32 %v1330, 2147483648
    %v1347 = vmul.f32 %v1345, 1.442695
    %v1348 = vpow.pop %v1347
    %v1349 = vmul.f32 %v1346, 1.442695
    %v1350 = vpow.pop %v1349
    %v1351 = vadd.f32 %v1348, 1.0
    %v1352 = vadd.f32 %v1350, 1.0
    %v1353 = vrcp.pop %v1351
    %v1354 = vmul.f32 1.0, %v1353
    %v1355 = vrcp.pop %v1352
    %v1356 = vmul.f32 1.0, %v1355
    %v1357 = vtanh.pop %v1327
    %v1358 = vtanh.pop %v1331
    %v1359 = vxor.u32 %v1328, 2147483648
    %v1360 = vxor.u32 %v1332, 2147483648
    %v1361 = vmul.f32 %v1359, 1.442695
    %v1362 = vpow.pop %v1361
    %v1363 = vmul.f32 %v1360, 1.442695
    %v1364 = vpow.pop %v1363
    %v1365 = vadd.f32 %v1362, 1.0
    %v1366 = vadd.f32 %v1364, 1.0
    %v1367 = vrcp.pop %v1365
    %v1368 = vmul.f32 1.0, %v1367
    %v1369 = vrcp.pop %v1366
    %v1370 = vmul.f32 1.0, %v1369
    %v1373 = vrot.slane %v1155, 7
    %v1374 = vrot.slane %v1156, 7
    %v1377 = vmul.f32 %v1354, %v1373
    %v1378 = vmul.f32 %v1356, %v1374
    %v1379 = vmul.f32 %v1342, %v1357
    %v1380 = vmul.f32 %v1344, %v1358
    %v1381 = vadd.f32 %v1377, %v1379
    %v1382 = vadd.f32 %v1378, %v1380
    %v1383 = vtanh.pop %v1381
    %v1384 = vtanh.pop %v1382
    %v1385 = vmul.f32 %v1368, %v1383
    %v1386 = vmul.f32 %v1370, %v1384
    %v1389 = vrot.slane %v1385, 1
    %v1390 = vsel %vm1164, %v1386, %v1389
    %1392 = vmatprep.subr.mxu0 %v884
    %1393 = vmatpush1.msra.mxu0 %v883
    %1394 = vmatprep.subr.mxu0 %v888
    %1395 = vmatpush1.msra.mxu0 %v887
    %1396 = vmatprep.subr.mxu0 %v892
    %1397 = vmatpush1.msra.mxu0 %v891
    %1398 = vmatprep.subr.mxu0 %v896
    %1399 = vmatpush1.msra.mxu0 %v895
    %1400 = vmatprep.subr.mxu0 %v900
    %1401 = vmatpush1.msra.mxu0 %v899
    %1402 = vmatprep.subr.mxu0 %v904
    %1403 = vmatpush1.msra.mxu0 %v903
    %1404 = vmatprep.subr.mxu0 %v908
    %1405 = vmatpush1.msra.mxu0 %v907
    %1406 = vmatprep.subr.mxu0 %v912
    %1407 = vmatpush1.msra.mxu0 %v911
    %1408 = vmatprep.subr.mxu0 %v916
    %1409 = vmatpush1.msra.mxu0 %v915
    %1410 = vmatprep.subr.mxu0 %v920
    %1411 = vmatpush1.msra.mxu0 %v919
    %1412 = vmatprep.subr.mxu0 %v924
    %1413 = vmatpush1.msra.mxu0 %v923
    %1414 = vmatprep.subr.mxu0 %v928
    %1415 = vmatpush1.msra.mxu0 %v927
    %1416 = vmatprep.subr.mxu0 %v932
    %1417 = vmatpush1.msra.mxu0 %v931
    %1418 = vmatprep.subr.mxu0 %v936
    %1419 = vmatpush1.msra.mxu0 %v935
    %1420 = vmatprep.subr.mxu0 %v940
    %1421 = vmatpush1.msra.mxu0 %v939
    %1422 = vmatprep.subr.mxu0 %v944
    %1423 = vmatpush1.msra.mxu0 %v943
    %1424 = vmatprep.subr.mxu0 0.0
    %1425 = vmatpush1.msra.mxu0 0.0
    %1426 = vmatprep.subr.mxu0 0.0
    %1427 = vmatpush1.msra.mxu0 0.0
    %1428 = vmatprep.subr.mxu0 0.0
    %1429 = vmatpush1.msra.mxu0 0.0
    %1430 = vmatprep.subr.mxu0 0.0
    %1431 = vmatpush1.msra.mxu0 0.0
    %1432 = vmatprep.subr.mxu0 0.0
    %1433 = vmatpush1.msra.mxu0 0.0
    %1434 = vmatprep.subr.mxu0 0.0
    %1435 = vmatpush1.msra.mxu0 0.0
    %1436 = vmatprep.subr.mxu0 0.0
    %1437 = vmatpush1.msra.mxu0 0.0
    %1438 = vmatprep.subr.mxu0 0.0
    %1439 = vmatpush1.msra.mxu0 0.0
    %1440 = vmatprep.subr.mxu0 0.0
    %1441 = vmatpush1.msra.mxu0 0.0
    %1442 = vmatprep.subr.mxu0 0.0
    %1443 = vmatpush1.msra.mxu0 0.0
    %1444 = vmatprep.subr.mxu0 0.0
    %1445 = vmatpush1.msra.mxu0 0.0
    %1446 = vmatprep.subr.mxu0 0.0
    %1447 = vmatpush1.msra.mxu0 0.0
    %1448 = vmatprep.subr.mxu0 0.0
    %1449 = vmatpush1.msra.mxu0 0.0
    %1450 = vmatprep.subr.mxu0 0.0
    %1451 = vmatpush1.msra.mxu0 0.0
    %1452 = vmatprep.subr.mxu0 0.0
    %1453 = vmatpush1.msra.mxu0 0.0
    %1454 = vmatprep.subr.mxu0 0.0
    %1455 = vmatpush1.msra.mxu0 0.0
    %1456 = vmatprep.mubr.f32.mxu0 0.0
    %1457 = vmatmul.mubr.f32.gmra.mrb[0].mxu0 %v1390
    %v1458 = vpop.f32.mrb[0].mxu0
    %v1459 = vadd.f32 0.0, %v1458
    %v1460 = vpop.f32.mrb[0].mxu0
    %v1461 = vadd.f32 0.0, %v1460
    %1462 = vdwg.mxu0
    %1463 = vmatprep.subr.mxu0 %v886
    %1464 = vmatpush1.msra.mxu0 %v885
    %1465 = vmatprep.subr.mxu0 %v890
    %1466 = vmatpush1.msra.mxu0 %v889
    %1467 = vmatprep.subr.mxu0 %v894
    %1468 = vmatpush1.msra.mxu0 %v893
    %1469 = vmatprep.subr.mxu0 %v898
    %1470 = vmatpush1.msra.mxu0 %v897
    %1471 = vmatprep.subr.mxu0 %v902
    %1472 = vmatpush1.msra.mxu0 %v901
    %1473 = vmatprep.subr.mxu0 %v906
    %1474 = vmatpush1.msra.mxu0 %v905
    %1475 = vmatprep.subr.mxu0 %v910
    %1476 = vmatpush1.msra.mxu0 %v909
    %1477 = vmatprep.subr.mxu0 %v914
    %1478 = vmatpush1.msra.mxu0 %v913
    %1479 = vmatprep.subr.mxu0 %v918
    %1480 = vmatpush1.msra.mxu0 %v917
    %1481 = vmatprep.subr.mxu0 %v922
    %1482 = vmatpush1.msra.mxu0 %v921
    %1483 = vmatprep.subr.mxu0 %v926
    %1484 = vmatpush1.msra.mxu0 %v925
    %1485 = vmatprep.subr.mxu0 %v930
    %1486 = vmatpush1.msra.mxu0 %v929
    %1487 = vmatprep.subr.mxu0 %v934
    %1488 = vmatpush1.msra.mxu0 %v933
    %1489 = vmatprep.subr.mxu0 %v938
    %1490 = vmatpush1.msra.mxu0 %v937
    %1491 = vmatprep.subr.mxu0 %v942
    %1492 = vmatpush1.msra.mxu0 %v941
    %1493 = vmatprep.subr.mxu0 %v946
    %1494 = vmatpush1.msra.mxu0 %v945
    %1495 = vmatprep.subr.mxu0 0.0
    %1496 = vmatpush1.msra.mxu0 0.0
    %1497 = vmatprep.subr.mxu0 0.0
    %1498 = vmatpush1.msra.mxu0 0.0
    %1499 = vmatprep.subr.mxu0 0.0
    %1500 = vmatpush1.msra.mxu0 0.0
    %1501 = vmatprep.subr.mxu0 0.0
    %1502 = vmatpush1.msra.mxu0 0.0
    %1503 = vmatprep.subr.mxu0 0.0
    %1504 = vmatpush1.msra.mxu0 0.0
    %1505 = vmatprep.subr.mxu0 0.0
    %1506 = vmatpush1.msra.mxu0 0.0
    %1507 = vmatprep.subr.mxu0 0.0
    %1508 = vmatpush1.msra.mxu0 0.0
    %1509 = vmatprep.subr.mxu0 0.0
    %1510 = vmatpush1.msra.mxu0 0.0
    %1511 = vmatprep.subr.mxu0 0.0
    %1512 = vmatpush1.msra.mxu0 0.0
    %1513 = vmatprep.subr.mxu0 0.0
    %1514 = vmatpush1.msra.mxu0 0.0
    %1515 = vmatprep.subr.mxu0 0.0
    %1516 = vmatpush1.msra.mxu0 0.0
    %1517 = vmatprep.subr.mxu0 0.0
    %1518 = vmatpush1.msra.mxu0 0.0
    %1519 = vmatprep.subr.mxu0 0.0
    %1520 = vmatpush1.msra.mxu0 0.0
    %1521 = vmatprep.subr.mxu0 0.0
    %1522 = vmatpush1.msra.mxu0 0.0
    %1523 = vmatprep.subr.mxu0 0.0
    %1524 = vmatpush1.msra.mxu0 0.0
    %1525 = vmatprep.subr.mxu0 0.0
    %1526 = vmatpush1.msra.mxu0 0.0
    %1527 = vmatprep.mubr.f32.mxu0 0.0
    %1528 = vmatmul.mubr.f32.gmra.mrb[0].mxu0 %v1390
    %v1529 = vpop.f32.mrb[0].mxu0
    %v1530 = vadd.f32 0.0, %v1529
    %v1531 = vpop.f32.mrb[0].mxu0
    %v1532 = vadd.f32 0.0, %v1531
    %1533 = vdwg.mxu0
    %v1538 = vrot.slane %v1459, 6
    %v1539 = vrot.slane %v1461, 6
    %v1540 = vrot.slane %v1530, 6
    %v1541 = vrot.slane %v1532, 6
    %v1542 = vrot.slane %v1459, 7
    %v1543 = vrot.slane %v1461, 7
    %v1544 = vrot.slane %v1530, 7
    %v1545 = vrot.slane %v1532, 7
    %v1554 = vadd.f32 %v796, %v1538
    %v1555 = vadd.f32 %v798, %v1539
    %v1556 = vadd.f32 %v873, %v1540
    %v1557 = vadd.f32 %v875, %v1541
    %v1558 = vadd.f32 %v802, %v1542
    %v1559 = vadd.f32 %v804, %v1543
    %v1560 = vadd.f32 %v879, %v1544
    %v1561 = vadd.f32 %v881, %v1545
    %v1562 = vxor.u32 %v1554, 2147483648
    %v1563 = vxor.u32 %v1558, 2147483648
    %v1564 = vmul.f32 %v1562, 1.442695
    %v1565 = vpow.pop %v1564
    %v1566 = vmul.f32 %v1563, 1.442695
    %v1567 = vpow.pop %v1566
    %v1568 = vadd.f32 %v1565, 1.0
    %v1569 = vadd.f32 %v1567, 1.0
    %v1570 = vrcp.pop %v1568
    %v1571 = vmul.f32 1.0, %v1570
    %v1572 = vrcp.pop %v1569
    %v1573 = vmul.f32 1.0, %v1572
    %v1574 = vxor.u32 %v1555, 2147483648
    %v1575 = vxor.u32 %v1559, 2147483648
    %v1576 = vmul.f32 %v1574, 1.442695
    %v1577 = vpow.pop %v1576
    %v1578 = vmul.f32 %v1575, 1.442695
    %v1579 = vpow.pop %v1578
    %v1580 = vadd.f32 %v1577, 1.0
    %v1581 = vadd.f32 %v1579, 1.0
    %v1582 = vrcp.pop %v1580
    %v1583 = vmul.f32 1.0, %v1582
    %v1584 = vrcp.pop %v1581
    %v1585 = vmul.f32 1.0, %v1584
    %v1586 = vtanh.pop %v1556
    %v1587 = vtanh.pop %v1560
    %v1588 = vxor.u32 %v1557, 2147483648
    %v1589 = vxor.u32 %v1561, 2147483648
    %v1590 = vmul.f32 %v1588, 1.442695
    %v1591 = vpow.pop %v1590
    %v1592 = vmul.f32 %v1589, 1.442695
    %v1593 = vpow.pop %v1592
    %v1594 = vadd.f32 %v1591, 1.0
    %v1595 = vadd.f32 %v1593, 1.0
    %v1596 = vrcp.pop %v1594
    %v1597 = vmul.f32 1.0, %v1596
    %v1598 = vrcp.pop %v1595
    %v1599 = vmul.f32 1.0, %v1598
    %v1602 = vrot.slane %v1381, 7
    %v1603 = vrot.slane %v1382, 7
    %v1606 = vmul.f32 %v1583, %v1602
    %v1607 = vmul.f32 %v1585, %v1603
    %v1608 = vmul.f32 %v1571, %v1586
    %v1609 = vmul.f32 %v1573, %v1587
    %v1610 = vadd.f32 %v1606, %v1608
    %v1611 = vadd.f32 %v1607, %v1609
    %v1612 = vtanh.pop %v1610
    %v1613 = vtanh.pop %v1611
    %v1614 = vmul.f32 %v1597, %v1612
    %v1615 = vmul.f32 %v1599, %v1613
    %v1618 = vrot.slane %v1614, 2
    %v1619 = vrot.slane %v1615, 1
    %v1620 = vsel %vm1164, %v1619, %v1618
    %1622 = vmatprep.subr.mxu0 %v884
    %1623 = vmatpush1.msra.mxu0 %v883
    %1624 = vmatprep.subr.mxu0 %v888
    %1625 = vmatpush1.msra.mxu0 %v887
    %1626 = vmatprep.subr.mxu0 %v892
    %1627 = vmatpush1.msra.mxu0 %v891
    %1628 = vmatprep.subr.mxu0 %v896
    %1629 = vmatpush1.msra.mxu0 %v895
    %1630 = vmatprep.subr.mxu0 %v900
    %1631 = vmatpush1.msra.mxu0 %v899
    %1632 = vmatprep.subr.mxu0 %v904
    %1633 = vmatpush1.msra.mxu0 %v903
    %1634 = vmatprep.subr.mxu0 %v908
    %1635 = vmatpush1.msra.mxu0 %v907
    %1636 = vmatprep.subr.mxu0 %v912
    %1637 = vmatpush1.msra.mxu0 %v911
    %1638 = vmatprep.subr.mxu0 %v916
    %1639 = vmatpush1.msra.mxu0 %v915
    %1640 = vmatprep.subr.mxu0 %v920
    %1641 = vmatpush1.msra.mxu0 %v919
    %1642 = vmatprep.subr.mxu0 %v924
    %1643 = vmatpush1.msra.mxu0 %v923
    %1644 = vmatprep.subr.mxu0 %v928
    %1645 = vmatpush1.msra.mxu0 %v927
    %1646 = vmatprep.subr.mxu0 %v932
    %1647 = vmatpush1.msra.mxu0 %v931
    %1648 = vmatprep.subr.mxu0 %v936
    %1649 = vmatpush1.msra.mxu0 %v935
    %1650 = vmatprep.subr.mxu0 %v940
    %1651 = vmatpush1.msra.mxu0 %v939
    %1652 = vmatprep.subr.mxu0 %v944
    %1653 = vmatpush1.msra.mxu0 %v943
    %1654 = vmatprep.subr.mxu0 0.0
    %1655 = vmatpush1.msra.mxu0 0.0
    %1656 = vmatprep.subr.mxu0 0.0
    %1657 = vmatpush1.msra.mxu0 0.0
    %1658 = vmatprep.subr.mxu0 0.0
    %1659 = vmatpush1.msra.mxu0 0.0
    %1660 = vmatprep.subr.mxu0 0.0
    %1661 = vmatpush1.msra.mxu0 0.0
    %1662 = vmatprep.subr.mxu0 0.0
    %1663 = vmatpush1.msra.mxu0 0.0
    %1664 = vmatprep.subr.mxu0 0.0
    %1665 = vmatpush1.msra.mxu0 0.0
    %1666 = vmatprep.subr.mxu0 0.0
    %1667 = vmatpush1.msra.mxu0 0.0
    %1668 = vmatprep.subr.mxu0 0.0
    %1669 = vmatpush1.msra.mxu0 0.0
    %1670 = vmatprep.subr.mxu0 0.0
    %1671 = vmatpush1.msra.mxu0 0.0
    %1672 = vmatprep.subr.mxu0 0.0
    %1673 = vmatpush1.msra.mxu0 0.0
    %1674 = vmatprep.subr.mxu0 0.0
    %1675 = vmatpush1.msra.mxu0 0.0
    %1676 = vmatprep.subr.mxu0 0.0
    %1677 = vmatpush1.msra.mxu0 0.0
    %1678 = vmatprep.subr.mxu0 0.0
    %1679 = vmatpush1.msra.mxu0 0.0
    %1680 = vmatprep.subr.mxu0 0.0
    %1681 = vmatpush1.msra.mxu0 0.0
    %1682 = vmatprep.subr.mxu0 0.0
    %1683 = vmatpush1.msra.mxu0 0.0
    %1684 = vmatprep.subr.mxu0 0.0
    %1685 = vmatpush1.msra.mxu0 0.0
    %1686 = vmatprep.mubr.f32.mxu0 0.0
    %1687 = vmatmul.mubr.f32.gmra.mrb[0].mxu0 %v1620
    %v1688 = vpop.f32.mrb[0].mxu0
    %v1689 = vadd.f32 0.0, %v1688
    %v1690 = vpop.f32.mrb[0].mxu0
    %v1691 = vadd.f32 0.0, %v1690
    %1692 = vdwg.mxu0
    %1693 = vmatprep.subr.mxu0 %v886
    %1694 = vmatpush1.msra.mxu0 %v885
    %1695 = vmatprep.subr.mxu0 %v890
    %1696 = vmatpush1.msra.mxu0 %v889
    %1697 = vmatprep.subr.mxu0 %v894
    %1698 = vmatpush1.msra.mxu0 %v893
    %1699 = vmatprep.subr.mxu0 %v898
    %1700 = vmatpush1.msra.mxu0 %v897
    %1701 = vmatprep.subr.mxu0 %v902
    %1702 = vmatpush1.msra.mxu0 %v901
    %1703 = vmatprep.subr.mxu0 %v906
    %1704 = vmatpush1.msra.mxu0 %v905
    %1705 = vmatprep.subr.mxu0 %v910
    %1706 = vmatpush1.msra.mxu0 %v909
    %1707 = vmatprep.subr.mxu0 %v914
    %1708 = vmatpush1.msra.mxu0 %v913
    %1709 = vmatprep.subr.mxu0 %v918
    %1710 = vmatpush1.msra.mxu0 %v917
    %1711 = vmatprep.subr.mxu0 %v922
    %1712 = vmatpush1.msra.mxu0 %v921
    %1713 = vmatprep.subr.mxu0 %v926
    %1714 = vmatpush1.msra.mxu0 %v925
    %1715 = vmatprep.subr.mxu0 %v930
    %1716 = vmatpush1.msra.mxu0 %v929
    %1717 = vmatprep.subr.mxu0 %v934
    %1718 = vmatpush1.msra.mxu0 %v933
    %1719 = vmatprep.subr.mxu0 %v938
    %1720 = vmatpush1.msra.mxu0 %v937
    %1721 = vmatprep.subr.mxu0 %v942
    %1722 = vmatpush1.msra.mxu0 %v941
    %1723 = vmatprep.subr.mxu0 %v946
    %1724 = vmatpush1.msra.mxu0 %v945
    %1725 = vmatprep.subr.mxu0 0.0
    %1726 = vmatpush1.msra.mxu0 0.0
    %1727 = vmatprep.subr.mxu0 0.0
    %1728 = vmatpush1.msra.mxu0 0.0
    %1729 = vmatprep.subr.mxu0 0.0
    %1730 = vmatpush1.msra.mxu0 0.0
    %1731 = vmatprep.subr.mxu0 0.0
    %1732 = vmatpush1.msra.mxu0 0.0
    %1733 = vmatprep.subr.mxu0 0.0
    %1734 = vmatpush1.msra.mxu0 0.0
    %1735 = vmatprep.subr.mxu0 0.0
    %1736 = vmatpush1.msra.mxu0 0.0
    %1737 = vmatprep.subr.mxu0 0.0
    %1738 = vmatpush1.msra.mxu0 0.0
    %1739 = vmatprep.subr.mxu0 0.0
    %1740 = vmatpush1.msra.mxu0 0.0
    %1741 = vmatprep.subr.mxu0 0.0
    %1742 = vmatpush1.msra.mxu0 0.0
    %1743 = vmatprep.subr.mxu0 0.0
    %1744 = vmatpush1.msra.mxu0 0.0
    %1745 = vmatprep.subr.mxu0 0.0
    %1746 = vmatpush1.msra.mxu0 0.0
    %1747 = vmatprep.subr.mxu0 0.0
    %1748 = vmatpush1.msra.mxu0 0.0
    %1749 = vmatprep.subr.mxu0 0.0
    %1750 = vmatpush1.msra.mxu0 0.0
    %1751 = vmatprep.subr.mxu0 0.0
    %1752 = vmatpush1.msra.mxu0 0.0
    %1753 = vmatprep.subr.mxu0 0.0
    %1754 = vmatpush1.msra.mxu0 0.0
    %1755 = vmatprep.subr.mxu0 0.0
    %1756 = vmatpush1.msra.mxu0 0.0
    %1757 = vmatprep.mubr.f32.mxu0 0.0
    %1758 = vmatmul.mubr.f32.gmra.mrb[0].mxu0 %v1620
    %v1759 = vpop.f32.mrb[0].mxu0
    %v1760 = vadd.f32 0.0, %v1759
    %v1761 = vpop.f32.mrb[0].mxu0
    %v1762 = vadd.f32 0.0, %v1761
    %1763 = vdwg.mxu0
    %v1768 = vrot.slane %v1689, 5
    %v1769 = vrot.slane %v1691, 5
    %v1770 = vrot.slane %v1760, 5
    %v1771 = vrot.slane %v1762, 5
    %v1772 = vrot.slane %v1689, 6
    %v1773 = vrot.slane %v1691, 6
    %v1774 = vrot.slane %v1760, 6
    %v1775 = vrot.slane %v1762, 6
    %v1784 = vadd.f32 %v796, %v1768
    %v1785 = vadd.f32 %v798, %v1769
    %v1786 = vadd.f32 %v873, %v1770
    %v1787 = vadd.f32 %v875, %v1771
    %v1788 = vadd.f32 %v802, %v1772
    %v1789 = vadd.f32 %v804, %v1773
    %v1790 = vadd.f32 %v879, %v1774
    %v1791 = vadd.f32 %v881, %v1775
    %v1792 = vxor.u32 %v1784, 2147483648
    %v1793 = vxor.u32 %v1788, 2147483648
    %v1794 = vmul.f32 %v1792, 1.442695
    %v1795 = vpow.pop %v1794
    %v1796 = vmul.f32 %v1793, 1.442695
    %v1797 = vpow.pop %v1796
    %v1798 = vadd.f32 %v1795, 1.0
    %v1799 = vadd.f32 %v1797, 1.0
    %v1800 = vrcp.pop %v1798
    %v1801 = vmul.f32 1.0, %v1800
    %v1802 = vrcp.pop %v1799
    %v1803 = vmul.f32 1.0, %v1802
    %v1804 = vxor.u32 %v1785, 2147483648
    %v1805 = vxor.u32 %v1789, 2147483648
    %v1806 = vmul.f32 %v1804, 1.442695
    %v1807 = vpow.pop %v1806
    %v1808 = vmul.f32 %v1805, 1.442695
    %v1809 = vpow.pop %v1808
    %v1810 = vadd.f32 %v1807, 1.0
    %v1811 = vadd.f32 %v1809, 1.0
    %v1812 = vrcp.pop %v1810
    %v1813 = vmul.f32 1.0, %v1812
    %v1814 = vrcp.pop %v1811
    %v1815 = vmul.f32 1.0, %v1814
    %v1816 = vtanh.pop %v1786
    %v1817 = vtanh.pop %v1790
    %v1818 = vxor.u32 %v1787, 2147483648
    %v1819 = vxor.u32 %v1791, 2147483648
    %v1820 = vmul.f32 %v1818, 1.442695
    %v1821 = vpow.pop %v1820
    %v1822 = vmul.f32 %v1819, 1.442695
    %v1823 = vpow.pop %v1822
    %v1824 = vadd.f32 %v1821, 1.0
    %v1825 = vadd.f32 %v1823, 1.0
    %v1826 = vrcp.pop %v1824
    %v1827 = vmul.f32 1.0, %v1826
    %v1828 = vrcp.pop %v1825
    %v1829 = vmul.f32 1.0, %v1828
    %v1832 = vrot.slane %v1610, 7
    %v1833 = vrot.slane %v1611, 7
    %v1836 = vmul.f32 %v1813, %v1832
    %v1837 = vmul.f32 %v1815, %v1833
    %v1838 = vmul.f32 %v1801, %v1816
    %v1839 = vmul.f32 %v1803, %v1817
    %v1840 = vadd.f32 %v1836, %v1838
    %v1841 = vadd.f32 %v1837, %v1839
    %v1842 = vtanh.pop %v1840
    %v1843 = vtanh.pop %v1841
    %v1844 = vmul.f32 %v1827, %v1842
    %v1845 = vmul.f32 %v1829, %v1843
    %v1848 = vrot.slane %v1844, 3
    %v1849 = vrot.slane %v1845, 2
    %v1850 = vsel %vm1164, %v1849, %v1848
    %1852 = vmatprep.subr.mxu0 %v884
    %1853 = vmatpush1.msra.mxu0 %v883
    %1854 = vmatprep.subr.mxu0 %v888
    %1855 = vmatpush1.msra.mxu0 %v887
    %1856 = vmatprep.subr.mxu0 %v892
    %1857 = vmatpush1.msra.mxu0 %v891
    %1858 = vmatprep.subr.mxu0 %v896
    %1859 = vmatpush1.msra.mxu0 %v895
    %1860 = vmatprep.subr.mxu0 %v900
    %1861 = vmatpush1.msra.mxu0 %v899
    %1862 = vmatprep.subr.mxu0 %v904
    %1863 = vmatpush1.msra.mxu0 %v903
    %1864 = vmatprep.subr.mxu0 %v908
    %1865 = vmatpush1.msra.mxu0 %v907
    %1866 = vmatprep.subr.mxu0 %v912
    %1867 = vmatpush1.msra.mxu0 %v911
    %1868 = vmatprep.subr.mxu0 %v916
    %1869 = vmatpush1.msra.mxu0 %v915
    %1870 = vmatprep.subr.mxu0 %v920
    %1871 = vmatpush1.msra.mxu0 %v919
    %1872 = vmatprep.subr.mxu0 %v924
    %1873 = vmatpush1.msra.mxu0 %v923
    %1874 = vmatprep.subr.mxu0 %v928
    %1875 = vmatpush1.msra.mxu0 %v927
    %1876 = vmatprep.subr.mxu0 %v932
    %1877 = vmatpush1.msra.mxu0 %v931
    %1878 = vmatprep.subr.mxu0 %v936
    %1879 = vmatpush1.msra.mxu0 %v935
    %1880 = vmatprep.subr.mxu0 %v940
    %1881 = vmatpush1.msra.mxu0 %v939
    %1882 = vmatprep.subr.mxu0 %v944
    %1883 = vmatpush1.msra.mxu0 %v943
    %1884 = vmatprep.subr.mxu0 0.0
    %1885 = vmatpush1.msra.mxu0 0.0
    %1886 = vmatprep.subr.mxu0 0.0
    %1887 = vmatpush1.msra.mxu0 0.0
    %1888 = vmatprep.subr.mxu0 0.0
    %1889 = vmatpush1.msra.mxu0 0.0
    %1890 = vmatprep.subr.mxu0 0.0
    %1891 = vmatpush1.msra.mxu0 0.0
    %1892 = vmatprep.subr.mxu0 0.0
    %1893 = vmatpush1.msra.mxu0 0.0
    %1894 = vmatprep.subr.mxu0 0.0
    %1895 = vmatpush1.msra.mxu0 0.0
    %1896 = vmatprep.subr.mxu0 0.0
    %1897 = vmatpush1.msra.mxu0 0.0
    %1898 = vmatprep.subr.mxu0 0.0
    %1899 = vmatpush1.msra.mxu0 0.0
    %1900 = vmatprep.subr.mxu0 0.0
    %1901 = vmatpush1.msra.mxu0 0.0
    %1902 = vmatprep.subr.mxu0 0.0
    %1903 = vmatpush1.msra.mxu0 0.0
    %1904 = vmatprep.subr.mxu0 0.0
    %1905 = vmatpush1.msra.mxu0 0.0
    %1906 = vmatprep.subr.mxu0 0.0
    %1907 = vmatpush1.msra.mxu0 0.0
    %1908 = vmatprep.subr.mxu0 0.0
    %1909 = vmatpush1.msra.mxu0 0.0
    %1910 = vmatprep.subr.mxu0 0.0
    %1911 = vmatpush1.msra.mxu0 0.0
    %1912 = vmatprep.subr.mxu0 0.0
    %1913 = vmatpush1.msra.mxu0 0.0
    %1914 = vmatprep.subr.mxu0 0.0
    %1915 = vmatpush1.msra.mxu0 0.0
    %1916 = vmatprep.mubr.f32.mxu0 0.0
    %1917 = vmatmul.mubr.f32.gmra.mrb[0].mxu0 %v1850
    %v1918 = vpop.f32.mrb[0].mxu0
    %v1919 = vadd.f32 0.0, %v1918
    %v1920 = vpop.f32.mrb[0].mxu0
    %v1921 = vadd.f32 0.0, %v1920
    %1922 = vdwg.mxu0
    %1923 = vmatprep.subr.mxu0 %v886
    %1924 = vmatpush1.msra.mxu0 %v885
    %1925 = vmatprep.subr.mxu0 %v890
    %1926 = vmatpush1.msra.mxu0 %v889
    %1927 = vmatprep.subr.mxu0 %v894
    %1928 = vmatpush1.msra.mxu0 %v893
    %1929 = vmatprep.subr.mxu0 %v898
    %1930 = vmatpush1.msra.mxu0 %v897
    %1931 = vmatprep.subr.mxu0 %v902
    %1932 = vmatpush1.msra.mxu0 %v901
    %1933 = vmatprep.subr.mxu0 %v906
    %1934 = vmatpush1.msra.mxu0 %v905
    %1935 = vmatprep.subr.mxu0 %v910
    %1936 = vmatpush1.msra.mxu0 %v909
    %1937 = vmatprep.subr.mxu0 %v914
    %1938 = vmatpush1.msra.mxu0 %v913
    %1939 = vmatprep.subr.mxu0 %v918
    %1940 = vmatpush1.msra.mxu0 %v917
    %1941 = vmatprep.subr.mxu0 %v922
    %1942 = vmatpush1.msra.mxu0 %v921
    %1943 = vmatprep.subr.mxu0 %v926
    %1944 = vmatpush1.msra.mxu0 %v925
    %1945 = vmatprep.subr.mxu0 %v930
    %1946 = vmatpush1.msra.mxu0 %v929
    %1947 = vmatprep.subr.mxu0 %v934
    %1948 = vmatpush1.msra.mxu0 %v933
    %1949 = vmatprep.subr.mxu0 %v938
    %1950 = vmatpush1.msra.mxu0 %v937
    %1951 = vmatprep.subr.mxu0 %v942
    %1952 = vmatpush1.msra.mxu0 %v941
    %1953 = vmatprep.subr.mxu0 %v946
    %1954 = vmatpush1.msra.mxu0 %v945
    %1955 = vmatprep.subr.mxu0 0.0
    %1956 = vmatpush1.msra.mxu0 0.0
    %1957 = vmatprep.subr.mxu0 0.0
    %1958 = vmatpush1.msra.mxu0 0.0
    %1959 = vmatprep.subr.mxu0 0.0
    %1960 = vmatpush1.msra.mxu0 0.0
    %1961 = vmatprep.subr.mxu0 0.0
    %1962 = vmatpush1.msra.mxu0 0.0
    %1963 = vmatprep.subr.mxu0 0.0
    %1964 = vmatpush1.msra.mxu0 0.0
    %1965 = vmatprep.subr.mxu0 0.0
    %1966 = vmatpush1.msra.mxu0 0.0
    %1967 = vmatprep.subr.mxu0 0.0
    %1968 = vmatpush1.msra.mxu0 0.0
    %1969 = vmatprep.subr.mxu0 0.0
    %1970 = vmatpush1.msra.mxu0 0.0
    %1971 = vmatprep.subr.mxu0 0.0
    %1972 = vmatpush1.msra.mxu0 0.0
    %1973 = vmatprep.subr.mxu0 0.0
    %1974 = vmatpush1.msra.mxu0 0.0
    %1975 = vmatprep.subr.mxu0 0.0
    %1976 = vmatpush1.msra.mxu0 0.0
    %1977 = vmatprep.subr.mxu0 0.0
    %1978 = vmatpush1.msra.mxu0 0.0
    %1979 = vmatprep.subr.mxu0 0.0
    %1980 = vmatpush1.msra.mxu0 0.0
    %1981 = vmatprep.subr.mxu0 0.0
    %1982 = vmatpush1.msra.mxu0 0.0
    %1983 = vmatprep.subr.mxu0 0.0
    %1984 = vmatpush1.msra.mxu0 0.0
    %1985 = vmatprep.subr.mxu0 0.0
    %1986 = vmatpush1.msra.mxu0 0.0
    %1987 = vmatprep.mubr.f32.mxu0 0.0
    %1988 = vmatmul.mubr.f32.gmra.mrb[0].mxu0 %v1850
    %v1989 = vpop.f32.mrb[0].mxu0
    %v1990 = vadd.f32 0.0, %v1989
    %v1991 = vpop.f32.mrb[0].mxu0
    %v1992 = vadd.f32 0.0, %v1991
    %1993 = vdwg.mxu0
    %v1998 = vrot.slane %v1919, 4
    %v1999 = vrot.slane %v1921, 4
    %v2000 = vrot.slane %v1990, 4
    %v2001 = vrot.slane %v1992, 4
    %v2002 = vrot.slane %v1919, 5
    %v2003 = vrot.slane %v1921, 5
    %v2004 = vrot.slane %v1990, 5
    %v2005 = vrot.slane %v1992, 5
    %v2014 = vadd.f32 %v796, %v1998
    %v2015 = vadd.f32 %v798, %v1999
    %v2016 = vadd.f32 %v873, %v2000
    %v2017 = vadd.f32 %v875, %v2001
    %v2018 = vadd.f32 %v802, %v2002
    %v2019 = vadd.f32 %v804, %v2003
    %v2020 = vadd.f32 %v879, %v2004
    %v2021 = vadd.f32 %v881, %v2005
    %v2022 = vxor.u32 %v2014, 2147483648
    %v2023 = vxor.u32 %v2018, 2147483648
    %v2024 = vmul.f32 %v2022, 1.442695
    %v2025 = vpow.pop %v2024
    %v2026 = vmul.f32 %v2023, 1.442695
    %v2027 = vpow.pop %v2026
    %v2028 = vadd.f32 %v2025, 1.0
    %v2029 = vadd.f32 %v2027, 1.0
    %v2030 = vrcp.pop %v2028
    %v2031 = vmul.f32 1.0, %v2030
    %v2032 = vrcp.pop %v2029
    %v2033 = vmul.f32 1.0, %v2032
    %v2034 = vxor.u32 %v2015, 2147483648
    %v2035 = vxor.u32 %v2019, 2147483648
    %v2036 = vmul.f32 %v2034, 1.442695
    %v2037 = vpow.pop %v2036
    %v2038 = vmul.f32 %v2035, 1.442695
    %v2039 = vpow.pop %v2038
    %v2040 = vadd.f32 %v2037, 1.0
    %v2041 = vadd.f32 %v2039, 1.0
    %v2042 = vrcp.pop %v2040
    %v2043 = vmul.f32 1.0, %v2042
    %v2044 = vrcp.pop %v2041
    %v2045 = vmul.f32 1.0, %v2044
    %v2046 = vtanh.pop %v2016
    %v2047 = vtanh.pop %v2020
    %v2048 = vxor.u32 %v2017, 2147483648
    %v2049 = vxor.u32 %v2021, 2147483648
    %v2050 = vmul.f32 %v2048, 1.442695
    %v2051 = vpow.pop %v2050
    %v2052 = vmul.f32 %v2049, 1.442695
    %v2053 = vpow.pop %v2052
    %v2054 = vadd.f32 %v2051, 1.0
    %v2055 = vadd.f32 %v2053, 1.0
    %v2056 = vrcp.pop %v2054
    %v2057 = vmul.f32 1.0, %v2056
    %v2058 = vrcp.pop %v2055
    %v2059 = vmul.f32 1.0, %v2058
    %v2062 = vrot.slane %v1840, 7
    %v2063 = vrot.slane %v1841, 7
    %v2066 = vmul.f32 %v2043, %v2062
    %v2067 = vmul.f32 %v2045, %v2063
    %v2068 = vmul.f32 %v2031, %v2046
    %v2069 = vmul.f32 %v2033, %v2047
    %v2070 = vadd.f32 %v2066, %v2068
    %v2071 = vadd.f32 %v2067, %v2069
    %v2072 = vtanh.pop %v2070
    %v2073 = vtanh.pop %v2071
    %v2074 = vmul.f32 %v2057, %v2072
    %v2075 = vmul.f32 %v2059, %v2073
    %v2078 = vrot.slane %v2074, 4
    %v2079 = vrot.slane %v2075, 3
    %v2080 = vsel %vm1164, %v2079, %v2078
    %2082 = vmatprep.subr.mxu0 %v884
    %2083 = vmatpush1.msra.mxu0 %v883
    %2084 = vmatprep.subr.mxu0 %v888
    %2085 = vmatpush1.msra.mxu0 %v887
    %2086 = vmatprep.subr.mxu0 %v892
    %2087 = vmatpush1.msra.mxu0 %v891
    %2088 = vmatprep.subr.mxu0 %v896
    %2089 = vmatpush1.msra.mxu0 %v895
    %2090 = vmatprep.subr.mxu0 %v900
    %2091 = vmatpush1.msra.mxu0 %v899
    %2092 = vmatprep.subr.mxu0 %v904
    %2093 = vmatpush1.msra.mxu0 %v903
    %2094 = vmatprep.subr.mxu0 %v908
    %2095 = vmatpush1.msra.mxu0 %v907
    %2096 = vmatprep.subr.mxu0 %v912
    %2097 = vmatpush1.msra.mxu0 %v911
    %2098 = vmatprep.subr.mxu0 %v916
    %2099 = vmatpush1.msra.mxu0 %v915
    %2100 = vmatprep.subr.mxu0 %v920
    %2101 = vmatpush1.msra.mxu0 %v919
    %2102 = vmatprep.subr.mxu0 %v924
    %2103 = vmatpush1.msra.mxu0 %v923
    %2104 = vmatprep.subr.mxu0 %v928
    %2105 = vmatpush1.msra.mxu0 %v927
    %2106 = vmatprep.subr.mxu0 %v932
    %2107 = vmatpush1.msra.mxu0 %v931
    %2108 = vmatprep.subr.mxu0 %v936
    %2109 = vmatpush1.msra.mxu0 %v935
    %2110 = vmatprep.subr.mxu0 %v940
    %2111 = vmatpush1.msra.mxu0 %v939
    %2112 = vmatprep.subr.mxu0 %v944
    %2113 = vmatpush1.msra.mxu0 %v943
    %2114 = vmatprep.subr.mxu0 0.0
    %2115 = vmatpush1.msra.mxu0 0.0
    %2116 = vmatprep.subr.mxu0 0.0
    %2117 = vmatpush1.msra.mxu0 0.0
    %2118 = vmatprep.subr.mxu0 0.0
    %2119 = vmatpush1.msra.mxu0 0.0
    %2120 = vmatprep.subr.mxu0 0.0
    %2121 = vmatpush1.msra.mxu0 0.0
    %2122 = vmatprep.subr.mxu0 0.0
    %2123 = vmatpush1.msra.mxu0 0.0
    %2124 = vmatprep.subr.mxu0 0.0
    %2125 = vmatpush1.msra.mxu0 0.0
    %2126 = vmatprep.subr.mxu0 0.0
    %2127 = vmatpush1.msra.mxu0 0.0
    %2128 = vmatprep.subr.mxu0 0.0
    %2129 = vmatpush1.msra.mxu0 0.0
    %2130 = vmatprep.subr.mxu0 0.0
    %2131 = vmatpush1.msra.mxu0 0.0
    %2132 = vmatprep.subr.mxu0 0.0
    %2133 = vmatpush1.msra.mxu0 0.0
    %2134 = vmatprep.subr.mxu0 0.0
    %2135 = vmatpush1.msra.mxu0 0.0
    %2136 = vmatprep.subr.mxu0 0.0
    %2137 = vmatpush1.msra.mxu0 0.0
    %2138 = vmatprep.subr.mxu0 0.0
    %2139 = vmatpush1.msra.mxu0 0.0
    %2140 = vmatprep.subr.mxu0 0.0
    %2141 = vmatpush1.msra.mxu0 0.0
    %2142 = vmatprep.subr.mxu0 0.0
    %2143 = vmatpush1.msra.mxu0 0.0
    %2144 = vmatprep.subr.mxu0 0.0
    %2145 = vmatpush1.msra.mxu0 0.0
    %2146 = vmatprep.mubr.f32.mxu0 0.0
    %2147 = vmatmul.mubr.f32.gmra.mrb[0].mxu0 %v2080
    %v2148 = vpop.f32.mrb[0].mxu0
    %v2149 = vadd.f32 0.0, %v2148
    %v2150 = vpop.f32.mrb[0].mxu0
    %v2151 = vadd.f32 0.0, %v2150
    %2152 = vdwg.mxu0
    %2153 = vmatprep.subr.mxu0 %v886
    %2154 = vmatpush1.msra.mxu0 %v885
    %2155 = vmatprep.subr.mxu0 %v890
    %2156 = vmatpush1.msra.mxu0 %v889
    %2157 = vmatprep.subr.mxu0 %v894
    %2158 = vmatpush1.msra.mxu0 %v893
    %2159 = vmatprep.subr.mxu0 %v898
    %2160 = vmatpush1.msra.mxu0 %v897
    %2161 = vmatprep.subr.mxu0 %v902
    %2162 = vmatpush1.msra.mxu0 %v901
    %2163 = vmatprep.subr.mxu0 %v906
    %2164 = vmatpush1.msra.mxu0 %v905
    %2165 = vmatprep.subr.mxu0 %v910
    %2166 = vmatpush1.msra.mxu0 %v909
    %2167 = vmatprep.subr.mxu0 %v914
    %2168 = vmatpush1.msra.mxu0 %v913
    %2169 = vmatprep.subr.mxu0 %v918
    %2170 = vmatpush1.msra.mxu0 %v917
    %2171 = vmatprep.subr.mxu0 %v922
    %2172 = vmatpush1.msra.mxu0 %v921
    %2173 = vmatprep.subr.mxu0 %v926
    %2174 = vmatpush1.msra.mxu0 %v925
    %2175 = vmatprep.subr.mxu0 %v930
    %2176 = vmatpush1.msra.mxu0 %v929
    %2177 = vmatprep.subr.mxu0 %v934
    %2178 = vmatpush1.msra.mxu0 %v933
    %2179 = vmatprep.subr.mxu0 %v938
    %2180 = vmatpush1.msra.mxu0 %v937
    %2181 = vmatprep.subr.mxu0 %v942
    %2182 = vmatpush1.msra.mxu0 %v941
    %2183 = vmatprep.subr.mxu0 %v946
    %2184 = vmatpush1.msra.mxu0 %v945
    %2185 = vmatprep.subr.mxu0 0.0
    %2186 = vmatpush1.msra.mxu0 0.0
    %2187 = vmatprep.subr.mxu0 0.0
    %2188 = vmatpush1.msra.mxu0 0.0
    %2189 = vmatprep.subr.mxu0 0.0
    %2190 = vmatpush1.msra.mxu0 0.0
    %2191 = vmatprep.subr.mxu0 0.0
    %2192 = vmatpush1.msra.mxu0 0.0
    %2193 = vmatprep.subr.mxu0 0.0
    %2194 = vmatpush1.msra.mxu0 0.0
    %2195 = vmatprep.subr.mxu0 0.0
    %2196 = vmatpush1.msra.mxu0 0.0
    %2197 = vmatprep.subr.mxu0 0.0
    %2198 = vmatpush1.msra.mxu0 0.0
    %2199 = vmatprep.subr.mxu0 0.0
    %2200 = vmatpush1.msra.mxu0 0.0
    %2201 = vmatprep.subr.mxu0 0.0
    %2202 = vmatpush1.msra.mxu0 0.0
    %2203 = vmatprep.subr.mxu0 0.0
    %2204 = vmatpush1.msra.mxu0 0.0
    %2205 = vmatprep.subr.mxu0 0.0
    %2206 = vmatpush1.msra.mxu0 0.0
    %2207 = vmatprep.subr.mxu0 0.0
    %2208 = vmatpush1.msra.mxu0 0.0
    %2209 = vmatprep.subr.mxu0 0.0
    %2210 = vmatpush1.msra.mxu0 0.0
    %2211 = vmatprep.subr.mxu0 0.0
    %2212 = vmatpush1.msra.mxu0 0.0
    %2213 = vmatprep.subr.mxu0 0.0
    %2214 = vmatpush1.msra.mxu0 0.0
    %2215 = vmatprep.subr.mxu0 0.0
    %2216 = vmatpush1.msra.mxu0 0.0
    %2217 = vmatprep.mubr.f32.mxu0 0.0
    %2218 = vmatmul.mubr.f32.gmra.mrb[0].mxu0 %v2080
    %v2219 = vpop.f32.mrb[0].mxu0
    %v2220 = vadd.f32 0.0, %v2219
    %v2221 = vpop.f32.mrb[0].mxu0
    %v2222 = vadd.f32 0.0, %v2221
    %2223 = vdwg.mxu0
    %v2228 = vrot.slane %v2149, 3
    %v2229 = vrot.slane %v2151, 3
    %v2230 = vrot.slane %v2220, 3
    %v2231 = vrot.slane %v2222, 3
    %v2232 = vrot.slane %v2149, 4
    %v2233 = vrot.slane %v2151, 4
    %v2234 = vrot.slane %v2220, 4
    %v2235 = vrot.slane %v2222, 4
    %v2244 = vadd.f32 %v796, %v2228
    %v2245 = vadd.f32 %v798, %v2229
    %v2246 = vadd.f32 %v873, %v2230
    %v2247 = vadd.f32 %v875, %v2231
    %v2248 = vadd.f32 %v802, %v2232
    %v2249 = vadd.f32 %v804, %v2233
    %v2250 = vadd.f32 %v879, %v2234
    %v2251 = vadd.f32 %v881, %v2235
    %v2252 = vxor.u32 %v2244, 2147483648
    %v2253 = vxor.u32 %v2248, 2147483648
    %v2254 = vmul.f32 %v2252, 1.442695
    %v2255 = vpow.pop %v2254
    %v2256 = vmul.f32 %v2253, 1.442695
    %v2257 = vpow.pop %v2256
    %v2258 = vadd.f32 %v2255, 1.0
    %v2259 = vadd.f32 %v2257, 1.0
    %v2260 = vrcp.pop %v2258
    %v2261 = vmul.f32 1.0, %v2260
    %v2262 = vrcp.pop %v2259
    %v2263 = vmul.f32 1.0, %v2262
    %v2264 = vxor.u32 %v2245, 2147483648
    %v2265 = vxor.u32 %v2249, 2147483648
    %v2266 = vmul.f32 %v2264, 1.442695
    %v2267 = vpow.pop %v2266
    %v2268 = vmul.f32 %v2265, 1.442695
    %v2269 = vpow.pop %v2268
    %v2270 = vadd.f32 %v2267, 1.0
    %v2271 = vadd.f32 %v2269, 1.0
    %v2272 = vrcp.pop %v2270
    %v2273 = vmul.f32 1.0, %v2272
    %v2274 = vrcp.pop %v2271
    %v2275 = vmul.f32 1.0, %v2274
    %v2276 = vtanh.pop %v2246
    %v2277 = vtanh.pop %v2250
    %v2278 = vxor.u32 %v2247, 2147483648
    %v2279 = vxor.u32 %v2251, 2147483648
    %v2280 = vmul.f32 %v2278, 1.442695
    %v2281 = vpow.pop %v2280
    %v2282 = vmul.f32 %v2279, 1.442695
    %v2283 = vpow.pop %v2282
    %v2284 = vadd.f32 %v2281, 1.0
    %v2285 = vadd.f32 %v2283, 1.0
    %v2286 = vrcp.pop %v2284
    %v2287 = vmul.f32 1.0, %v2286
    %v2288 = vrcp.pop %v2285
    %v2289 = vmul.f32 1.0, %v2288
    %v2292 = vrot.slane %v2070, 7
    %v2293 = vrot.slane %v2071, 7
    %v2296 = vmul.f32 %v2273, %v2292
    %v2297 = vmul.f32 %v2275, %v2293
    %v2298 = vmul.f32 %v2261, %v2276
    %v2299 = vmul.f32 %v2263, %v2277
    %v2300 = vadd.f32 %v2296, %v2298
    %v2301 = vadd.f32 %v2297, %v2299
    %v2302 = vtanh.pop %v2300
    %v2303 = vtanh.pop %v2301
    %v2304 = vmul.f32 %v2287, %v2302
    %v2305 = vmul.f32 %v2289, %v2303
    %v2308 = vrot.slane %v2304, 5
    %v2309 = vrot.slane %v2305, 4
    %v2310 = vsel %vm1164, %v2309, %v2308
    %2312 = vmatprep.subr.mxu0 %v884
    %2313 = vmatpush1.msra.mxu0 %v883
    %2314 = vmatprep.subr.mxu0 %v888
    %2315 = vmatpush1.msra.mxu0 %v887
    %2316 = vmatprep.subr.mxu0 %v892
    %2317 = vmatpush1.msra.mxu0 %v891
    %2318 = vmatprep.subr.mxu0 %v896
    %2319 = vmatpush1.msra.mxu0 %v895
    %2320 = vmatprep.subr.mxu0 %v900
    %2321 = vmatpush1.msra.mxu0 %v899
    %2322 = vmatprep.subr.mxu0 %v904
    %2323 = vmatpush1.msra.mxu0 %v903
    %2324 = vmatprep.subr.mxu0 %v908
    %2325 = vmatpush1.msra.mxu0 %v907
    %2326 = vmatprep.subr.mxu0 %v912
    %2327 = vmatpush1.msra.mxu0 %v911
    %2328 = vmatprep.subr.mxu0 %v916
    %2329 = vmatpush1.msra.mxu0 %v915
    %2330 = vmatprep.subr.mxu0 %v920
    %2331 = vmatpush1.msra.mxu0 %v919
    %2332 = vmatprep.subr.mxu0 %v924
    %2333 = vmatpush1.msra.mxu0 %v923
    %2334 = vmatprep.subr.mxu0 %v928
    %2335 = vmatpush1.msra.mxu0 %v927
    %2336 = vmatprep.subr.mxu0 %v932
    %2337 = vmatpush1.msra.mxu0 %v931
    %2338 = vmatprep.subr.mxu0 %v936
    %2339 = vmatpush1.msra.mxu0 %v935
    %2340 = vmatprep.subr.mxu0 %v940
    %2341 = vmatpush1.msra.mxu0 %v939
    %2342 = vmatprep.subr.mxu0 %v944
    %2343 = vmatpush1.msra.mxu0 %v943
    %2344 = vmatprep.subr.mxu0 0.0
    %2345 = vmatpush1.msra.mxu0 0.0
    %2346 = vmatprep.subr.mxu0 0.0
    %2347 = vmatpush1.msra.mxu0 0.0
    %2348 = vmatprep.subr.mxu0 0.0
    %2349 = vmatpush1.msra.mxu0 0.0
    %2350 = vmatprep.subr.mxu0 0.0
    %2351 = vmatpush1.msra.mxu0 0.0
    %2352 = vmatprep.subr.mxu0 0.0
    %2353 = vmatpush1.msra.mxu0 0.0
    %2354 = vmatprep.subr.mxu0 0.0
    %2355 = vmatpush1.msra.mxu0 0.0
    %2356 = vmatprep.subr.mxu0 0.0
    %2357 = vmatpush1.msra.mxu0 0.0
    %2358 = vmatprep.subr.mxu0 0.0
    %2359 = vmatpush1.msra.mxu0 0.0
    %2360 = vmatprep.subr.mxu0 0.0
    %2361 = vmatpush1.msra.mxu0 0.0
    %2362 = vmatprep.subr.mxu0 0.0
    %2363 = vmatpush1.msra.mxu0 0.0
    %2364 = vmatprep.subr.mxu0 0.0
    %2365 = vmatpush1.msra.mxu0 0.0
    %2366 = vmatprep.subr.mxu0 0.0
    %2367 = vmatpush1.msra.mxu0 0.0
    %2368 = vmatprep.subr.mxu0 0.0
    %2369 = vmatpush1.msra.mxu0 0.0
    %2370 = vmatprep.subr.mxu0 0.0
    %2371 = vmatpush1.msra.mxu0 0.0
    %2372 = vmatprep.subr.mxu0 0.0
    %2373 = vmatpush1.msra.mxu0 0.0
    %2374 = vmatprep.subr.mxu0 0.0
    %2375 = vmatpush1.msra.mxu0 0.0
    %2376 = vmatprep.mubr.f32.mxu0 0.0
    %2377 = vmatmul.mubr.f32.gmra.mrb[0].mxu0 %v2310
    %v2378 = vpop.f32.mrb[0].mxu0
    %v2379 = vadd.f32 0.0, %v2378
    %v2380 = vpop.f32.mrb[0].mxu0
    %v2381 = vadd.f32 0.0, %v2380
    %2382 = vdwg.mxu0
    %2383 = vmatprep.subr.mxu0 %v886
    %2384 = vmatpush1.msra.mxu0 %v885
    %2385 = vmatprep.subr.mxu0 %v890
    %2386 = vmatpush1.msra.mxu0 %v889
    %2387 = vmatprep.subr.mxu0 %v894
    %2388 = vmatpush1.msra.mxu0 %v893
    %2389 = vmatprep.subr.mxu0 %v898
    %2390 = vmatpush1.msra.mxu0 %v897
    %2391 = vmatprep.subr.mxu0 %v902
    %2392 = vmatpush1.msra.mxu0 %v901
    %2393 = vmatprep.subr.mxu0 %v906
    %2394 = vmatpush1.msra.mxu0 %v905
    %2395 = vmatprep.subr.mxu0 %v910
    %2396 = vmatpush1.msra.mxu0 %v909
    %2397 = vmatprep.subr.mxu0 %v914
    %2398 = vmatpush1.msra.mxu0 %v913
    %2399 = vmatprep.subr.mxu0 %v918
    %2400 = vmatpush1.msra.mxu0 %v917
    %2401 = vmatprep.subr.mxu0 %v922
    %2402 = vmatpush1.msra.mxu0 %v921
    %2403 = vmatprep.subr.mxu0 %v926
    %2404 = vmatpush1.msra.mxu0 %v925
    %2405 = vmatprep.subr.mxu0 %v930
    %2406 = vmatpush1.msra.mxu0 %v929
    %2407 = vmatprep.subr.mxu0 %v934
    %2408 = vmatpush1.msra.mxu0 %v933
    %2409 = vmatprep.subr.mxu0 %v938
    %2410 = vmatpush1.msra.mxu0 %v937
    %2411 = vmatprep.subr.mxu0 %v942
    %2412 = vmatpush1.msra.mxu0 %v941
    %2413 = vmatprep.subr.mxu0 %v946
    %2414 = vmatpush1.msra.mxu0 %v945
    %2415 = vmatprep.subr.mxu0 0.0
    %2416 = vmatpush1.msra.mxu0 0.0
    %2417 = vmatprep.subr.mxu0 0.0
    %2418 = vmatpush1.msra.mxu0 0.0
    %2419 = vmatprep.subr.mxu0 0.0
    %2420 = vmatpush1.msra.mxu0 0.0
    %2421 = vmatprep.subr.mxu0 0.0
    %2422 = vmatpush1.msra.mxu0 0.0
    %2423 = vmatprep.subr.mxu0 0.0
    %2424 = vmatpush1.msra.mxu0 0.0
    %2425 = vmatprep.subr.mxu0 0.0
    %2426 = vmatpush1.msra.mxu0 0.0
    %2427 = vmatprep.subr.mxu0 0.0
    %2428 = vmatpush1.msra.mxu0 0.0
    %2429 = vmatprep.subr.mxu0 0.0
    %2430 = vmatpush1.msra.mxu0 0.0
    %2431 = vmatprep.subr.mxu0 0.0
    %2432 = vmatpush1.msra.mxu0 0.0
    %2433 = vmatprep.subr.mxu0 0.0
    %2434 = vmatpush1.msra.mxu0 0.0
    %2435 = vmatprep.subr.mxu0 0.0
    %2436 = vmatpush1.msra.mxu0 0.0
    %2437 = vmatprep.subr.mxu0 0.0
    %2438 = vmatpush1.msra.mxu0 0.0
    %2439 = vmatprep.subr.mxu0 0.0
    %2440 = vmatpush1.msra.mxu0 0.0
    %2441 = vmatprep.subr.mxu0 0.0
    %2442 = vmatpush1.msra.mxu0 0.0
    %2443 = vmatprep.subr.mxu0 0.0
    %2444 = vmatpush1.msra.mxu0 0.0
    %2445 = vmatprep.subr.mxu0 0.0
    %2446 = vmatpush1.msra.mxu0 0.0
    %2447 = vmatprep.mubr.f32.mxu0 0.0
    %2448 = vmatmul.mubr.f32.gmra.mrb[0].mxu0 %v2310
    %v2449 = vpop.f32.mrb[0].mxu0
    %v2450 = vadd.f32 0.0, %v2449
    %v2451 = vpop.f32.mrb[0].mxu0
    %v2452 = vadd.f32 0.0, %v2451
    %2453 = vdwg.mxu0
    %v2458 = vrot.slane %v2379, 2
    %v2459 = vrot.slane %v2381, 2
    %v2460 = vrot.slane %v2450, 2
    %v2461 = vrot.slane %v2452, 2
    %v2462 = vrot.slane %v2379, 3
    %v2463 = vrot.slane %v2381, 3
    %v2464 = vrot.slane %v2450, 3
    %v2465 = vrot.slane %v2452, 3
    %v2474 = vadd.f32 %v796, %v2458
    %v2475 = vadd.f32 %v798, %v2459
    %v2476 = vadd.f32 %v873, %v2460
    %v2477 = vadd.f32 %v875, %v2461
    %v2478 = vadd.f32 %v802, %v2462
    %v2479 = vadd.f32 %v804, %v2463
    %v2480 = vadd.f32 %v879, %v2464
    %v2481 = vadd.f32 %v881, %v2465
    %v2482 = vxor.u32 %v2474, 2147483648
    %v2483 = vxor.u32 %v2478, 2147483648
    %v2484 = vmul.f32 %v2482, 1.442695
    %v2485 = vpow.pop %v2484
    %v2486 = vmul.f32 %v2483, 1.442695
    %v2487 = vpow.pop %v2486
    %v2488 = vadd.f32 %v2485, 1.0
    %v2489 = vadd.f32 %v2487, 1.0
    %v2490 = vrcp.pop %v2488
    %v2491 = vmul.f32 1.0, %v2490
    %v2492 = vrcp.pop %v2489
    %v2493 = vmul.f32 1.0, %v2492
    %v2494 = vxor.u32 %v2475, 2147483648
    %v2495 = vxor.u32 %v2479, 2147483648
    %v2496 = vmul.f32 %v2494, 1.442695
    %v2497 = vpow.pop %v2496
    %v2498 = vmul.f32 %v2495, 1.442695
    %v2499 = vpow.pop %v2498
    %v2500 = vadd.f32 %v2497, 1.0
    %v2501 = vadd.f32 %v2499, 1.0
    %v2502 = vrcp.pop %v2500
    %v2503 = vmul.f32 1.0, %v2502
    %v2504 = vrcp.pop %v2501
    %v2505 = vmul.f32 1.0, %v2504
    %v2506 = vtanh.pop %v2476
    %v2507 = vtanh.pop %v2480
    %v2508 = vxor.u32 %v2477, 2147483648
    %v2509 = vxor.u32 %v2481, 2147483648
    %v2510 = vmul.f32 %v2508, 1.442695
    %v2511 = vpow.pop %v2510
    %v2512 = vmul.f32 %v2509, 1.442695
    %v2513 = vpow.pop %v2512
    %v2514 = vadd.f32 %v2511, 1.0
    %v2515 = vadd.f32 %v2513, 1.0
    %v2516 = vrcp.pop %v2514
    %v2517 = vmul.f32 1.0, %v2516
    %v2518 = vrcp.pop %v2515
    %v2519 = vmul.f32 1.0, %v2518
    %v2522 = vrot.slane %v2300, 7
    %v2523 = vrot.slane %v2301, 7
    %v2526 = vmul.f32 %v2503, %v2522
    %v2527 = vmul.f32 %v2505, %v2523
    %v2528 = vmul.f32 %v2491, %v2506
    %v2529 = vmul.f32 %v2493, %v2507
    %v2530 = vadd.f32 %v2526, %v2528
    %v2531 = vadd.f32 %v2527, %v2529
    %v2532 = vtanh.pop %v2530
    %v2533 = vtanh.pop %v2531
    %v2534 = vmul.f32 %v2517, %v2532
    %v2535 = vmul.f32 %v2519, %v2533
    %v2538 = vrot.slane %v2534, 6
    %v2539 = vrot.slane %v2535, 5
    %v2540 = vsel %vm1164, %v2539, %v2538
    %2542 = vmatprep.subr.mxu0 %v884
    %2543 = vmatpush1.msra.mxu0 %v883
    %2544 = vmatprep.subr.mxu0 %v888
    %2545 = vmatpush1.msra.mxu0 %v887
    %2546 = vmatprep.subr.mxu0 %v892
    %2547 = vmatpush1.msra.mxu0 %v891
    %2548 = vmatprep.subr.mxu0 %v896
    %2549 = vmatpush1.msra.mxu0 %v895
    %2550 = vmatprep.subr.mxu0 %v900
    %2551 = vmatpush1.msra.mxu0 %v899
    %2552 = vmatprep.subr.mxu0 %v904
    %2553 = vmatpush1.msra.mxu0 %v903
    %2554 = vmatprep.subr.mxu0 %v908
    %2555 = vmatpush1.msra.mxu0 %v907
    %2556 = vmatprep.subr.mxu0 %v912
    %2557 = vmatpush1.msra.mxu0 %v911
    %2558 = vmatprep.subr.mxu0 %v916
    %2559 = vmatpush1.msra.mxu0 %v915
    %2560 = vmatprep.subr.mxu0 %v920
    %2561 = vmatpush1.msra.mxu0 %v919
    %2562 = vmatprep.subr.mxu0 %v924
    %2563 = vmatpush1.msra.mxu0 %v923
    %2564 = vmatprep.subr.mxu0 %v928
    %2565 = vmatpush1.msra.mxu0 %v927
    %2566 = vmatprep.subr.mxu0 %v932
    %2567 = vmatpush1.msra.mxu0 %v931
    %2568 = vmatprep.subr.mxu0 %v936
    %2569 = vmatpush1.msra.mxu0 %v935
    %2570 = vmatprep.subr.mxu0 %v940
    %2571 = vmatpush1.msra.mxu0 %v939
    %2572 = vmatprep.subr.mxu0 %v944
    %2573 = vmatpush1.msra.mxu0 %v943
    %2574 = vmatprep.subr.mxu0 0.0
    %2575 = vmatpush1.msra.mxu0 0.0
    %2576 = vmatprep.subr.mxu0 0.0
    %2577 = vmatpush1.msra.mxu0 0.0
    %2578 = vmatprep.subr.mxu0 0.0
    %2579 = vmatpush1.msra.mxu0 0.0
    %2580 = vmatprep.subr.mxu0 0.0
    %2581 = vmatpush1.msra.mxu0 0.0
    %2582 = vmatprep.subr.mxu0 0.0
    %2583 = vmatpush1.msra.mxu0 0.0
    %2584 = vmatprep.subr.mxu0 0.0
    %2585 = vmatpush1.msra.mxu0 0.0
    %2586 = vmatprep.subr.mxu0 0.0
    %2587 = vmatpush1.msra.mxu0 0.0
    %2588 = vmatprep.subr.mxu0 0.0
    %2589 = vmatpush1.msra.mxu0 0.0
    %2590 = vmatprep.subr.mxu0 0.0
    %2591 = vmatpush1.msra.mxu0 0.0
    %2592 = vmatprep.subr.mxu0 0.0
    %2593 = vmatpush1.msra.mxu0 0.0
    %2594 = vmatprep.subr.mxu0 0.0
    %2595 = vmatpush1.msra.mxu0 0.0
    %2596 = vmatprep.subr.mxu0 0.0
    %2597 = vmatpush1.msra.mxu0 0.0
    %2598 = vmatprep.subr.mxu0 0.0
    %2599 = vmatpush1.msra.mxu0 0.0
    %2600 = vmatprep.subr.mxu0 0.0
    %2601 = vmatpush1.msra.mxu0 0.0
    %2602 = vmatprep.subr.mxu0 0.0
    %2603 = vmatpush1.msra.mxu0 0.0
    %2604 = vmatprep.subr.mxu0 0.0
    %2605 = vmatpush1.msra.mxu0 0.0
    %2606 = vmatprep.mubr.f32.mxu0 0.0
    %2607 = vmatmul.mubr.f32.gmra.mrb[0].mxu0 %v2540
    %v2608 = vpop.f32.mrb[0].mxu0
    %v2609 = vadd.f32 0.0, %v2608
    %v2610 = vpop.f32.mrb[0].mxu0
    %v2611 = vadd.f32 0.0, %v2610
    %2612 = vdwg.mxu0
    %2613 = vmatprep.subr.mxu0 %v886
    %2614 = vmatpush1.msra.mxu0 %v885
    %2615 = vmatprep.subr.mxu0 %v890
    %2616 = vmatpush1.msra.mxu0 %v889
    %2617 = vmatprep.subr.mxu0 %v894
    %2618 = vmatpush1.msra.mxu0 %v893
    %2619 = vmatprep.subr.mxu0 %v898
    %2620 = vmatpush1.msra.mxu0 %v897
    %2621 = vmatprep.subr.mxu0 %v902
    %2622 = vmatpush1.msra.mxu0 %v901
    %2623 = vmatprep.subr.mxu0 %v906
    %2624 = vmatpush1.msra.mxu0 %v905
    %2625 = vmatprep.subr.mxu0 %v910
    %2626 = vmatpush1.msra.mxu0 %v909
    %2627 = vmatprep.subr.mxu0 %v914
    %2628 = vmatpush1.msra.mxu0 %v913
    %2629 = vmatprep.subr.mxu0 %v918
    %2630 = vmatpush1.msra.mxu0 %v917
    %2631 = vmatprep.subr.mxu0 %v922
    %2632 = vmatpush1.msra.mxu0 %v921
    %2633 = vmatprep.subr.mxu0 %v926
    %2634 = vmatpush1.msra.mxu0 %v925
    %2635 = vmatprep.subr.mxu0 %v930
    %2636 = vmatpush1.msra.mxu0 %v929
    %2637 = vmatprep.subr.mxu0 %v934
    %2638 = vmatpush1.msra.mxu0 %v933
    %2639 = vmatprep.subr.mxu0 %v938
    %2640 = vmatpush1.msra.mxu0 %v937
    %2641 = vmatprep.subr.mxu0 %v942
    %2642 = vmatpush1.msra.mxu0 %v941
    %2643 = vmatprep.subr.mxu0 %v946
    %2644 = vmatpush1.msra.mxu0 %v945
    %2645 = vmatprep.subr.mxu0 0.0
    %2646 = vmatpush1.msra.mxu0 0.0
    %2647 = vmatprep.subr.mxu0 0.0
    %2648 = vmatpush1.msra.mxu0 0.0
    %2649 = vmatprep.subr.mxu0 0.0
    %2650 = vmatpush1.msra.mxu0 0.0
    %2651 = vmatprep.subr.mxu0 0.0
    %2652 = vmatpush1.msra.mxu0 0.0
    %2653 = vmatprep.subr.mxu0 0.0
    %2654 = vmatpush1.msra.mxu0 0.0
    %2655 = vmatprep.subr.mxu0 0.0
    %2656 = vmatpush1.msra.mxu0 0.0
    %2657 = vmatprep.subr.mxu0 0.0
    %2658 = vmatpush1.msra.mxu0 0.0
    %2659 = vmatprep.subr.mxu0 0.0
    %2660 = vmatpush1.msra.mxu0 0.0
    %2661 = vmatprep.subr.mxu0 0.0
    %2662 = vmatpush1.msra.mxu0 0.0
    %2663 = vmatprep.subr.mxu0 0.0
    %2664 = vmatpush1.msra.mxu0 0.0
    %2665 = vmatprep.subr.mxu0 0.0
    %2666 = vmatpush1.msra.mxu0 0.0
    %2667 = vmatprep.subr.mxu0 0.0
    %2668 = vmatpush1.msra.mxu0 0.0
    %2669 = vmatprep.subr.mxu0 0.0
    %2670 = vmatpush1.msra.mxu0 0.0
    %2671 = vmatprep.subr.mxu0 0.0
    %2672 = vmatpush1.msra.mxu0 0.0
    %2673 = vmatprep.subr.mxu0 0.0
    %2674 = vmatpush1.msra.mxu0 0.0
    %2675 = vmatprep.subr.mxu0 0.0
    %2676 = vmatpush1.msra.mxu0 0.0
    %2677 = vmatprep.mubr.f32.mxu0 0.0
    %2678 = vmatmul.mubr.f32.gmra.mrb[0].mxu0 %v2540
    %v2679 = vpop.f32.mrb[0].mxu0
    %v2680 = vadd.f32 0.0, %v2679
    %v2681 = vpop.f32.mrb[0].mxu0
    %v2682 = vadd.f32 0.0, %v2681
    %2683 = vdwg.mxu0
    %v2688 = vrot.slane %v2609, 1
    %v2689 = vrot.slane %v2611, 1
    %v2690 = vrot.slane %v2680, 1
    %v2691 = vrot.slane %v2682, 1
    %v2692 = vrot.slane %v2609, 2
    %v2693 = vrot.slane %v2611, 2
    %v2694 = vrot.slane %v2680, 2
    %v2695 = vrot.slane %v2682, 2
    %v2704 = vadd.f32 %v796, %v2688
    %v2705 = vadd.f32 %v798, %v2689
    %v2706 = vadd.f32 %v873, %v2690
    %v2707 = vadd.f32 %v875, %v2691
    %v2708 = vadd.f32 %v802, %v2692
    %v2709 = vadd.f32 %v804, %v2693
    %v2710 = vadd.f32 %v879, %v2694
    %v2711 = vadd.f32 %v881, %v2695
    %v2712 = vxor.u32 %v2704, 2147483648
    %v2713 = vxor.u32 %v2708, 2147483648
    %v2714 = vmul.f32 %v2712, 1.442695
    %v2715 = vpow.pop %v2714
    %v2716 = vmul.f32 %v2713, 1.442695
    %v2717 = vpow.pop %v2716
    %v2718 = vadd.f32 %v2715, 1.0
    %v2719 = vadd.f32 %v2717, 1.0
    %v2720 = vrcp.pop %v2718
    %v2721 = vmul.f32 1.0, %v2720
    %v2722 = vrcp.pop %v2719
    %v2723 = vmul.f32 1.0, %v2722
    %v2724 = vxor.u32 %v2705, 2147483648
    %v2725 = vxor.u32 %v2709, 2147483648
    %v2726 = vmul.f32 %v2724, 1.442695
    %v2727 = vpow.pop %v2726
    %v2728 = vmul.f32 %v2725, 1.442695
    %v2729 = vpow.pop %v2728
    %v2730 = vadd.f32 %v2727, 1.0
    %v2731 = vadd.f32 %v2729, 1.0
    %v2732 = vrcp.pop %v2730
    %v2733 = vmul.f32 1.0, %v2732
    %v2734 = vrcp.pop %v2731
    %v2735 = vmul.f32 1.0, %v2734
    %v2736 = vtanh.pop %v2706
    %v2737 = vtanh.pop %v2710
    %v2738 = vxor.u32 %v2707, 2147483648
    %v2739 = vxor.u32 %v2711, 2147483648
    %v2740 = vmul.f32 %v2738, 1.442695
    %v2741 = vpow.pop %v2740
    %v2742 = vmul.f32 %v2739, 1.442695
    %v2743 = vpow.pop %v2742
    %v2744 = vadd.f32 %v2741, 1.0
    %v2745 = vadd.f32 %v2743, 1.0
    %v2746 = vrcp.pop %v2744
    %v2747 = vmul.f32 1.0, %v2746
    %v2748 = vrcp.pop %v2745
    %v2749 = vmul.f32 1.0, %v2748
    %v2752 = vrot.slane %v2530, 7
    %v2753 = vrot.slane %v2531, 7
    %v2756 = vmul.f32 %v2733, %v2752
    %v2757 = vmul.f32 %v2735, %v2753
    %v2758 = vmul.f32 %v2721, %v2736
    %v2759 = vmul.f32 %v2723, %v2737
    %v2760 = vadd.f32 %v2756, %v2758
    %v2761 = vadd.f32 %v2757, %v2759
    %v2762 = vtanh.pop %v2760
    %v2763 = vtanh.pop %v2761
    %v2764 = vmul.f32 %v2747, %v2762
    %v2765 = vmul.f32 %v2749, %v2763
    %v2766 = vld [vmem:[%s10] sm:$0xff]
    %v2767 = vld [vmem:[%s10 + $0x8] sm:$0xff]
    %v2768 = vld [vmem:[%s10 + $0x10] sm:$0xff]
    %v2769 = vld [vmem:[%s10 + $0x18] sm:$0xff]
    %v2770 = vld [vmem:[%s10 + $0x20] sm:$0xff]
    %v2771 = vld [vmem:[%s10 + $0x28] sm:$0xff]
    %v2772 = vld [vmem:[%s10 + $0x30] sm:$0xff]
    %v2773 = vld [vmem:[%s10 + $0x38] sm:$0xff]
    %v2774 = vld [vmem:[%s10 + $0x40] sm:$0xff]
    %v2775 = vld [vmem:[%s10 + $0x48] sm:$0xff]
    %v2776 = vld [vmem:[%s10 + $0x50] sm:$0xff]
    %v2777 = vld [vmem:[%s10 + $0x58] sm:$0xff]
    %v2778 = vld [vmem:[%s10 + $0x60] sm:$0xff]
    %v2779 = vld [vmem:[%s10 + $0x68] sm:$0xff]
    %v2780 = vld [vmem:[%s10 + $0x70] sm:$0xff]
    %v2781 = vld [vmem:[%s10 + $0x78] sm:$0xff]
    %v2782 = vld [vmem:[%s11] sm:$0x1]
    %v2784 = vlaneseq
    %v2785 = vshrl.u32 %v2784, 7
    %v2786 = vsub.s32 0, %v2785
    %v2787 = vrot.slane %v2782, %v2786
    %v2791 = vrot.slane %v2764, 7
    %v2792 = vrot.slane %v2765, 6
    %v2793 = vsel %vm1164, %v2792, %v2791
    %2795 = vmatprep.subr.mxu0 0.0
    %2796 = vmatpush1.msra.mxu0 %v2766
    %2797 = vmatprep.subr.mxu0 0.0
    %2798 = vmatpush1.msra.mxu0 %v2767
    %2799 = vmatprep.subr.mxu0 0.0
    %2800 = vmatpush1.msra.mxu0 %v2768
    %2801 = vmatprep.subr.mxu0 0.0
    %2802 = vmatpush1.msra.mxu0 %v2769
    %2803 = vmatprep.subr.mxu0 0.0
    %2804 = vmatpush1.msra.mxu0 %v2770
    %2805 = vmatprep.subr.mxu0 0.0
    %2806 = vmatpush1.msra.mxu0 %v2771
    %2807 = vmatprep.subr.mxu0 0.0
    %2808 = vmatpush1.msra.mxu0 %v2772
    %2809 = vmatprep.subr.mxu0 0.0
    %2810 = vmatpush1.msra.mxu0 %v2773
    %2811 = vmatprep.subr.mxu0 0.0
    %2812 = vmatpush1.msra.mxu0 %v2774
    %2813 = vmatprep.subr.mxu0 0.0
    %2814 = vmatpush1.msra.mxu0 %v2775
    %2815 = vmatprep.subr.mxu0 0.0
    %2816 = vmatpush1.msra.mxu0 %v2776
    %2817 = vmatprep.subr.mxu0 0.0
    %2818 = vmatpush1.msra.mxu0 %v2777
    %2819 = vmatprep.subr.mxu0 0.0
    %2820 = vmatpush1.msra.mxu0 %v2778
    %2821 = vmatprep.subr.mxu0 0.0
    %2822 = vmatpush1.msra.mxu0 %v2779
    %2823 = vmatprep.subr.mxu0 0.0
    %2824 = vmatpush1.msra.mxu0 %v2780
    %2825 = vmatprep.subr.mxu0 0.0
    %2826 = vmatpush1.msra.mxu0 %v2781
    %2827 = vmatprep.subr.mxu0 0.0
    %2828 = vmatpush1.msra.mxu0 0.0
    %2829 = vmatprep.subr.mxu0 0.0
    %2830 = vmatpush1.msra.mxu0 0.0
    %2831 = vmatprep.subr.mxu0 0.0
    %2832 = vmatpush1.msra.mxu0 0.0
    %2833 = vmatprep.subr.mxu0 0.0
    %2834 = vmatpush1.msra.mxu0 0.0
    %2835 = vmatprep.subr.mxu0 0.0
    %2836 = vmatpush1.msra.mxu0 0.0
    %2837 = vmatprep.subr.mxu0 0.0
    %2838 = vmatpush1.msra.mxu0 0.0
    %2839 = vmatprep.subr.mxu0 0.0
    %2840 = vmatpush1.msra.mxu0 0.0
    %2841 = vmatprep.subr.mxu0 0.0
    %2842 = vmatpush1.msra.mxu0 0.0
    %2843 = vmatprep.subr.mxu0 0.0
    %2844 = vmatpush1.msra.mxu0 0.0
    %2845 = vmatprep.subr.mxu0 0.0
    %2846 = vmatpush1.msra.mxu0 0.0
    %2847 = vmatprep.subr.mxu0 0.0
    %2848 = vmatpush1.msra.mxu0 0.0
    %2849 = vmatprep.subr.mxu0 0.0
    %2850 = vmatpush1.msra.mxu0 0.0
    %2851 = vmatprep.subr.mxu0 0.0
    %2852 = vmatpush1.msra.mxu0 0.0
    %2853 = vmatprep.subr.mxu0 0.0
    %2854 = vmatpush1.msra.mxu0 0.0
    %2855 = vmatprep.subr.mxu0 0.0
    %2856 = vmatpush1.msra.mxu0 0.0
    %2857 = vmatprep.subr.mxu0 0.0
    %2858 = vmatpush1.msra.mxu0 0.0
    %2859 = vmatprep.mubr.f32.mxu0 0.0
    %2860 = vmatmul.mubr.f32.gmra.mrb[0].mxu0 %v2793
    %v2861 = vpop.f32.mrb[0].mxu0
    %v2862 = vadd.f32 %v2787, %v2861
    %v2863 = vpop.f32.mrb[0].mxu0
    %2864 = vdwg.mxu0
    %2865 = vst [vmem:[#allocation8] sm:$0x3] %v2862
    // Predicated region
    $region62: #{forward.1} parent=1 // pred_check
      _
    $region63: #{forward.1} parent=1 // pred_check_branch
      %2867 = sbr.rel (0) target = $region65
    $region64: #{forward.1} parent=1 // pred_region
      %s2869 = ssub.s32 32, 32
      %2870 = vsyncadd [#allocation4], %s2869
      %s2872 = sshll.u32 [#allocation8], 4
      %s2873 = int_to_ptr.vmem [resolvable:$true] %s2872
      %2875 = dma.vmem_to_hbm [thread:$0]  %s2873, 32, %s12, [#allocation4]
    $region65: #{forward.1} parent=1 // pred_fallthru
      _
    // Predicated region
    $region66: #{forward.1} parent=1 // pred_check
      _
    $region67: #{forward.1} parent=1 // pred_check_branch
      %2877 = sbr.rel (0) target = $region69
    $region68: #{forward.1} parent=1 // pred_region
      %s2879 = ssub.s32 256, 256
      %2880 = vsyncadd [#allocation10], %s2879
      %s2881 = sshll.u32 [#allocation9], 4
      %s2882 = int_to_ptr.vmem [resolvable:$true] %s2881
      %2887 = dma.vmem_to_hbm [thread:$0]  %s2882, 256, %s13, [#allocation10], 128, 128, 8
    $region69: #{forward.1} parent=1 // pred_fallthru
      _
    // Predicated region
    $region70: #{forward.1} parent=1 // pred_check
      _
    $region71: #{forward.1} parent=1 // pred_check_branch
      %2889 = sbr.rel (0) target = $region73
    $region72: #{forward.1} parent=1 // pred_region
      %s2891 = ssub.s32 256, 256
      %2892 = vsyncadd [#allocation10], %s2891
      %s2893 = sshll.u32 [#allocation11], 4
      %s2894 = int_to_ptr.vmem [resolvable:$true] %s2893
      %2899 = dma.vmem_to_hbm [thread:$0]  %s2894, 256, %s14, [#allocation10], 128, 128, 8
    $region73: #{forward.1} parent=1 // pred_fallthru
      _
    // Predicated region
    $region74: #{forward.1} parent=1 // pred_check
      _
    $region75: #{forward.1} parent=1 // pred_check_branch
      %2901 = sbr.rel (0) target = $region77
    $region76: #{forward.1} parent=1 // pred_region
      %2902 = dma.done [#allocation4], 32
    $region77: #{forward.1} parent=1 // pred_fallthru
      _
    // Predicated region
    $region78: #{forward.1} parent=1 // pred_check
      _
    $region79: #{forward.1} parent=1 // pred_check_branch
      %2904 = sbr.rel (0) target = $region81
    $region80: #{forward.1} parent=1 // pred_region
      %2905 = dma.done [#allocation10], 256
    $region81: #{forward.1} parent=1 // pred_fallthru
      _
    // Predicated region
    $region82: #{forward.1} parent=1 // pred_check
      _
    $region83: #{forward.1} parent=1 // pred_check_branch
      %2907 = sbr.rel (0) target = $region85
    $region84: #{forward.1} parent=1 // pred_region
      %2908 = dma.done [#allocation10], 256
    $region85: #{forward.1} parent=1 // pred_fallthru
      _
    %2909 = vsyncpa [#allocation3], 1
    %2910 = vsyncpa [#allocation6], 1
    %2911 = vsyncpa [#allocation4], 1
    %2912 = vsyncpa [#allocation10], 1

</llo_original>
